<compile_context>
chip_gen: v6e
topology: v6e:2x2x1
jax: 0.10.0
libtpu: 0.0.40
codegen_flags: <defaults>
</compile_context>

<pallas_src>
import numpy as np
import jax
import jax.numpy as jnp
from jax.experimental import pallas as pl
from jax.experimental.pallas import tpu as pltpu


def _sigmoid(x):
    return 1.0 / (1.0 + jnp.exp(-x))


# ----------------------------- Pallas kernel ------------------------------ #
def _make_kernel(T, L, H, F, Dmax):
    three_h = 3 * H

    def kernel(lens_ref, x_ref, w_ih_ref, w_hh_ref, gb_ref, hw_ref, hb_ref,
               out_ref):
        f32 = jnp.float32
        lens = lens_ref[...]                          # [TB, 1] int32
        TB = lens.shape[0]

        # Hoist packed weights out of the time loop.
        w_ih = [w_ih_ref[k] for k in range(L)]        # [Dmax, 3H]
        w_hh = [w_hh_ref[k] for k in range(L)]        # [H, 3H]
        gb = [gb_ref[k] for k in range(L)]            # [2, 3H] (b_ih, b_hh)

        hs = [jnp.zeros((TB, H), f32) for _ in range(L)]

        # Static unroll: T and L are small compile-time constants.
        for t in range(T):
            x_t = x_ref[t]                            # [TB, Dmax]
            valid = lens > t                          # [TB, 1] bool (packing mask)
            inp = x_t
            for k in range(L):
                w_i = w_ih[k] if k == 0 else w_ih[k][:H, :]
                gi = jnp.dot(inp, w_i, preferred_element_type=f32) + gb[k][0:1, :]
                gh = jnp.dot(hs[k], w_hh[k], preferred_element_type=f32) + gb[k][1:2, :]
                r = _sigmoid(gi[:, 0:H] + gh[:, 0:H])
                z = _sigmoid(gi[:, H:2 * H] + gh[:, H:2 * H])
                n = jnp.tanh(gi[:, 2 * H:three_h] + r * gh[:, 2 * H:three_h])
                h_new = (1.0 - z) * n + z * hs[k]
                hs[k] = jnp.where(valid, h_new, hs[k])   # frozen past length
                inp = hs[k]

        # Head: Linear -> tanh -> fc_1 -> tanh -> fc_2 (scalar).
        # TODO(synk): F.dropout is identity here (inference); no RNG applied.
        w_lin = hw_ref[0:H, :]
        w_fc1 = hw_ref[H:H + F, :]
        w_fc2 = hw_ref[H + F:H + 2 * F, :]            # only column 0 is real
        b_lin = hb_ref[0:1, :]
        b_fc1 = hb_ref[1:2, :]
        b_fc2 = hb_ref[2:3, :]

        e = jnp.tanh(jnp.dot(hs[L - 1], w_lin, preferred_element_type=f32) + b_lin)
        m = jnp.tanh(jnp.dot(e, w_fc1, preferred_element_type=f32) + b_fc1)
        o = jnp.dot(m, w_fc2, preferred_element_type=f32) + b_fc2
        out_ref[...] = o[:, 0:1]

    return kernel


# ------------------------------ Parameters --------------------------------- #
def init_params(key, audio_dim, gru_hidden, fc_hidden, num_layers):
    """PyTorch-style init. GRU weights kept in torch layout [3H, in]/[3H, H]."""
    H = gru_hidden
    keys = jax.random.split(key, num_layers * 4 + 6)
    ki = iter(range(len(keys)))

    def unif(k, shape, bound):
        return jax.random.uniform(k, shape, jnp.float32, -bound, bound)

    p = {"gru": []}
    bound = 1.0 / np.sqrt(H)
    for layer in range(num_layers):
        in_dim = audio_dim if layer == 0 else H
        w_ih = unif(keys[next(ki)], (3 * H, in_dim), bound)
        w_hh = unif(keys[next(ki)], (3 * H, H), bound)
        b_ih = unif(keys[next(ki)], (3 * H,), bound)
        b_hh = unif(keys[next(ki)], (3 * H,), bound)
        p["gru"].append((w_ih, w_hh, b_ih, b_hh))

    def linear(kw, kb, in_dim, out_dim):
        bd = 1.0 / np.sqrt(in_dim)
        return unif(kw, (out_dim, in_dim), bd), unif(kb, (out_dim,), bd)

    p["linear"] = linear(keys[next(ki)], keys[next(ki)], H, fc_hidden)
    p["fc_1"] = linear(keys[next(ki)], keys[next(ki)], fc_hidden, fc_hidden)
    p["fc_2"] = linear(keys[next(ki)], keys[next(ki)], fc_hidden, 1)
    return p


# -------------------------------- Wrapper ----------------------------------- #
def audio_rnn_forward(input_features, input_length, params, *,
                      gru_hidden, fc_hidden, num_layers):
    B, T, D = input_features.shape
    H, F, L = gru_hidden, fc_hidden, num_layers
    Dmax = max(D, H)
    three_h = 3 * H
    TB = 8                                   # batch tile = f32 sublane count
    B_pad = ((B + TB - 1) // TB) * TB

    # Time-major, batch padded to sublane multiple, features padded to Dmax.
    x = jnp.transpose(input_features.astype(jnp.float32), (1, 0, 2))   # [T,B,D]
    x = jnp.pad(x, ((0, 0), (0, B_pad - B), (0, Dmax - D)))
    lens = jnp.pad(input_length.astype(jnp.int32), (0, B_pad - B))
    lens = lens.reshape(B_pad, 1)            # padded rows: length 0 -> never update

    # Pack parameters into a few slabs (cuts 4L+6 arrays down to 5 DMAs).
    w_ih_all = jnp.zeros((L, Dmax, three_h), jnp.float32)
    w_hh_all = jnp.zeros((L, H, three_h), jnp.float32)
    gru_b = jnp.zeros((L, 2, three_h), jnp.float32)
    for k in range(L):
        w_ih, w_hh, b_ih, b_hh = params["gru"][k]
        in_k = w_ih.shape[1]
        w_ih_all = w_ih_all.at[k, :in_k, :].set(w_ih.T)
        w_hh_all = w_hh_all.at[k].set(w_hh.T)
        gru_b = gru_b.at[k, 0].set(b_ih)
        gru_b = gru_b.at[k, 1].set(b_hh)

    w_lin, b_lin = params["linear"]
    w_fc1, b_fc1 = params["fc_1"]
    w_fc2, b_fc2 = params["fc_2"]
    head_w = jnp.zeros((H + 2 * F, F), jnp.float32)
    head_w = head_w.at[:H, :].set(w_lin.T)
    head_w = head_w.at[H:H + F, :].set(w_fc1.T)
    head_w = head_w.at[H + F:H + 2 * F, 0:1].set(w_fc2.T)
    head_b = jnp.zeros((3, F), jnp.float32)
    head_b = head_b.at[0, :].set(b_lin)
    head_b = head_b.at[1, :].set(b_fc1)
    head_b = head_b.at[2, 0].set(b_fc2[0])

    kernel = _make_kernel(T, L, H, F, Dmax)

    flops = (2 * B_pad * T * L * (Dmax + H) * three_h
             + 2 * B_pad * (H + 2 * F) * F)
    transcendentals = B_pad * T * L * three_h + 2 * B_pad * F
    bytes_accessed = 4 * int(lens.size + x.size + w_ih_all.size + w_hh_all.size
                             + gru_b.size + head_w.size + head_b.size + B_pad)

    out = pl.pallas_call(
        kernel,
        out_shape=jax.ShapeDtypeStruct((B_pad, 1), jnp.float32),
        grid_spec=pltpu.PrefetchScalarGridSpec(
            num_scalar_prefetch=0,
            grid=(B_pad // TB,),
            in_specs=[
                pl.BlockSpec((TB, 1), lambda i: (i, 0)),              # lengths
                pl.BlockSpec((T, TB, Dmax), lambda i: (0, i, 0)),     # features
                pl.BlockSpec((L, Dmax, three_h), lambda i: (0, 0, 0)),
                pl.BlockSpec((L, H, three_h), lambda i: (0, 0, 0)),
                pl.BlockSpec((L, 2, three_h), lambda i: (0, 0, 0)),
                pl.BlockSpec((H + 2 * F, F), lambda i: (0, 0)),
                pl.BlockSpec((3, F), lambda i: (0, 0)),
            ],
            out_specs=pl.BlockSpec((TB, 1), lambda i: (i, 0)),
        ),
        compiler_params=pltpu.CompilerParams(
            dimension_semantics=("parallel",),
        ),
        cost_estimate=pl.CostEstimate(
            flops=flops,
            transcendentals=transcendentals,
            bytes_accessed=bytes_accessed),
    )(lens, x, w_ih_all, w_hh_all, gru_b, head_w, head_b)

    return out[:B]


# --------------------------- Pure reference (numpy) ------------------------- #
def _reference(feats, lengths, params, H, F, L):
    feats = np.asarray(feats, np.float32)
    lengths = np.asarray(lengths)
    B = feats.shape[0]

    def sigmoid(v):
        return 1.0 / (1.0 + np.exp(-v))

    outs = np.zeros((B, 1), np.float32)
    for b in range(B):
        h = [np.zeros((H,), np.float32) for _ in range(L)]
        for t in range(int(lengths[b])):
            x = feats[b, t]
            for k in range(L):
                w_ih, w_hh, b_ih, b_hh = [np.asarray(a, np.float32)
                                          for a in params["gru"][k]]
                gi = w_ih @ x + b_ih
                gh = w_hh @ h[k] + b_hh
                r = sigmoid(gi[:H] + gh[:H])
                z = sigmoid(gi[H:2 * H] + gh[H:2 * H])
                n = np.tanh(gi[2 * H:] + r * gh[2 * H:])
                h[k] = (1.0 - z) * n + z * h[k]
                x = h[k]
        w_lin, b_lin = [np.asarray(a, np.float32) for a in params["linear"]]
        w_fc1, b_fc1 = [np.asarray(a, np.float32) for a in params["fc_1"]]
        w_fc2, b_fc2 = [np.asarray(a, np.float32) for a in params["fc_2"]]
        e = np.tanh(w_lin @ h[-1] + b_lin)
        m = np.tanh(w_fc1 @ e + b_fc1)
        outs[b] = w_fc2 @ m + b_fc2
    return outs


# ---------------------------------- Main ------------------------------------ #
if __name__ == "__main__":
    B = 4             # batch
    T = 8             # max (padded) sequence length
    AUDIO_DIM = 24    # params.audio_dim
    GRU_HIDDEN = 32   # params.acoustic_gru_hidden_dim
    FC_HIDDEN = 32    # params.fc_hidden_dim
    NUM_LAYERS = 2    # params.num_gru_layers

    key = jax.random.PRNGKey(0)
    k_x, k_p = jax.random.split(key)
    input_features = jax.random.normal(k_x, (B, T, AUDIO_DIM), jnp.float32)
    input_length = jnp.array([8, 5, 3, 6], jnp.int32)   # variable lengths <= T
    params = init_params(k_p, AUDIO_DIM, GRU_HIDDEN, FC_HIDDEN, NUM_LAYERS)

    out = audio_rnn_forward(input_features, input_length, params,
                            gru_hidden=GRU_HIDDEN, fc_hidden=FC_HIDDEN,
                            num_layers=NUM_LAYERS)
    out = jax.block_until_ready(out)

    ref = _reference(input_features, input_length, params,
                     GRU_HIDDEN, FC_HIDDEN, NUM_LAYERS)
    assert out.shape == (B, 1), out.shape
    np.testing.assert_allclose(np.asarray(out), ref, rtol=1e-4, atol=1e-4)
    print("KERNEL_OK")
</pallas_src>

<mosaic_0001>
module attributes {stable_mosaic.version = 11 : i64} {
  func.func @kernel(%arg0: i32, %arg1: memref<8x1xi32, #tpu.memory_space<vmem>>, %arg2: memref<8x8x32xf32, #tpu.memory_space<vmem>>, %arg3: memref<2x32x96xf32, #tpu.memory_space<vmem>>, %arg4: memref<2x32x96xf32, #tpu.memory_space<vmem>>, %arg5: memref<2x2x96xf32, #tpu.memory_space<vmem>>, %arg6: memref<96x32xf32, #tpu.memory_space<vmem>>, %arg7: memref<3x32xf32, #tpu.memory_space<vmem>>, %arg8: memref<8x1xf32, #tpu.memory_space<vmem>>) attributes {dimension_semantics = [#tpu.dimension_semantics<parallel>], iteration_bounds = array<i64: 1>, scalar_prefetch = 0 : i64, scratch_operands = 0 : i64, tpu.core_type = #tpu.core_type<tc>, window_params = [{transform_indices = @transform_0, window_bounds = array<i64: 8, 1>}, {transform_indices = @transform_1, window_bounds = array<i64: 8, 8, 32>}, {pipeline_mode = #tpu.pipeline_mode<synchronous>, transform_indices = @transform_2, window_bounds = array<i64: 2, 32, 96>}, {pipeline_mode = #tpu.pipeline_mode<synchronous>, transform_indices = @transform_3, window_bounds = array<i64: 2, 32, 96>}, {pipeline_mode = #tpu.pipeline_mode<synchronous>, transform_indices = @transform_4, window_bounds = array<i64: 2, 2, 96>}, {pipeline_mode = #tpu.pipeline_mode<synchronous>, transform_indices = @transform_5, window_bounds = array<i64: 96, 32>}, {pipeline_mode = #tpu.pipeline_mode<synchronous>, transform_indices = @transform_6, window_bounds = array<i64: 3, 32>}, {transform_indices = @transform_7, window_bounds = array<i64: 8, 1>}]} {
    %c0 = arith.constant 0 : index
    %c0_0 = arith.constant 0 : index
    %0 = vector.load %arg1[%c0, %c0_0] : memref<8x1xi32, #tpu.memory_space<vmem>>, vector<8x1xi32>
    %c0_1 = arith.constant 0 : index
    %c0_2 = arith.constant 0 : index
    %c0_3 = arith.constant 0 : index
    %1 = vector.load %arg3[%c0_1, %c0_2, %c0_3] : memref<2x32x96xf32, #tpu.memory_space<vmem>>, vector<1x32x96xf32>
    %2 = vector.shape_cast %1 : vector<1x32x96xf32> to vector<32x96xf32>
    %c1 = arith.constant 1 : index
    %c0_4 = arith.constant 0 : index
    %c0_5 = arith.constant 0 : index
    %3 = vector.load %arg3[%c1, %c0_4, %c0_5] : memref<2x32x96xf32, #tpu.memory_space<vmem>>, vector<1x32x96xf32>
    %4 = vector.shape_cast %3 : vector<1x32x96xf32> to vector<32x96xf32>
    %c0_6 = arith.constant 0 : index
    %c0_7 = arith.constant 0 : index
    %c0_8 = arith.constant 0 : index
    %5 = vector.load %arg4[%c0_6, %c0_7, %c0_8] : memref<2x32x96xf32, #tpu.memory_space<vmem>>, vector<1x32x96xf32>
    %6 = vector.shape_cast %5 : vector<1x32x96xf32> to vector<32x96xf32>
    %c1_9 = arith.constant 1 : index
    %c0_10 = arith.constant 0 : index
    %c0_11 = arith.constant 0 : index
    %7 = vector.load %arg4[%c1_9, %c0_10, %c0_11] : memref<2x32x96xf32, #tpu.memory_space<vmem>>, vector<1x32x96xf32>
    %8 = vector.shape_cast %7 : vector<1x32x96xf32> to vector<32x96xf32>
    %c0_12 = arith.constant 0 : index
    %c0_13 = arith.constant 0 : index
    %c0_14 = arith.constant 0 : index
    %9 = vector.load %arg5[%c0_12, %c0_13, %c0_14] : memref<2x2x96xf32, #tpu.memory_space<vmem>>, vector<1x2x96xf32>
    %10 = vector.shape_cast %9 : vector<1x2x96xf32> to vector<2x96xf32>
    %c1_15 = arith.constant 1 : index
    %c0_16 = arith.constant 0 : index
    %c0_17 = arith.constant 0 : index
    %11 = vector.load %arg5[%c1_15, %c0_16, %c0_17] : memref<2x2x96xf32, #tpu.memory_space<vmem>>, vector<1x2x96xf32>
    %12 = vector.shape_cast %11 : vector<1x2x96xf32> to vector<2x96xf32>
    %cst = arith.constant 0.000000e+00 : f32
    %13 = vector.broadcast %cst : f32 to vector<8x32xf32>
    %cst_18 = arith.constant 0.000000e+00 : f32
    %14 = vector.broadcast %cst_18 : f32 to vector<8x32xf32>
    %c0_19 = arith.constant 0 : index
    %c0_20 = arith.constant 0 : index
    %c0_21 = arith.constant 0 : index
    %15 = vector.load %arg2[%c0_19, %c0_20, %c0_21] : memref<8x8x32xf32, #tpu.memory_space<vmem>>, vector<1x8x32xf32>
    %16 = vector.shape_cast %15 : vector<1x8x32xf32> to vector<8x32xf32>
    %c0_i32 = arith.constant 0 : i32
    %17 = vector.broadcast %c0_i32 : i32 to vector<8x1xi32>
    %18 = arith.cmpi sgt, %0, %17 : vector<8x1xi32>
    %cst_22 = arith.constant dense<0.000000e+00> : vector<8x96xf32>
    %19 = tpu.matmul %16, %2, %cst_22 {dimension_numbers = #tpu.dot_dimension_numbers<[1], [0], [0], [1], [0, 0, 1, 1], [], []>} : vector<8x32xf32>, vector<32x96xf32>, vector<8x96xf32> -> vector<8x96xf32>
    %20 = vector.extract_strided_slice %10 {offsets = [0, 0], sizes = [1, 96], strides = [1, 1]} : vector<2x96xf32> to vector<1x96xf32>
    %21 = vector.broadcast %20 : vector<1x96xf32> to vector<8x96xf32>
    %22 = arith.addf %19, %21 : vector<8x96xf32>
    %cst_23 = arith.constant dense<0.000000e+00> : vector<8x96xf32>
    %23 = tpu.matmul %13, %6, %cst_23 {dimension_numbers = #tpu.dot_dimension_numbers<[1], [0], [0], [1], [0, 0, 1, 1], [], []>} : vector<8x32xf32>, vector<32x96xf32>, vector<8x96xf32> -> vector<8x96xf32>
    %24 = vector.extract_strided_slice %10 {offsets = [1, 0], sizes = [1, 96], strides = [1, 1]} : vector<2x96xf32> to vector<1x96xf32>
    %25 = vector.broadcast %24 : vector<1x96xf32> to vector<8x96xf32>
    %26 = arith.addf %23, %25 : vector<8x96xf32>
    %27 = vector.extract_strided_slice %22 {offsets = [0, 0], sizes = [8, 32], strides = [1, 1]} : vector<8x96xf32> to vector<8x32xf32>
    %28 = vector.extract_strided_slice %26 {offsets = [0, 0], sizes = [8, 32], strides = [1, 1]} : vector<8x96xf32> to vector<8x32xf32>
    %29 = arith.addf %27, %28 : vector<8x32xf32>
    %cst_24 = arith.constant 0.000000e+00 : f32
    %30 = vector.broadcast %cst_24 : f32 to vector<8x32xf32>
    %31 = arith.subf %30, %29 : vector<8x32xf32>
    %32 = math.exp %31 : vector<8x32xf32>
    %cst_25 = arith.constant 1.000000e+00 : f32
    %33 = vector.broadcast %cst_25 : f32 to vector<8x32xf32>
    %34 = arith.addf %33, %32 : vector<8x32xf32>
    %cst_26 = arith.constant 1.000000e+00 : f32
    %35 = vector.broadcast %cst_26 : f32 to vector<8x32xf32>
    %36 = arith.divf %35, %34 : vector<8x32xf32>
    %37 = vector.extract_strided_slice %22 {offsets = [0, 32], sizes = [8, 32], strides = [1, 1]} : vector<8x96xf32> to vector<8x32xf32>
    %38 = vector.extract_strided_slice %26 {offsets = [0, 32], sizes = [8, 32], strides = [1, 1]} : vector<8x96xf32> to vector<8x32xf32>
    %39 = arith.addf %37, %38 : vector<8x32xf32>
    %cst_27 = arith.constant 0.000000e+00 : f32
    %40 = vector.broadcast %cst_27 : f32 to vector<8x32xf32>
    %41 = arith.subf %40, %39 : vector<8x32xf32>
    %42 = math.exp %41 : vector<8x32xf32>
    %cst_28 = arith.constant 1.000000e+00 : f32
    %43 = vector.broadcast %cst_28 : f32 to vector<8x32xf32>
    %44 = arith.addf %43, %42 : vector<8x32xf32>
    %cst_29 = arith.constant 1.000000e+00 : f32
    %45 = vector.broadcast %cst_29 : f32 to vector<8x32xf32>
    %46 = arith.divf %45, %44 : vector<8x32xf32>
    %47 = vector.extract_strided_slice %22 {offsets = [0, 64], sizes = [8, 32], strides = [1, 1]} : vector<8x96xf32> to vector<8x32xf32>
    %48 = vector.extract_strided_slice %26 {offsets = [0, 64], sizes = [8, 32], strides = [1, 1]} : vector<8x96xf32> to vector<8x32xf32>
    %49 = arith.mulf %36, %48 : vector<8x32xf32>
    %50 = arith.addf %47, %49 : vector<8x32xf32>
    %51 = math.tanh %50 : vector<8x32xf32>
    %cst_30 = arith.constant 1.000000e+00 : f32
    %52 = vector.broadcast %cst_30 : f32 to vector<8x32xf32>
    %53 = arith.subf %52, %46 : vector<8x32xf32>
    %54 = arith.mulf %53, %51 : vector<8x32xf32>
    %55 = arith.mulf %46, %13 : vector<8x32xf32>
    %56 = arith.addf %54, %55 : vector<8x32xf32>
    %57 = vector.shape_cast %18 : vector<8x1xi1> to vector<8x1xi1>
    %58 = vector.broadcast %57 : vector<8x1xi1> to vector<8x32xi1>
    %59 = arith.select %58, %56, %13 : vector<8x32xi1>, vector<8x32xf32>
    %cst_31 = arith.constant dense<0.000000e+00> : vector<8x96xf32>
    %60 = tpu.matmul %59, %4, %cst_31 {dimension_numbers = #tpu.dot_dimension_numbers<[1], [0], [0], [1], [0, 0, 1, 1], [], []>} : vector<8x32xf32>, vector<32x96xf32>, vector<8x96xf32> -> vector<8x96xf32>
    %61 = vector.extract_strided_slice %12 {offsets = [0, 0], sizes = [1, 96], strides = [1, 1]} : vector<2x96xf32> to vector<1x96xf32>
    %62 = vector.broadcast %61 : vector<1x96xf32> to vector<8x96xf32>
    %63 = arith.addf %60, %62 : vector<8x96xf32>
    %cst_32 = arith.constant dense<0.000000e+00> : vector<8x96xf32>
    %64 = tpu.matmul %14, %8, %cst_32 {dimension_numbers = #tpu.dot_dimension_numbers<[1], [0], [0], [1], [0, 0, 1, 1], [], []>} : vector<8x32xf32>, vector<32x96xf32>, vector<8x96xf32> -> vector<8x96xf32>
    %65 = vector.extract_strided_slice %12 {offsets = [1, 0], sizes = [1, 96], strides = [1, 1]} : vector<2x96xf32> to vector<1x96xf32>
    %66 = vector.broadcast %65 : vector<1x96xf32> to vector<8x96xf32>
    %67 = arith.addf %64, %66 : vector<8x96xf32>
    %68 = vector.extract_strided_slice %63 {offsets = [0, 0], sizes = [8, 32], strides = [1, 1]} : vector<8x96xf32> to vector<8x32xf32>
    %69 = vector.extract_strided_slice %67 {offsets = [0, 0], sizes = [8, 32], strides = [1, 1]} : vector<8x96xf32> to vector<8x32xf32>
    %70 = arith.addf %68, %69 : vector<8x32xf32>
    %cst_33 = arith.constant 0.000000e+00 : f32
    %71 = vector.broadcast %cst_33 : f32 to vector<8x32xf32>
    %72 = arith.subf %71, %70 : vector<8x32xf32>
    %73 = math.exp %72 : vector<8x32xf32>
    %cst_34 = arith.constant 1.000000e+00 : f32
    %74 = vector.broadcast %cst_34 : f32 to vector<8x32xf32>
    %75 = arith.addf %74, %73 : vector<8x32xf32>
    %cst_35 = arith.constant 1.000000e+00 : f32
    %76 = vector.broadcast %cst_35 : f32 to vector<8x32xf32>
    %77 = arith.divf %76, %75 : vector<8x32xf32>
    %78 = vector.extract_strided_slice %63 {offsets = [0, 32], sizes = [8, 32], strides = [1, 1]} : vector<8x96xf32> to vector<8x32xf32>
    %79 = vector.extract_strided_slice %67 {offsets = [0, 32], sizes = [8, 32], strides = [1, 1]} : vector<8x96xf32> to vector<8x32xf32>
    %80 = arith.addf %78, %79 : vector<8x32xf32>
    %cst_36 = arith.constant 0.000000e+00 : f32
    %81 = vector.broadcast %cst_36 : f32 to vector<8x32xf32>
    %82 = arith.subf %81, %80 : vector<8x32xf32>
    %83 = math.exp %82 : vector<8x32xf32>
    %cst_37 = arith.constant 1.000000e+00 : f32
    %84 = vector.broadcast %cst_37 : f32 to vector<8x32xf32>
    %85 = arith.addf %84, %83 : vector<8x32xf32>
    %cst_38 = arith.constant 1.000000e+00 : f32
    %86 = vector.broadcast %cst_38 : f32 to vector<8x32xf32>
    %87 = arith.divf %86, %85 : vector<8x32xf32>
    %88 = vector.extract_strided_slice %63 {offsets = [0, 64], sizes = [8, 32], strides = [1, 1]} : vector<8x96xf32> to vector<8x32xf32>
    %89 = vector.extract_strided_slice %67 {offsets = [0, 64], sizes = [8, 32], strides = [1, 1]} : vector<8x96xf32> to vector<8x32xf32>
    %90 = arith.mulf %77, %89 : vector<8x32xf32>
    %91 = arith.addf %88, %90 : vector<8x32xf32>
    %92 = math.tanh %91 : vector<8x32xf32>
    %cst_39 = arith.constant 1.000000e+00 : f32
    %93 = vector.broadcast %cst_39 : f32 to vector<8x32xf32>
    %94 = arith.subf %93, %87 : vector<8x32xf32>
    %95 = arith.mulf %94, %92 : vector<8x32xf32>
    %96 = arith.mulf %87, %14 : vector<8x32xf32>
    %97 = arith.addf %95, %96 : vector<8x32xf32>
    %98 = vector.shape_cast %18 : vector<8x1xi1> to vector<8x1xi1>
    %99 = vector.broadcast %98 : vector<8x1xi1> to vector<8x32xi1>
    %100 = arith.select %99, %97, %14 : vector<8x32xi1>, vector<8x32xf32>
    %c1_40 = arith.constant 1 : index
    %c0_41 = arith.constant 0 : index
    %c0_42 = arith.constant 0 : index
    %101 = vector.load %arg2[%c1_40, %c0_41, %c0_42] : memref<8x8x32xf32, #tpu.memory_space<vmem>>, vector<1x8x32xf32>
    %102 = vector.shape_cast %101 : vector<1x8x32xf32> to vector<8x32xf32>
    %c1_i32 = arith.constant 1 : i32
    %103 = vector.broadcast %c1_i32 : i32 to vector<8x1xi32>
    %104 = arith.cmpi sgt, %0, %103 : vector<8x1xi32>
    %cst_43 = arith.constant dense<0.000000e+00> : vector<8x96xf32>
    %105 = tpu.matmul %102, %2, %cst_43 {dimension_numbers = #tpu.dot_dimension_numbers<[1], [0], [0], [1], [0, 0, 1, 1], [], []>} : vector<8x32xf32>, vector<32x96xf32>, vector<8x96xf32> -> vector<8x96xf32>
    %106 = vector.extract_strided_slice %10 {offsets = [0, 0], sizes = [1, 96], strides = [1, 1]} : vector<2x96xf32> to vector<1x96xf32>
    %107 = vector.broadcast %106 : vector<1x96xf32> to vector<8x96xf32>
    %108 = arith.addf %105, %107 : vector<8x96xf32>
    %cst_44 = arith.constant dense<0.000000e+00> : vector<8x96xf32>
    %109 = tpu.matmul %59, %6, %cst_44 {dimension_numbers = #tpu.dot_dimension_numbers<[1], [0], [0], [1], [0, 0, 1, 1], [], []>} : vector<8x32xf32>, vector<32x96xf32>, vector<8x96xf32> -> vector<8x96xf32>
    %110 = vector.extract_strided_slice %10 {offsets = [1, 0], sizes = [1, 96], strides = [1, 1]} : vector<2x96xf32> to vector<1x96xf32>
    %111 = vector.broadcast %110 : vector<1x96xf32> to vector<8x96xf32>
    %112 = arith.addf %109, %111 : vector<8x96xf32>
    %113 = vector.extract_strided_slice %108 {offsets = [0, 0], sizes = [8, 32], strides = [1, 1]} : vector<8x96xf32> to vector<8x32xf32>
    %114 = vector.extract_strided_slice %112 {offsets = [0, 0], sizes = [8, 32], strides = [1, 1]} : vector<8x96xf32> to vector<8x32xf32>
    %115 = arith.addf %113, %114 : vector<8x32xf32>
    %cst_45 = arith.constant 0.000000e+00 : f32
    %116 = vector.broadcast %cst_45 : f32 to vector<8x32xf32>
    %117 = arith.subf %116, %115 : vector<8x32xf32>
    %118 = math.exp %117 : vector<8x32xf32>
    %cst_46 = arith.constant 1.000000e+00 : f32
    %119 = vector.broadcast %cst_46 : f32 to vector<8x32xf32>
    %120 = arith.addf %119, %118 : vector<8x32xf32>
    %cst_47 = arith.constant 1.000000e+00 : f32
    %121 = vector.broadcast %cst_47 : f32 to vector<8x32xf32>
    %122 = arith.divf %121, %120 : vector<8x32xf32>
    %123 = vector.extract_strided_slice %108 {offsets = [0, 32], sizes = [8, 32], strides = [1, 1]} : vector<8x96xf32> to vector<8x32xf32>
    %124 = vector.extract_strided_slice %112 {offsets = [0, 32], sizes = [8, 32], strides = [1, 1]} : vector<8x96xf32> to vector<8x32xf32>
    %125 = arith.addf %123, %124 : vector<8x32xf32>
    %cst_48 = arith.constant 0.000000e+00 : f32
    %126 = vector.broadcast %cst_48 : f32 to vector<8x32xf32>
    %127 = arith.subf %126, %125 : vector<8x32xf32>
    %128 = math.exp %127 : vector<8x32xf32>
    %cst_49 = arith.constant 1.000000e+00 : f32
    %129 = vector.broadcast %cst_49 : f32 to vector<8x32xf32>
    %130 = arith.addf %129, %128 : vector<8x32xf32>
    %cst_50 = arith.constant 1.000000e+00 : f32
    %131 = vector.broadcast %cst_50 : f32 to vector<8x32xf32>
    %132 = arith.divf %131, %130 : vector<8x32xf32>
    %133 = vector.extract_strided_slice %108 {offsets = [0, 64], sizes = [8, 32], strides = [1, 1]} : vector<8x96xf32> to vector<8x32xf32>
    %134 = vector.extract_strided_slice %112 {offsets = [0, 64], sizes = [8, 32], strides = [1, 1]} : vector<8x96xf32> to vector<8x32xf32>
    %135 = arith.mulf %122, %134 : vector<8x32xf32>
    %136 = arith.addf %133, %135 : vector<8x32xf32>
    %137 = math.tanh %136 : vector<8x32xf32>
    %cst_51 = arith.constant 1.000000e+00 : f32
    %138 = vector.broadcast %cst_51 : f32 to vector<8x32xf32>
    %139 = arith.subf %138, %132 : vector<8x32xf32>
    %140 = arith.mulf %139, %137 : vector<8x32xf32>
    %141 = arith.mulf %132, %59 : vector<8x32xf32>
    %142 = arith.addf %140, %141 : vector<8x32xf32>
    %143 = vector.shape_cast %104 : vector<8x1xi1> to vector<8x1xi1>
    %144 = vector.broadcast %143 : vector<8x1xi1> to vector<8x32xi1>
    %145 = arith.select %144, %142, %59 : vector<8x32xi1>, vector<8x32xf32>
    %cst_52 = arith.constant dense<0.000000e+00> : vector<8x96xf32>
    %146 = tpu.matmul %145, %4, %cst_52 {dimension_numbers = #tpu.dot_dimension_numbers<[1], [0], [0], [1], [0, 0, 1, 1], [], []>} : vector<8x32xf32>, vector<32x96xf32>, vector<8x96xf32> -> vector<8x96xf32>
    %147 = vector.extract_strided_slice %12 {offsets = [0, 0], sizes = [1, 96], strides = [1, 1]} : vector<2x96xf32> to vector<1x96xf32>
    %148 = vector.broadcast %147 : vector<1x96xf32> to vector<8x96xf32>
    %149 = arith.addf %146, %148 : vector<8x96xf32>
    %cst_53 = arith.constant dense<0.000000e+00> : vector<8x96xf32>
    %150 = tpu.matmul %100, %8, %cst_53 {dimension_numbers = #tpu.dot_dimension_numbers<[1], [0], [0], [1], [0, 0, 1, 1], [], []>} : vector<8x32xf32>, vector<32x96xf32>, vector<8x96xf32> -> vector<8x96xf32>
    %151 = vector.extract_strided_slice %12 {offsets = [1, 0], sizes = [1, 96], strides = [1, 1]} : vector<2x96xf32> to vector<1x96xf32>
    %152 = vector.broadcast %151 : vector<1x96xf32> to vector<8x96xf32>
    %153 = arith.addf %150, %152 : vector<8x96xf32>
    %154 = vector.extract_strided_slice %149 {offsets = [0, 0], sizes = [8, 32], strides = [1, 1]} : vector<8x96xf32> to vector<8x32xf32>
    %155 = vector.extract_strided_slice %153 {offsets = [0, 0], sizes = [8, 32], strides = [1, 1]} : vector<8x96xf32> to vector<8x32xf32>
    %156 = arith.addf %154, %155 : vector<8x32xf32>
    %cst_54 = arith.constant 0.000000e+00 : f32
    %157 = vector.broadcast %cst_54 : f32 to vector<8x32xf32>
    %158 = arith.subf %157, %156 : vector<8x32xf32>
    %159 = math.exp %158 : vector<8x32xf32>
    %cst_55 = arith.constant 1.000000e+00 : f32
    %160 = vector.broadcast %cst_55 : f32 to vector<8x32xf32>
    %161 = arith.addf %160, %159 : vector<8x32xf32>
    %cst_56 = arith.constant 1.000000e+00 : f32
    %162 = vector.broadcast %cst_56 : f32 to vector<8x32xf32>
    %163 = arith.divf %162, %161 : vector<8x32xf32>
    %164 = vector.extract_strided_slice %149 {offsets = [0, 32], sizes = [8, 32], strides = [1, 1]} : vector<8x96xf32> to vector<8x32xf32>
    %165 = vector.extract_strided_slice %153 {offsets = [0, 32], sizes = [8, 32], strides = [1, 1]} : vector<8x96xf32> to vector<8x32xf32>
    %166 = arith.addf %164, %165 : vector<8x32xf32>
    %cst_57 = arith.constant 0.000000e+00 : f32
    %167 = vector.broadcast %cst_57 : f32 to vector<8x32xf32>
    %168 = arith.subf %167, %166 : vector<8x32xf32>
    %169 = math.exp %168 : vector<8x32xf32>
    %cst_58 = arith.constant 1.000000e+00 : f32
    %170 = vector.broadcast %cst_58 : f32 to vector<8x32xf32>
    %171 = arith.addf %170, %169 : vector<8x32xf32>
    %cst_59 = arith.constant 1.000000e+00 : f32
    %172 = vector.broadcast %cst_59 : f32 to vector<8x32xf32>
    %173 = arith.divf %172, %171 : vector<8x32xf32>
    %174 = vector.extract_strided_slice %149 {offsets = [0, 64], sizes = [8, 32], strides = [1, 1]} : vector<8x96xf32> to vector<8x32xf32>
    %175 = vector.extract_strided_slice %153 {offsets = [0, 64], sizes = [8, 32], strides = [1, 1]} : vector<8x96xf32> to vector<8x32xf32>
    %176 = arith.mulf %163, %175 : vector<8x32xf32>
    %177 = arith.addf %174, %176 : vector<8x32xf32>
    %178 = math.tanh %177 : vector<8x32xf32>
    %cst_60 = arith.constant 1.000000e+00 : f32
    %179 = vector.broadcast %cst_60 : f32 to vector<8x32xf32>
    %180 = arith.subf %179, %173 : vector<8x32xf32>
    %181 = arith.mulf %180, %178 : vector<8x32xf32>
    %182 = arith.mulf %173, %100 : vector<8x32xf32>
    %183 = arith.addf %181, %182 : vector<8x32xf32>
    %184 = vector.shape_cast %104 : vector<8x1xi1> to vector<8x1xi1>
    %185 = vector.broadcast %184 : vector<8x1xi1> to vector<8x32xi1>
    %186 = arith.select %185, %183, %100 : vector<8x32xi1>, vector<8x32xf32>
    %c2 = arith.constant 2 : index
    %c0_61 = arith.constant 0 : index
    %c0_62 = arith.constant 0 : index
    %187 = vector.load %arg2[%c2, %c0_61, %c0_62] : memref<8x8x32xf32, #tpu.memory_space<vmem>>, vector<1x8x32xf32>
    %188 = vector.shape_cast %187 : vector<1x8x32xf32> to vector<8x32xf32>
    %c2_i32 = arith.constant 2 : i32
    %189 = vector.broadcast %c2_i32 : i32 to vector<8x1xi32>
    %190 = arith.cmpi sgt, %0, %189 : vector<8x1xi32>
    %cst_63 = arith.constant dense<0.000000e+00> : vector<8x96xf32>
    %191 = tpu.matmul %188, %2, %cst_63 {dimension_numbers = #tpu.dot_dimension_numbers<[1], [0], [0], [1], [0, 0, 1, 1], [], []>} : vector<8x32xf32>, vector<32x96xf32>, vector<8x96xf32> -> vector<8x96xf32>
    %192 = vector.extract_strided_slice %10 {offsets = [0, 0], sizes = [1, 96], strides = [1, 1]} : vector<2x96xf32> to vector<1x96xf32>
    %193 = vector.broadcast %192 : vector<1x96xf32> to vector<8x96xf32>
    %194 = arith.addf %191, %193 : vector<8x96xf32>
    %cst_64 = arith.constant dense<0.000000e+00> : vector<8x96xf32>
    %195 = tpu.matmul %145, %6, %cst_64 {dimension_numbers = #tpu.dot_dimension_numbers<[1], [0], [0], [1], [0, 0, 1, 1], [], []>} : vector<8x32xf32>, vector<32x96xf32>, vector<8x96xf32> -> vector<8x96xf32>
    %196 = vector.extract_strided_slice %10 {offsets = [1, 0], sizes = [1, 96], strides = [1, 1]} : vector<2x96xf32> to vector<1x96xf32>
    %197 = vector.broadcast %196 : vector<1x96xf32> to vector<8x96xf32>
    %198 = arith.addf %195, %197 : vector<8x96xf32>
    %199 = vector.extract_strided_slice %194 {offsets = [0, 0], sizes = [8, 32], strides = [1, 1]} : vector<8x96xf32> to vector<8x32xf32>
    %200 = vector.extract_strided_slice %198 {offsets = [0, 0], sizes = [8, 32], strides = [1, 1]} : vector<8x96xf32> to vector<8x32xf32>
    %201 = arith.addf %199, %200 : vector<8x32xf32>
    %cst_65 = arith.constant 0.000000e+00 : f32
    %202 = vector.broadcast %cst_65 : f32 to vector<8x32xf32>
    %203 = arith.subf %202, %201 : vector<8x32xf32>
    %204 = math.exp %203 : vector<8x32xf32>
    %cst_66 = arith.constant 1.000000e+00 : f32
    %205 = vector.broadcast %cst_66 : f32 to vector<8x32xf32>
    %206 = arith.addf %205, %204 : vector<8x32xf32>
    %cst_67 = arith.constant 1.000000e+00 : f32
    %207 = vector.broadcast %cst_67 : f32 to vector<8x32xf32>
    %208 = arith.divf %207, %206 : vector<8x32xf32>
    %209 = vector.extract_strided_slice %194 {offsets = [0, 32], sizes = [8, 32], strides = [1, 1]} : vector<8x96xf32> to vector<8x32xf32>
    %210 = vector.extract_strided_slice %198 {offsets = [0, 32], sizes = [8, 32], strides = [1, 1]} : vector<8x96xf32> to vector<8x32xf32>
    %211 = arith.addf %209, %210 : vector<8x32xf32>
    %cst_68 = arith.constant 0.000000e+00 : f32
    %212 = vector.broadcast %cst_68 : f32 to vector<8x32xf32>
    %213 = arith.subf %212, %211 : vector<8x32xf32>
    %214 = math.exp %213 : vector<8x32xf32>
    %cst_69 = arith.constant 1.000000e+00 : f32
    %215 = vector.broadcast %cst_69 : f32 to vector<8x32xf32>
    %216 = arith.addf %215, %214 : vector<8x32xf32>
    %cst_70 = arith.constant 1.000000e+00 : f32
    %217 = vector.broadcast %cst_70 : f32 to vector<8x32xf32>
    %218 = arith.divf %217, %216 : vector<8x32xf32>
    %219 = vector.extract_strided_slice %194 {offsets = [0, 64], sizes = [8, 32], strides = [1, 1]} : vector<8x96xf32> to vector<8x32xf32>
    %220 = vector.extract_strided_slice %198 {offsets = [0, 64], sizes = [8, 32], strides = [1, 1]} : vector<8x96xf32> to vector<8x32xf32>
    %221 = arith.mulf %208, %220 : vector<8x32xf32>
    %222 = arith.addf %219, %221 : vector<8x32xf32>
    %223 = math.tanh %222 : vector<8x32xf32>
    %cst_71 = arith.constant 1.000000e+00 : f32
    %224 = vector.broadcast %cst_71 : f32 to vector<8x32xf32>
    %225 = arith.subf %224, %218 : vector<8x32xf32>
    %226 = arith.mulf %225, %223 : vector<8x32xf32>
    %227 = arith.mulf %218, %145 : vector<8x32xf32>
    %228 = arith.addf %226, %227 : vector<8x32xf32>
    %229 = vector.shape_cast %190 : vector<8x1xi1> to vector<8x1xi1>
    %230 = vector.broadcast %229 : vector<8x1xi1> to vector<8x32xi1>
    %231 = arith.select %230, %228, %145 : vector<8x32xi1>, vector<8x32xf32>
    %cst_72 = arith.constant dense<0.000000e+00> : vector<8x96xf32>
    %232 = tpu.matmul %231, %4, %cst_72 {dimension_numbers = #tpu.dot_dimension_numbers<[1], [0], [0], [1], [0, 0, 1, 1], [], []>} : vector<8x32xf32>, vector<32x96xf32>, vector<8x96xf32> -> vector<8x96xf32>
    %233 = vector.extract_strided_slice %12 {offsets = [0, 0], sizes = [1, 96], strides = [1, 1]} : vector<2x96xf32> to vector<1x96xf32>
    %234 = vector.broadcast %233 : vector<1x96xf32> to vector<8x96xf32>
    %235 = arith.addf %232, %234 : vector<8x96xf32>
    %cst_73 = arith.constant dense<0.000000e+00> : vector<8x96xf32>
    %236 = tpu.matmul %186, %8, %cst_73 {dimension_numbers = #tpu.dot_dimension_numbers<[1], [0], [0], [1], [0, 0, 1, 1], [], []>} : vector<8x32xf32>, vector<32x96xf32>, vector<8x96xf32> -> vector<8x96xf32>
    %237 = vector.extract_strided_slice %12 {offsets = [1, 0], sizes = [1, 96], strides = [1, 1]} : vector<2x96xf32> to vector<1x96xf32>
    %238 = vector.broadcast %237 : vector<1x96xf32> to vector<8x96xf32>
    %239 = arith.addf %236, %238 : vector<8x96xf32>
    %240 = vector.extract_strided_slice %235 {offsets = [0, 0], sizes = [8, 32], strides = [1, 1]} : vector<8x96xf32> to vector<8x32xf32>
    %241 = vector.extract_strided_slice %239 {offsets = [0, 0], sizes = [8, 32], strides = [1, 1]} : vector<8x96xf32> to vector<8x32xf32>
    %242 = arith.addf %240, %241 : vector<8x32xf32>
    %cst_74 = arith.constant 0.000000e+00 : f32
    %243 = vector.broadcast %cst_74 : f32 to vector<8x32xf32>
    %244 = arith.subf %243, %242 : vector<8x32xf32>
    %245 = math.exp %244 : vector<8x32xf32>
    %cst_75 = arith.constant 1.000000e+00 : f32
    %246 = vector.broadcast %cst_75 : f32 to vector<8x32xf32>
    %247 = arith.addf %246, %245 : vector<8x32xf32>
    %cst_76 = arith.constant 1.000000e+00 : f32
    %248 = vector.broadcast %cst_76 : f32 to vector<8x32xf32>
    %249 = arith.divf %248, %247 : vector<8x32xf32>
    %250 = vector.extract_strided_slice %235 {offsets = [0, 32], sizes = [8, 32], strides = [1, 1]} : vector<8x96xf32> to vector<8x32xf32>
    %251 = vector.extract_strided_slice %239 {offsets = [0, 32], sizes = [8, 32], strides = [1, 1]} : vector<8x96xf32> to vector<8x32xf32>
    %252 = arith.addf %250, %251 : vector<8x32xf32>
    %cst_77 = arith.constant 0.000000e+00 : f32
    %253 = vector.broadcast %cst_77 : f32 to vector<8x32xf32>
    %254 = arith.subf %253, %252 : vector<8x32xf32>
    %255 = math.exp %254 : vector<8x32xf32>
    %cst_78 = arith.constant 1.000000e+00 : f32
    %256 = vector.broadcast %cst_78 : f32 to vector<8x32xf32>
    %257 = arith.addf %256, %255 : vector<8x32xf32>
    %cst_79 = arith.constant 1.000000e+00 : f32
    %258 = vector.broadcast %cst_79 : f32 to vector<8x32xf32>
    %259 = arith.divf %258, %257 : vector<8x32xf32>
    %260 = vector.extract_strided_slice %235 {offsets = [0, 64], sizes = [8, 32], strides = [1, 1]} : vector<8x96xf32> to vector<8x32xf32>
    %261 = vector.extract_strided_slice %239 {offsets = [0, 64], sizes = [8, 32], strides = [1, 1]} : vector<8x96xf32> to vector<8x32xf32>
    %262 = arith.mulf %249, %261 : vector<8x32xf32>
    %263 = arith.addf %260, %262 : vector<8x32xf32>
    %264 = math.tanh %263 : vector<8x32xf32>
    %cst_80 = arith.constant 1.000000e+00 : f32
    %265 = vector.broadcast %cst_80 : f32 to vector<8x32xf32>
    %266 = arith.subf %265, %259 : vector<8x32xf32>
    %267 = arith.mulf %266, %264 : vector<8x32xf32>
    %268 = arith.mulf %259, %186 : vector<8x32xf32>
    %269 = arith.addf %267, %268 : vector<8x32xf32>
    %270 = vector.shape_cast %190 : vector<8x1xi1> to vector<8x1xi1>
    %271 = vector.broadcast %270 : vector<8x1xi1> to vector<8x32xi1>
    %272 = arith.select %271, %269, %186 : vector<8x32xi1>, vector<8x32xf32>
    %c3 = arith.constant 3 : index
    %c0_81 = arith.constant 0 : index
    %c0_82 = arith.constant 0 : index
    %273 = vector.load %arg2[%c3, %c0_81, %c0_82] : memref<8x8x32xf32, #tpu.memory_space<vmem>>, vector<1x8x32xf32>
    %274 = vector.shape_cast %273 : vector<1x8x32xf32> to vector<8x32xf32>
    %c3_i32 = arith.constant 3 : i32
    %275 = vector.broadcast %c3_i32 : i32 to vector<8x1xi32>
    %276 = arith.cmpi sgt, %0, %275 : vector<8x1xi32>
    %cst_83 = arith.constant dense<0.000000e+00> : vector<8x96xf32>
    %277 = tpu.matmul %274, %2, %cst_83 {dimension_numbers = #tpu.dot_dimension_numbers<[1], [0], [0], [1], [0, 0, 1, 1], [], []>} : vector<8x32xf32>, vector<32x96xf32>, vector<8x96xf32> -> vector<8x96xf32>
    %278 = vector.extract_strided_slice %10 {offsets = [0, 0], sizes = [1, 96], strides = [1, 1]} : vector<2x96xf32> to vector<1x96xf32>
    %279 = vector.broadcast %278 : vector<1x96xf32> to vector<8x96xf32>
    %280 = arith.addf %277, %279 : vector<8x96xf32>
    %cst_84 = arith.constant dense<0.000000e+00> : vector<8x96xf32>
    %281 = tpu.matmul %231, %6, %cst_84 {dimension_numbers = #tpu.dot_dimension_numbers<[1], [0], [0], [1], [0, 0, 1, 1], [], []>} : vector<8x32xf32>, vector<32x96xf32>, vector<8x96xf32> -> vector<8x96xf32>
    %282 = vector.extract_strided_slice %10 {offsets = [1, 0], sizes = [1, 96], strides = [1, 1]} : vector<2x96xf32> to vector<1x96xf32>
    %283 = vector.broadcast %282 : vector<1x96xf32> to vector<8x96xf32>
    %284 = arith.addf %281, %283 : vector<8x96xf32>
    %285 = vector.extract_strided_slice %280 {offsets = [0, 0], sizes = [8, 32], strides = [1, 1]} : vector<8x96xf32> to vector<8x32xf32>
    %286 = vector.extract_strided_slice %284 {offsets = [0, 0], sizes = [8, 32], strides = [1, 1]} : vector<8x96xf32> to vector<8x32xf32>
    %287 = arith.addf %285, %286 : vector<8x32xf32>
    %cst_85 = arith.constant 0.000000e+00 : f32
    %288 = vector.broadcast %cst_85 : f32 to vector<8x32xf32>
    %289 = arith.subf %288, %287 : vector<8x32xf32>
    %290 = math.exp %289 : vector<8x32xf32>
    %cst_86 = arith.constant 1.000000e+00 : f32
    %291 = vector.broadcast %cst_86 : f32 to vector<8x32xf32>
    %292 = arith.addf %291, %290 : vector<8x32xf32>
    %cst_87 = arith.constant 1.000000e+00 : f32
    %293 = vector.broadcast %cst_87 : f32 to vector<8x32xf32>
    %294 = arith.divf %293, %292 : vector<8x32xf32>
    %295 = vector.extract_strided_slice %280 {offsets = [0, 32], sizes = [8, 32], strides = [1, 1]} : vector<8x96xf32> to vector<8x32xf32>
    %296 = vector.extract_strided_slice %284 {offsets = [0, 32], sizes = [8, 32], strides = [1, 1]} : vector<8x96xf32> to vector<8x32xf32>
    %297 = arith.addf %295, %296 : vector<8x32xf32>
    %cst_88 = arith.constant 0.000000e+00 : f32
    %298 = vector.broadcast %cst_88 : f32 to vector<8x32xf32>
    %299 = arith.subf %298, %297 : vector<8x32xf32>
    %300 = math.exp %299 : vector<8x32xf32>
    %cst_89 = arith.constant 1.000000e+00 : f32
    %301 = vector.broadcast %cst_89 : f32 to vector<8x32xf32>
    %302 = arith.addf %301, %300 : vector<8x32xf32>
    %cst_90 = arith.constant 1.000000e+00 : f32
    %303 = vector.broadcast %cst_90 : f32 to vector<8x32xf32>
    %304 = arith.divf %303, %302 : vector<8x32xf32>
    %305 = vector.extract_strided_slice %280 {offsets = [0, 64], sizes = [8, 32], strides = [1, 1]} : vector<8x96xf32> to vector<8x32xf32>
    %306 = vector.extract_strided_slice %284 {offsets = [0, 64], sizes = [8, 32], strides = [1, 1]} : vector<8x96xf32> to vector<8x32xf32>
    %307 = arith.mulf %294, %306 : vector<8x32xf32>
    %308 = arith.addf %305, %307 : vector<8x32xf32>
    %309 = math.tanh %308 : vector<8x32xf32>
    %cst_91 = arith.constant 1.000000e+00 : f32
    %310 = vector.broadcast %cst_91 : f32 to vector<8x32xf32>
    %311 = arith.subf %310, %304 : vector<8x32xf32>
    %312 = arith.mulf %311, %309 : vector<8x32xf32>
    %313 = arith.mulf %304, %231 : vector<8x32xf32>
    %314 = arith.addf %312, %313 : vector<8x32xf32>
    %315 = vector.shape_cast %276 : vector<8x1xi1> to vector<8x1xi1>
    %316 = vector.broadcast %315 : vector<8x1xi1> to vector<8x32xi1>
    %317 = arith.select %316, %314, %231 : vector<8x32xi1>, vector<8x32xf32>
    %cst_92 = arith.constant dense<0.000000e+00> : vector<8x96xf32>
    %318 = tpu.matmul %317, %4, %cst_92 {dimension_numbers = #tpu.dot_dimension_numbers<[1], [0], [0], [1], [0, 0, 1, 1], [], []>} : vector<8x32xf32>, vector<32x96xf32>, vector<8x96xf32> -> vector<8x96xf32>
    %319 = vector.extract_strided_slice %12 {offsets = [0, 0], sizes = [1, 96], strides = [1, 1]} : vector<2x96xf32> to vector<1x96xf32>
    %320 = vector.broadcast %319 : vector<1x96xf32> to vector<8x96xf32>
    %321 = arith.addf %318, %320 : vector<8x96xf32>
    %cst_93 = arith.constant dense<0.000000e+00> : vector<8x96xf32>
    %322 = tpu.matmul %272, %8, %cst_93 {dimension_numbers = #tpu.dot_dimension_numbers<[1], [0], [0], [1], [0, 0, 1, 1], [], []>} : vector<8x32xf32>, vector<32x96xf32>, vector<8x96xf32> -> vector<8x96xf32>
    %323 = vector.extract_strided_slice %12 {offsets = [1, 0], sizes = [1, 96], strides = [1, 1]} : vector<2x96xf32> to vector<1x96xf32>
    %324 = vector.broadcast %323 : vector<1x96xf32> to vector<8x96xf32>
    %325 = arith.addf %322, %324 : vector<8x96xf32>
    %326 = vector.extract_strided_slice %321 {offsets = [0, 0], sizes = [8, 32], strides = [1, 1]} : vector<8x96xf32> to vector<8x32xf32>
    %327 = vector.extract_strided_slice %325 {offsets = [0, 0], sizes = [8, 32], strides = [1, 1]} : vector<8x96xf32> to vector<8x32xf32>
    %328 = arith.addf %326, %327 : vector<8x32xf32>
    %cst_94 = arith.constant 0.000000e+00 : f32
    %329 = vector.broadcast %cst_94 : f32 to vector<8x32xf32>
    %330 = arith.subf %329, %328 : vector<8x32xf32>
    %331 = math.exp %330 : vector<8x32xf32>
    %cst_95 = arith.constant 1.000000e+00 : f32
    %332 = vector.broadcast %cst_95 : f32 to vector<8x32xf32>
    %333 = arith.addf %332, %331 : vector<8x32xf32>
    %cst_96 = arith.constant 1.000000e+00 : f32
    %334 = vector.broadcast %cst_96 : f32 to vector<8x32xf32>
    %335 = arith.divf %334, %333 : vector<8x32xf32>
    %336 = vector.extract_strided_slice %321 {offsets = [0, 32], sizes = [8, 32], strides = [1, 1]} : vector<8x96xf32> to vector<8x32xf32>
    %337 = vector.extract_strided_slice %325 {offsets = [0, 32], sizes = [8, 32], strides = [1, 1]} : vector<8x96xf32> to vector<8x32xf32>
    %338 = arith.addf %336, %337 : vector<8x32xf32>
    %cst_97 = arith.constant 0.000000e+00 : f32
    %339 = vector.broadcast %cst_97 : f32 to vector<8x32xf32>
    %340 = arith.subf %339, %338 : vector<8x32xf32>
    %341 = math.exp %340 : vector<8x32xf32>
    %cst_98 = arith.constant 1.000000e+00 : f32
    %342 = vector.broadcast %cst_98 : f32 to vector<8x32xf32>
    %343 = arith.addf %342, %341 : vector<8x32xf32>
    %cst_99 = arith.constant 1.000000e+00 : f32
    %344 = vector.broadcast %cst_99 : f32 to vector<8x32xf32>
    %345 = arith.divf %344, %343 : vector<8x32xf32>
    %346 = vector.extract_strided_slice %321 {offsets = [0, 64], sizes = [8, 32], strides = [1, 1]} : vector<8x96xf32> to vector<8x32xf32>
    %347 = vector.extract_strided_slice %325 {offsets = [0, 64], sizes = [8, 32], strides = [1, 1]} : vector<8x96xf32> to vector<8x32xf32>
    %348 = arith.mulf %335, %347 : vector<8x32xf32>
    %349 = arith.addf %346, %348 : vector<8x32xf32>
    %350 = math.tanh %349 : vector<8x32xf32>
    %cst_100 = arith.constant 1.000000e+00 : f32
    %351 = vector.broadcast %cst_100 : f32 to vector<8x32xf32>
    %352 = arith.subf %351, %345 : vector<8x32xf32>
    %353 = arith.mulf %352, %350 : vector<8x32xf32>
    %354 = arith.mulf %345, %272 : vector<8x32xf32>
    %355 = arith.addf %353, %354 : vector<8x32xf32>
    %356 = vector.shape_cast %276 : vector<8x1xi1> to vector<8x1xi1>
    %357 = vector.broadcast %356 : vector<8x1xi1> to vector<8x32xi1>
    %358 = arith.select %357, %355, %272 : vector<8x32xi1>, vector<8x32xf32>
    %c4 = arith.constant 4 : index
    %c0_101 = arith.constant 0 : index
    %c0_102 = arith.constant 0 : index
    %359 = vector.load %arg2[%c4, %c0_101, %c0_102] : memref<8x8x32xf32, #tpu.memory_space<vmem>>, vector<1x8x32xf32>
    %360 = vector.shape_cast %359 : vector<1x8x32xf32> to vector<8x32xf32>
    %c4_i32 = arith.constant 4 : i32
    %361 = vector.broadcast %c4_i32 : i32 to vector<8x1xi32>
    %362 = arith.cmpi sgt, %0, %361 : vector<8x1xi32>
    %cst_103 = arith.constant dense<0.000000e+00> : vector<8x96xf32>
    %363 = tpu.matmul %360, %2, %cst_103 {dimension_numbers = #tpu.dot_dimension_numbers<[1], [0], [0], [1], [0, 0, 1, 1], [], []>} : vector<8x32xf32>, vector<32x96xf32>, vector<8x96xf32> -> vector<8x96xf32>
    %364 = vector.extract_strided_slice %10 {offsets = [0, 0], sizes = [1, 96], strides = [1, 1]} : vector<2x96xf32> to vector<1x96xf32>
    %365 = vector.broadcast %364 : vector<1x96xf32> to vector<8x96xf32>
    %366 = arith.addf %363, %365 : vector<8x96xf32>
    %cst_104 = arith.constant dense<0.000000e+00> : vector<8x96xf32>
    %367 = tpu.matmul %317, %6, %cst_104 {dimension_numbers = #tpu.dot_dimension_numbers<[1], [0], [0], [1], [0, 0, 1, 1], [], []>} : vector<8x32xf32>, vector<32x96xf32>, vector<8x96xf32> -> vector<8x96xf32>
    %368 = vector.extract_strided_slice %10 {offsets = [1, 0], sizes = [1, 96], strides = [1, 1]} : vector<2x96xf32> to vector<1x96xf32>
    %369 = vector.broadcast %368 : vector<1x96xf32> to vector<8x96xf32>
    %370 = arith.addf %367, %369 : vector<8x96xf32>
    %371 = vector.extract_strided_slice %366 {offsets = [0, 0], sizes = [8, 32], strides = [1, 1]} : vector<8x96xf32> to vector<8x32xf32>
    %372 = vector.extract_strided_slice %370 {offsets = [0, 0], sizes = [8, 32], strides = [1, 1]} : vector<8x96xf32> to vector<8x32xf32>
    %373 = arith.addf %371, %372 : vector<8x32xf32>
    %cst_105 = arith.constant 0.000000e+00 : f32
    %374 = vector.broadcast %cst_105 : f32 to vector<8x32xf32>
    %375 = arith.subf %374, %373 : vector<8x32xf32>
    %376 = math.exp %375 : vector<8x32xf32>
    %cst_106 = arith.constant 1.000000e+00 : f32
    %377 = vector.broadcast %cst_106 : f32 to vector<8x32xf32>
    %378 = arith.addf %377, %376 : vector<8x32xf32>
    %cst_107 = arith.constant 1.000000e+00 : f32
    %379 = vector.broadcast %cst_107 : f32 to vector<8x32xf32>
    %380 = arith.divf %379, %378 : vector<8x32xf32>
    %381 = vector.extract_strided_slice %366 {offsets = [0, 32], sizes = [8, 32], strides = [1, 1]} : vector<8x96xf32> to vector<8x32xf32>
    %382 = vector.extract_strided_slice %370 {offsets = [0, 32], sizes = [8, 32], strides = [1, 1]} : vector<8x96xf32> to vector<8x32xf32>
    %383 = arith.addf %381, %382 : vector<8x32xf32>
    %cst_108 = arith.constant 0.000000e+00 : f32
    %384 = vector.broadcast %cst_108 : f32 to vector<8x32xf32>
    %385 = arith.subf %384, %383 : vector<8x32xf32>
    %386 = math.exp %385 : vector<8x32xf32>
    %cst_109 = arith.constant 1.000000e+00 : f32
    %387 = vector.broadcast %cst_109 : f32 to vector<8x32xf32>
    %388 = arith.addf %387, %386 : vector<8x32xf32>
    %cst_110 = arith.constant 1.000000e+00 : f32
    %389 = vector.broadcast %cst_110 : f32 to vector<8x32xf32>
    %390 = arith.divf %389, %388 : vector<8x32xf32>
    %391 = vector.extract_strided_slice %366 {offsets = [0, 64], sizes = [8, 32], strides = [1, 1]} : vector<8x96xf32> to vector<8x32xf32>
    %392 = vector.extract_strided_slice %370 {offsets = [0, 64], sizes = [8, 32], strides = [1, 1]} : vector<8x96xf32> to vector<8x32xf32>
    %393 = arith.mulf %380, %392 : vector<8x32xf32>
    %394 = arith.addf %391, %393 : vector<8x32xf32>
    %395 = math.tanh %394 : vector<8x32xf32>
    %cst_111 = arith.constant 1.000000e+00 : f32
    %396 = vector.broadcast %cst_111 : f32 to vector<8x32xf32>
    %397 = arith.subf %396, %390 : vector<8x32xf32>
    %398 = arith.mulf %397, %395 : vector<8x32xf32>
    %399 = arith.mulf %390, %317 : vector<8x32xf32>
    %400 = arith.addf %398, %399 : vector<8x32xf32>
    %401 = vector.shape_cast %362 : vector<8x1xi1> to vector<8x1xi1>
    %402 = vector.broadcast %401 : vector<8x1xi1> to vector<8x32xi1>
    %403 = arith.select %402, %400, %317 : vector<8x32xi1>, vector<8x32xf32>
    %cst_112 = arith.constant dense<0.000000e+00> : vector<8x96xf32>
    %404 = tpu.matmul %403, %4, %cst_112 {dimension_numbers = #tpu.dot_dimension_numbers<[1], [0], [0], [1], [0, 0, 1, 1], [], []>} : vector<8x32xf32>, vector<32x96xf32>, vector<8x96xf32> -> vector<8x96xf32>
    %405 = vector.extract_strided_slice %12 {offsets = [0, 0], sizes = [1, 96], strides = [1, 1]} : vector<2x96xf32> to vector<1x96xf32>
    %406 = vector.broadcast %405 : vector<1x96xf32> to vector<8x96xf32>
    %407 = arith.addf %404, %406 : vector<8x96xf32>
    %cst_113 = arith.constant dense<0.000000e+00> : vector<8x96xf32>
    %408 = tpu.matmul %358, %8, %cst_113 {dimension_numbers = #tpu.dot_dimension_numbers<[1], [0], [0], [1], [0, 0, 1, 1], [], []>} : vector<8x32xf32>, vector<32x96xf32>, vector<8x96xf32> -> vector<8x96xf32>
    %409 = vector.extract_strided_slice %12 {offsets = [1, 0], sizes = [1, 96], strides = [1, 1]} : vector<2x96xf32> to vector<1x96xf32>
    %410 = vector.broadcast %409 : vector<1x96xf32> to vector<8x96xf32>
    %411 = arith.addf %408, %410 : vector<8x96xf32>
    %412 = vector.extract_strided_slice %407 {offsets = [0, 0], sizes = [8, 32], strides = [1, 1]} : vector<8x96xf32> to vector<8x32xf32>
    %413 = vector.extract_strided_slice %411 {offsets = [0, 0], sizes = [8, 32], strides = [1, 1]} : vector<8x96xf32> to vector<8x32xf32>
    %414 = arith.addf %412, %413 : vector<8x32xf32>
    %cst_114 = arith.constant 0.000000e+00 : f32
    %415 = vector.broadcast %cst_114 : f32 to vector<8x32xf32>
    %416 = arith.subf %415, %414 : vector<8x32xf32>
    %417 = math.exp %416 : vector<8x32xf32>
    %cst_115 = arith.constant 1.000000e+00 : f32
    %418 = vector.broadcast %cst_115 : f32 to vector<8x32xf32>
    %419 = arith.addf %418, %417 : vector<8x32xf32>
    %cst_116 = arith.constant 1.000000e+00 : f32
    %420 = vector.broadcast %cst_116 : f32 to vector<8x32xf32>
    %421 = arith.divf %420, %419 : vector<8x32xf32>
    %422 = vector.extract_strided_slice %407 {offsets = [0, 32], sizes = [8, 32], strides = [1, 1]} : vector<8x96xf32> to vector<8x32xf32>
    %423 = vector.extract_strided_slice %411 {offsets = [0, 32], sizes = [8, 32], strides = [1, 1]} : vector<8x96xf32> to vector<8x32xf32>
    %424 = arith.addf %422, %423 : vector<8x32xf32>
    %cst_117 = arith.constant 0.000000e+00 : f32
    %425 = vector.broadcast %cst_117 : f32 to vector<8x32xf32>
    %426 = arith.subf %425, %424 : vector<8x32xf32>
    %427 = math.exp %426 : vector<8x32xf32>
    %cst_118 = arith.constant 1.000000e+00 : f32
    %428 = vector.broadcast %cst_118 : f32 to vector<8x32xf32>
    %429 = arith.addf %428, %427 : vector<8x32xf32>
    %cst_119 = arith.constant 1.000000e+00 : f32
    %430 = vector.broadcast %cst_119 : f32 to vector<8x32xf32>
    %431 = arith.divf %430, %429 : vector<8x32xf32>
    %432 = vector.extract_strided_slice %407 {offsets = [0, 64], sizes = [8, 32], strides = [1, 1]} : vector<8x96xf32> to vector<8x32xf32>
    %433 = vector.extract_strided_slice %411 {offsets = [0, 64], sizes = [8, 32], strides = [1, 1]} : vector<8x96xf32> to vector<8x32xf32>
    %434 = arith.mulf %421, %433 : vector<8x32xf32>
    %435 = arith.addf %432, %434 : vector<8x32xf32>
    %436 = math.tanh %435 : vector<8x32xf32>
    %cst_120 = arith.constant 1.000000e+00 : f32
    %437 = vector.broadcast %cst_120 : f32 to vector<8x32xf32>
    %438 = arith.subf %437, %431 : vector<8x32xf32>
    %439 = arith.mulf %438, %436 : vector<8x32xf32>
    %440 = arith.mulf %431, %358 : vector<8x32xf32>
    %441 = arith.addf %439, %440 : vector<8x32xf32>
    %442 = vector.shape_cast %362 : vector<8x1xi1> to vector<8x1xi1>
    %443 = vector.broadcast %442 : vector<8x1xi1> to vector<8x32xi1>
    %444 = arith.select %443, %441, %358 : vector<8x32xi1>, vector<8x32xf32>
    %c5 = arith.constant 5 : index
    %c0_121 = arith.constant 0 : index
    %c0_122 = arith.constant 0 : index
    %445 = vector.load %arg2[%c5, %c0_121, %c0_122] : memref<8x8x32xf32, #tpu.memory_space<vmem>>, vector<1x8x32xf32>
    %446 = vector.shape_cast %445 : vector<1x8x32xf32> to vector<8x32xf32>
    %c5_i32 = arith.constant 5 : i32
    %447 = vector.broadcast %c5_i32 : i32 to vector<8x1xi32>
    %448 = arith.cmpi sgt, %0, %447 : vector<8x1xi32>
    %cst_123 = arith.constant dense<0.000000e+00> : vector<8x96xf32>
    %449 = tpu.matmul %446, %2, %cst_123 {dimension_numbers = #tpu.dot_dimension_numbers<[1], [0], [0], [1], [0, 0, 1, 1], [], []>} : vector<8x32xf32>, vector<32x96xf32>, vector<8x96xf32> -> vector<8x96xf32>
    %450 = vector.extract_strided_slice %10 {offsets = [0, 0], sizes = [1, 96], strides = [1, 1]} : vector<2x96xf32> to vector<1x96xf32>
    %451 = vector.broadcast %450 : vector<1x96xf32> to vector<8x96xf32>
    %452 = arith.addf %449, %451 : vector<8x96xf32>
    %cst_124 = arith.constant dense<0.000000e+00> : vector<8x96xf32>
    %453 = tpu.matmul %403, %6, %cst_124 {dimension_numbers = #tpu.dot_dimension_numbers<[1], [0], [0], [1], [0, 0, 1, 1], [], []>} : vector<8x32xf32>, vector<32x96xf32>, vector<8x96xf32> -> vector<8x96xf32>
    %454 = vector.extract_strided_slice %10 {offsets = [1, 0], sizes = [1, 96], strides = [1, 1]} : vector<2x96xf32> to vector<1x96xf32>
    %455 = vector.broadcast %454 : vector<1x96xf32> to vector<8x96xf32>
    %456 = arith.addf %453, %455 : vector<8x96xf32>
    %457 = vector.extract_strided_slice %452 {offsets = [0, 0], sizes = [8, 32], strides = [1, 1]} : vector<8x96xf32> to vector<8x32xf32>
    %458 = vector.extract_strided_slice %456 {offsets = [0, 0], sizes = [8, 32], strides = [1, 1]} : vector<8x96xf32> to vector<8x32xf32>
    %459 = arith.addf %457, %458 : vector<8x32xf32>
    %cst_125 = arith.constant 0.000000e+00 : f32
    %460 = vector.broadcast %cst_125 : f32 to vector<8x32xf32>
    %461 = arith.subf %460, %459 : vector<8x32xf32>
    %462 = math.exp %461 : vector<8x32xf32>
    %cst_126 = arith.constant 1.000000e+00 : f32
    %463 = vector.broadcast %cst_126 : f32 to vector<8x32xf32>
    %464 = arith.addf %463, %462 : vector<8x32xf32>
    %cst_127 = arith.constant 1.000000e+00 : f32
    %465 = vector.broadcast %cst_127 : f32 to vector<8x32xf32>
    %466 = arith.divf %465, %464 : vector<8x32xf32>
    %467 = vector.extract_strided_slice %452 {offsets = [0, 32], sizes = [8, 32], strides = [1, 1]} : vector<8x96xf32> to vector<8x32xf32>
    %468 = vector.extract_strided_slice %456 {offsets = [0, 32], sizes = [8, 32], strides = [1, 1]} : vector<8x96xf32> to vector<8x32xf32>
    %469 = arith.addf %467, %468 : vector<8x32xf32>
    %cst_128 = arith.constant 0.000000e+00 : f32
    %470 = vector.broadcast %cst_128 : f32 to vector<8x32xf32>
    %471 = arith.subf %470, %469 : vector<8x32xf32>
    %472 = math.exp %471 : vector<8x32xf32>
    %cst_129 = arith.constant 1.000000e+00 : f32
    %473 = vector.broadcast %cst_129 : f32 to vector<8x32xf32>
    %474 = arith.addf %473, %472 : vector<8x32xf32>
    %cst_130 = arith.constant 1.000000e+00 : f32
    %475 = vector.broadcast %cst_130 : f32 to vector<8x32xf32>
    %476 = arith.divf %475, %474 : vector<8x32xf32>
    %477 = vector.extract_strided_slice %452 {offsets = [0, 64], sizes = [8, 32], strides = [1, 1]} : vector<8x96xf32> to vector<8x32xf32>
    %478 = vector.extract_strided_slice %456 {offsets = [0, 64], sizes = [8, 32], strides = [1, 1]} : vector<8x96xf32> to vector<8x32xf32>
    %479 = arith.mulf %466, %478 : vector<8x32xf32>
    %480 = arith.addf %477, %479 : vector<8x32xf32>
    %481 = math.tanh %480 : vector<8x32xf32>
    %cst_131 = arith.constant 1.000000e+00 : f32
    %482 = vector.broadcast %cst_131 : f32 to vector<8x32xf32>
    %483 = arith.subf %482, %476 : vector<8x32xf32>
    %484 = arith.mulf %483, %481 : vector<8x32xf32>
    %485 = arith.mulf %476, %403 : vector<8x32xf32>
    %486 = arith.addf %484, %485 : vector<8x32xf32>
    %487 = vector.shape_cast %448 : vector<8x1xi1> to vector<8x1xi1>
    %488 = vector.broadcast %487 : vector<8x1xi1> to vector<8x32xi1>
    %489 = arith.select %488, %486, %403 : vector<8x32xi1>, vector<8x32xf32>
    %cst_132 = arith.constant dense<0.000000e+00> : vector<8x96xf32>
    %490 = tpu.matmul %489, %4, %cst_132 {dimension_numbers = #tpu.dot_dimension_numbers<[1], [0], [0], [1], [0, 0, 1, 1], [], []>} : vector<8x32xf32>, vector<32x96xf32>, vector<8x96xf32> -> vector<8x96xf32>
    %491 = vector.extract_strided_slice %12 {offsets = [0, 0], sizes = [1, 96], strides = [1, 1]} : vector<2x96xf32> to vector<1x96xf32>
    %492 = vector.broadcast %491 : vector<1x96xf32> to vector<8x96xf32>
    %493 = arith.addf %490, %492 : vector<8x96xf32>
    %cst_133 = arith.constant dense<0.000000e+00> : vector<8x96xf32>
    %494 = tpu.matmul %444, %8, %cst_133 {dimension_numbers = #tpu.dot_dimension_numbers<[1], [0], [0], [1], [0, 0, 1, 1], [], []>} : vector<8x32xf32>, vector<32x96xf32>, vector<8x96xf32> -> vector<8x96xf32>
    %495 = vector.extract_strided_slice %12 {offsets = [1, 0], sizes = [1, 96], strides = [1, 1]} : vector<2x96xf32> to vector<1x96xf32>
    %496 = vector.broadcast %495 : vector<1x96xf32> to vector<8x96xf32>
    %497 = arith.addf %494, %496 : vector<8x96xf32>
    %498 = vector.extract_strided_slice %493 {offsets = [0, 0], sizes = [8, 32], strides = [1, 1]} : vector<8x96xf32> to vector<8x32xf32>
    %499 = vector.extract_strided_slice %497 {offsets = [0, 0], sizes = [8, 32], strides = [1, 1]} : vector<8x96xf32> to vector<8x32xf32>
    %500 = arith.addf %498, %499 : vector<8x32xf32>
    %cst_134 = arith.constant 0.000000e+00 : f32
    %501 = vector.broadcast %cst_134 : f32 to vector<8x32xf32>
    %502 = arith.subf %501, %500 : vector<8x32xf32>
    %503 = math.exp %502 : vector<8x32xf32>
    %cst_135 = arith.constant 1.000000e+00 : f32
    %504 = vector.broadcast %cst_135 : f32 to vector<8x32xf32>
    %505 = arith.addf %504, %503 : vector<8x32xf32>
    %cst_136 = arith.constant 1.000000e+00 : f32
    %506 = vector.broadcast %cst_136 : f32 to vector<8x32xf32>
    %507 = arith.divf %506, %505 : vector<8x32xf32>
    %508 = vector.extract_strided_slice %493 {offsets = [0, 32], sizes = [8, 32], strides = [1, 1]} : vector<8x96xf32> to vector<8x32xf32>
    %509 = vector.extract_strided_slice %497 {offsets = [0, 32], sizes = [8, 32], strides = [1, 1]} : vector<8x96xf32> to vector<8x32xf32>
    %510 = arith.addf %508, %509 : vector<8x32xf32>
    %cst_137 = arith.constant 0.000000e+00 : f32
    %511 = vector.broadcast %cst_137 : f32 to vector<8x32xf32>
    %512 = arith.subf %511, %510 : vector<8x32xf32>
    %513 = math.exp %512 : vector<8x32xf32>
    %cst_138 = arith.constant 1.000000e+00 : f32
    %514 = vector.broadcast %cst_138 : f32 to vector<8x32xf32>
    %515 = arith.addf %514, %513 : vector<8x32xf32>
    %cst_139 = arith.constant 1.000000e+00 : f32
    %516 = vector.broadcast %cst_139 : f32 to vector<8x32xf32>
    %517 = arith.divf %516, %515 : vector<8x32xf32>
    %518 = vector.extract_strided_slice %493 {offsets = [0, 64], sizes = [8, 32], strides = [1, 1]} : vector<8x96xf32> to vector<8x32xf32>
    %519 = vector.extract_strided_slice %497 {offsets = [0, 64], sizes = [8, 32], strides = [1, 1]} : vector<8x96xf32> to vector<8x32xf32>
    %520 = arith.mulf %507, %519 : vector<8x32xf32>
    %521 = arith.addf %518, %520 : vector<8x32xf32>
    %522 = math.tanh %521 : vector<8x32xf32>
    %cst_140 = arith.constant 1.000000e+00 : f32
    %523 = vector.broadcast %cst_140 : f32 to vector<8x32xf32>
    %524 = arith.subf %523, %517 : vector<8x32xf32>
    %525 = arith.mulf %524, %522 : vector<8x32xf32>
    %526 = arith.mulf %517, %444 : vector<8x32xf32>
    %527 = arith.addf %525, %526 : vector<8x32xf32>
    %528 = vector.shape_cast %448 : vector<8x1xi1> to vector<8x1xi1>
    %529 = vector.broadcast %528 : vector<8x1xi1> to vector<8x32xi1>
    %530 = arith.select %529, %527, %444 : vector<8x32xi1>, vector<8x32xf32>
    %c6 = arith.constant 6 : index
    %c0_141 = arith.constant 0 : index
    %c0_142 = arith.constant 0 : index
    %531 = vector.load %arg2[%c6, %c0_141, %c0_142] : memref<8x8x32xf32, #tpu.memory_space<vmem>>, vector<1x8x32xf32>
    %532 = vector.shape_cast %531 : vector<1x8x32xf32> to vector<8x32xf32>
    %c6_i32 = arith.constant 6 : i32
    %533 = vector.broadcast %c6_i32 : i32 to vector<8x1xi32>
    %534 = arith.cmpi sgt, %0, %533 : vector<8x1xi32>
    %cst_143 = arith.constant dense<0.000000e+00> : vector<8x96xf32>
    %535 = tpu.matmul %532, %2, %cst_143 {dimension_numbers = #tpu.dot_dimension_numbers<[1], [0], [0], [1], [0, 0, 1, 1], [], []>} : vector<8x32xf32>, vector<32x96xf32>, vector<8x96xf32> -> vector<8x96xf32>
    %536 = vector.extract_strided_slice %10 {offsets = [0, 0], sizes = [1, 96], strides = [1, 1]} : vector<2x96xf32> to vector<1x96xf32>
    %537 = vector.broadcast %536 : vector<1x96xf32> to vector<8x96xf32>
    %538 = arith.addf %535, %537 : vector<8x96xf32>
    %cst_144 = arith.constant dense<0.000000e+00> : vector<8x96xf32>
    %539 = tpu.matmul %489, %6, %cst_144 {dimension_numbers = #tpu.dot_dimension_numbers<[1], [0], [0], [1], [0, 0, 1, 1], [], []>} : vector<8x32xf32>, vector<32x96xf32>, vector<8x96xf32> -> vector<8x96xf32>
    %540 = vector.extract_strided_slice %10 {offsets = [1, 0], sizes = [1, 96], strides = [1, 1]} : vector<2x96xf32> to vector<1x96xf32>
    %541 = vector.broadcast %540 : vector<1x96xf32> to vector<8x96xf32>
    %542 = arith.addf %539, %541 : vector<8x96xf32>
    %543 = vector.extract_strided_slice %538 {offsets = [0, 0], sizes = [8, 32], strides = [1, 1]} : vector<8x96xf32> to vector<8x32xf32>
    %544 = vector.extract_strided_slice %542 {offsets = [0, 0], sizes = [8, 32], strides = [1, 1]} : vector<8x96xf32> to vector<8x32xf32>
    %545 = arith.addf %543, %544 : vector<8x32xf32>
    %cst_145 = arith.constant 0.000000e+00 : f32
    %546 = vector.broadcast %cst_145 : f32 to vector<8x32xf32>
    %547 = arith.subf %546, %545 : vector<8x32xf32>
    %548 = math.exp %547 : vector<8x32xf32>
    %cst_146 = arith.constant 1.000000e+00 : f32
    %549 = vector.broadcast %cst_146 : f32 to vector<8x32xf32>
    %550 = arith.addf %549, %548 : vector<8x32xf32>
    %cst_147 = arith.constant 1.000000e+00 : f32
    %551 = vector.broadcast %cst_147 : f32 to vector<8x32xf32>
    %552 = arith.divf %551, %550 : vector<8x32xf32>
    %553 = vector.extract_strided_slice %538 {offsets = [0, 32], sizes = [8, 32], strides = [1, 1]} : vector<8x96xf32> to vector<8x32xf32>
    %554 = vector.extract_strided_slice %542 {offsets = [0, 32], sizes = [8, 32], strides = [1, 1]} : vector<8x96xf32> to vector<8x32xf32>
    %555 = arith.addf %553, %554 : vector<8x32xf32>
    %cst_148 = arith.constant 0.000000e+00 : f32
    %556 = vector.broadcast %cst_148 : f32 to vector<8x32xf32>
    %557 = arith.subf %556, %555 : vector<8x32xf32>
    %558 = math.exp %557 : vector<8x32xf32>
    %cst_149 = arith.constant 1.000000e+00 : f32
    %559 = vector.broadcast %cst_149 : f32 to vector<8x32xf32>
    %560 = arith.addf %559, %558 : vector<8x32xf32>
    %cst_150 = arith.constant 1.000000e+00 : f32
    %561 = vector.broadcast %cst_150 : f32 to vector<8x32xf32>
    %562 = arith.divf %561, %560 : vector<8x32xf32>
    %563 = vector.extract_strided_slice %538 {offsets = [0, 64], sizes = [8, 32], strides = [1, 1]} : vector<8x96xf32> to vector<8x32xf32>
    %564 = vector.extract_strided_slice %542 {offsets = [0, 64], sizes = [8, 32], strides = [1, 1]} : vector<8x96xf32> to vector<8x32xf32>
    %565 = arith.mulf %552, %564 : vector<8x32xf32>
    %566 = arith.addf %563, %565 : vector<8x32xf32>
    %567 = math.tanh %566 : vector<8x32xf32>
    %cst_151 = arith.constant 1.000000e+00 : f32
    %568 = vector.broadcast %cst_151 : f32 to vector<8x32xf32>
    %569 = arith.subf %568, %562 : vector<8x32xf32>
    %570 = arith.mulf %569, %567 : vector<8x32xf32>
    %571 = arith.mulf %562, %489 : vector<8x32xf32>
    %572 = arith.addf %570, %571 : vector<8x32xf32>
    %573 = vector.shape_cast %534 : vector<8x1xi1> to vector<8x1xi1>
    %574 = vector.broadcast %573 : vector<8x1xi1> to vector<8x32xi1>
    %575 = arith.select %574, %572, %489 : vector<8x32xi1>, vector<8x32xf32>
    %cst_152 = arith.constant dense<0.000000e+00> : vector<8x96xf32>
    %576 = tpu.matmul %575, %4, %cst_152 {dimension_numbers = #tpu.dot_dimension_numbers<[1], [0], [0], [1], [0, 0, 1, 1], [], []>} : vector<8x32xf32>, vector<32x96xf32>, vector<8x96xf32> -> vector<8x96xf32>
    %577 = vector.extract_strided_slice %12 {offsets = [0, 0], sizes = [1, 96], strides = [1, 1]} : vector<2x96xf32> to vector<1x96xf32>
    %578 = vector.broadcast %577 : vector<1x96xf32> to vector<8x96xf32>
    %579 = arith.addf %576, %578 : vector<8x96xf32>
    %cst_153 = arith.constant dense<0.000000e+00> : vector<8x96xf32>
    %580 = tpu.matmul %530, %8, %cst_153 {dimension_numbers = #tpu.dot_dimension_numbers<[1], [0], [0], [1], [0, 0, 1, 1], [], []>} : vector<8x32xf32>, vector<32x96xf32>, vector<8x96xf32> -> vector<8x96xf32>
    %581 = vector.extract_strided_slice %12 {offsets = [1, 0], sizes = [1, 96], strides = [1, 1]} : vector<2x96xf32> to vector<1x96xf32>
    %582 = vector.broadcast %581 : vector<1x96xf32> to vector<8x96xf32>
    %583 = arith.addf %580, %582 : vector<8x96xf32>
    %584 = vector.extract_strided_slice %579 {offsets = [0, 0], sizes = [8, 32], strides = [1, 1]} : vector<8x96xf32> to vector<8x32xf32>
    %585 = vector.extract_strided_slice %583 {offsets = [0, 0], sizes = [8, 32], strides = [1, 1]} : vector<8x96xf32> to vector<8x32xf32>
    %586 = arith.addf %584, %585 : vector<8x32xf32>
    %cst_154 = arith.constant 0.000000e+00 : f32
    %587 = vector.broadcast %cst_154 : f32 to vector<8x32xf32>
    %588 = arith.subf %587, %586 : vector<8x32xf32>
    %589 = math.exp %588 : vector<8x32xf32>
    %cst_155 = arith.constant 1.000000e+00 : f32
    %590 = vector.broadcast %cst_155 : f32 to vector<8x32xf32>
    %591 = arith.addf %590, %589 : vector<8x32xf32>
    %cst_156 = arith.constant 1.000000e+00 : f32
    %592 = vector.broadcast %cst_156 : f32 to vector<8x32xf32>
    %593 = arith.divf %592, %591 : vector<8x32xf32>
    %594 = vector.extract_strided_slice %579 {offsets = [0, 32], sizes = [8, 32], strides = [1, 1]} : vector<8x96xf32> to vector<8x32xf32>
    %595 = vector.extract_strided_slice %583 {offsets = [0, 32], sizes = [8, 32], strides = [1, 1]} : vector<8x96xf32> to vector<8x32xf32>
    %596 = arith.addf %594, %595 : vector<8x32xf32>
    %cst_157 = arith.constant 0.000000e+00 : f32
    %597 = vector.broadcast %cst_157 : f32 to vector<8x32xf32>
    %598 = arith.subf %597, %596 : vector<8x32xf32>
    %599 = math.exp %598 : vector<8x32xf32>
    %cst_158 = arith.constant 1.000000e+00 : f32
    %600 = vector.broadcast %cst_158 : f32 to vector<8x32xf32>
    %601 = arith.addf %600, %599 : vector<8x32xf32>
    %cst_159 = arith.constant 1.000000e+00 : f32
    %602 = vector.broadcast %cst_159 : f32 to vector<8x32xf32>
    %603 = arith.divf %602, %601 : vector<8x32xf32>
    %604 = vector.extract_strided_slice %579 {offsets = [0, 64], sizes = [8, 32], strides = [1, 1]} : vector<8x96xf32> to vector<8x32xf32>
    %605 = vector.extract_strided_slice %583 {offsets = [0, 64], sizes = [8, 32], strides = [1, 1]} : vector<8x96xf32> to vector<8x32xf32>
    %606 = arith.mulf %593, %605 : vector<8x32xf32>
    %607 = arith.addf %604, %606 : vector<8x32xf32>
    %608 = math.tanh %607 : vector<8x32xf32>
    %cst_160 = arith.constant 1.000000e+00 : f32
    %609 = vector.broadcast %cst_160 : f32 to vector<8x32xf32>
    %610 = arith.subf %609, %603 : vector<8x32xf32>
    %611 = arith.mulf %610, %608 : vector<8x32xf32>
    %612 = arith.mulf %603, %530 : vector<8x32xf32>
    %613 = arith.addf %611, %612 : vector<8x32xf32>
    %614 = vector.shape_cast %534 : vector<8x1xi1> to vector<8x1xi1>
    %615 = vector.broadcast %614 : vector<8x1xi1> to vector<8x32xi1>
    %616 = arith.select %615, %613, %530 : vector<8x32xi1>, vector<8x32xf32>
    %c7 = arith.constant 7 : index
    %c0_161 = arith.constant 0 : index
    %c0_162 = arith.constant 0 : index
    %617 = vector.load %arg2[%c7, %c0_161, %c0_162] : memref<8x8x32xf32, #tpu.memory_space<vmem>>, vector<1x8x32xf32>
    %618 = vector.shape_cast %617 : vector<1x8x32xf32> to vector<8x32xf32>
    %c7_i32 = arith.constant 7 : i32
    %619 = vector.broadcast %c7_i32 : i32 to vector<8x1xi32>
    %620 = arith.cmpi sgt, %0, %619 : vector<8x1xi32>
    %cst_163 = arith.constant dense<0.000000e+00> : vector<8x96xf32>
    %621 = tpu.matmul %618, %2, %cst_163 {dimension_numbers = #tpu.dot_dimension_numbers<[1], [0], [0], [1], [0, 0, 1, 1], [], []>} : vector<8x32xf32>, vector<32x96xf32>, vector<8x96xf32> -> vector<8x96xf32>
    %622 = vector.extract_strided_slice %10 {offsets = [0, 0], sizes = [1, 96], strides = [1, 1]} : vector<2x96xf32> to vector<1x96xf32>
    %623 = vector.broadcast %622 : vector<1x96xf32> to vector<8x96xf32>
    %624 = arith.addf %621, %623 : vector<8x96xf32>
    %cst_164 = arith.constant dense<0.000000e+00> : vector<8x96xf32>
    %625 = tpu.matmul %575, %6, %cst_164 {dimension_numbers = #tpu.dot_dimension_numbers<[1], [0], [0], [1], [0, 0, 1, 1], [], []>} : vector<8x32xf32>, vector<32x96xf32>, vector<8x96xf32> -> vector<8x96xf32>
    %626 = vector.extract_strided_slice %10 {offsets = [1, 0], sizes = [1, 96], strides = [1, 1]} : vector<2x96xf32> to vector<1x96xf32>
    %627 = vector.broadcast %626 : vector<1x96xf32> to vector<8x96xf32>
    %628 = arith.addf %625, %627 : vector<8x96xf32>
    %629 = vector.extract_strided_slice %624 {offsets = [0, 0], sizes = [8, 32], strides = [1, 1]} : vector<8x96xf32> to vector<8x32xf32>
    %630 = vector.extract_strided_slice %628 {offsets = [0, 0], sizes = [8, 32], strides = [1, 1]} : vector<8x96xf32> to vector<8x32xf32>
    %631 = arith.addf %629, %630 : vector<8x32xf32>
    %cst_165 = arith.constant 0.000000e+00 : f32
    %632 = vector.broadcast %cst_165 : f32 to vector<8x32xf32>
    %633 = arith.subf %632, %631 : vector<8x32xf32>
    %634 = math.exp %633 : vector<8x32xf32>
    %cst_166 = arith.constant 1.000000e+00 : f32
    %635 = vector.broadcast %cst_166 : f32 to vector<8x32xf32>
    %636 = arith.addf %635, %634 : vector<8x32xf32>
    %cst_167 = arith.constant 1.000000e+00 : f32
    %637 = vector.broadcast %cst_167 : f32 to vector<8x32xf32>
    %638 = arith.divf %637, %636 : vector<8x32xf32>
    %639 = vector.extract_strided_slice %624 {offsets = [0, 32], sizes = [8, 32], strides = [1, 1]} : vector<8x96xf32> to vector<8x32xf32>
    %640 = vector.extract_strided_slice %628 {offsets = [0, 32], sizes = [8, 32], strides = [1, 1]} : vector<8x96xf32> to vector<8x32xf32>
    %641 = arith.addf %639, %640 : vector<8x32xf32>
    %cst_168 = arith.constant 0.000000e+00 : f32
    %642 = vector.broadcast %cst_168 : f32 to vector<8x32xf32>
    %643 = arith.subf %642, %641 : vector<8x32xf32>
    %644 = math.exp %643 : vector<8x32xf32>
    %cst_169 = arith.constant 1.000000e+00 : f32
    %645 = vector.broadcast %cst_169 : f32 to vector<8x32xf32>
    %646 = arith.addf %645, %644 : vector<8x32xf32>
    %cst_170 = arith.constant 1.000000e+00 : f32
    %647 = vector.broadcast %cst_170 : f32 to vector<8x32xf32>
    %648 = arith.divf %647, %646 : vector<8x32xf32>
    %649 = vector.extract_strided_slice %624 {offsets = [0, 64], sizes = [8, 32], strides = [1, 1]} : vector<8x96xf32> to vector<8x32xf32>
    %650 = vector.extract_strided_slice %628 {offsets = [0, 64], sizes = [8, 32], strides = [1, 1]} : vector<8x96xf32> to vector<8x32xf32>
    %651 = arith.mulf %638, %650 : vector<8x32xf32>
    %652 = arith.addf %649, %651 : vector<8x32xf32>
    %653 = math.tanh %652 : vector<8x32xf32>
    %cst_171 = arith.constant 1.000000e+00 : f32
    %654 = vector.broadcast %cst_171 : f32 to vector<8x32xf32>
    %655 = arith.subf %654, %648 : vector<8x32xf32>
    %656 = arith.mulf %655, %653 : vector<8x32xf32>
    %657 = arith.mulf %648, %575 : vector<8x32xf32>
    %658 = arith.addf %656, %657 : vector<8x32xf32>
    %659 = vector.shape_cast %620 : vector<8x1xi1> to vector<8x1xi1>
    %660 = vector.broadcast %659 : vector<8x1xi1> to vector<8x32xi1>
    %661 = arith.select %660, %658, %575 : vector<8x32xi1>, vector<8x32xf32>
    %cst_172 = arith.constant dense<0.000000e+00> : vector<8x96xf32>
    %662 = tpu.matmul %661, %4, %cst_172 {dimension_numbers = #tpu.dot_dimension_numbers<[1], [0], [0], [1], [0, 0, 1, 1], [], []>} : vector<8x32xf32>, vector<32x96xf32>, vector<8x96xf32> -> vector<8x96xf32>
    %663 = vector.extract_strided_slice %12 {offsets = [0, 0], sizes = [1, 96], strides = [1, 1]} : vector<2x96xf32> to vector<1x96xf32>
    %664 = vector.broadcast %663 : vector<1x96xf32> to vector<8x96xf32>
    %665 = arith.addf %662, %664 : vector<8x96xf32>
    %cst_173 = arith.constant dense<0.000000e+00> : vector<8x96xf32>
    %666 = tpu.matmul %616, %8, %cst_173 {dimension_numbers = #tpu.dot_dimension_numbers<[1], [0], [0], [1], [0, 0, 1, 1], [], []>} : vector<8x32xf32>, vector<32x96xf32>, vector<8x96xf32> -> vector<8x96xf32>
    %667 = vector.extract_strided_slice %12 {offsets = [1, 0], sizes = [1, 96], strides = [1, 1]} : vector<2x96xf32> to vector<1x96xf32>
    %668 = vector.broadcast %667 : vector<1x96xf32> to vector<8x96xf32>
    %669 = arith.addf %666, %668 : vector<8x96xf32>
    %670 = vector.extract_strided_slice %665 {offsets = [0, 0], sizes = [8, 32], strides = [1, 1]} : vector<8x96xf32> to vector<8x32xf32>
    %671 = vector.extract_strided_slice %669 {offsets = [0, 0], sizes = [8, 32], strides = [1, 1]} : vector<8x96xf32> to vector<8x32xf32>
    %672 = arith.addf %670, %671 : vector<8x32xf32>
    %cst_174 = arith.constant 0.000000e+00 : f32
    %673 = vector.broadcast %cst_174 : f32 to vector<8x32xf32>
    %674 = arith.subf %673, %672 : vector<8x32xf32>
    %675 = math.exp %674 : vector<8x32xf32>
    %cst_175 = arith.constant 1.000000e+00 : f32
    %676 = vector.broadcast %cst_175 : f32 to vector<8x32xf32>
    %677 = arith.addf %676, %675 : vector<8x32xf32>
    %cst_176 = arith.constant 1.000000e+00 : f32
    %678 = vector.broadcast %cst_176 : f32 to vector<8x32xf32>
    %679 = arith.divf %678, %677 : vector<8x32xf32>
    %680 = vector.extract_strided_slice %665 {offsets = [0, 32], sizes = [8, 32], strides = [1, 1]} : vector<8x96xf32> to vector<8x32xf32>
    %681 = vector.extract_strided_slice %669 {offsets = [0, 32], sizes = [8, 32], strides = [1, 1]} : vector<8x96xf32> to vector<8x32xf32>
    %682 = arith.addf %680, %681 : vector<8x32xf32>
    %cst_177 = arith.constant 0.000000e+00 : f32
    %683 = vector.broadcast %cst_177 : f32 to vector<8x32xf32>
    %684 = arith.subf %683, %682 : vector<8x32xf32>
    %685 = math.exp %684 : vector<8x32xf32>
    %cst_178 = arith.constant 1.000000e+00 : f32
    %686 = vector.broadcast %cst_178 : f32 to vector<8x32xf32>
    %687 = arith.addf %686, %685 : vector<8x32xf32>
    %cst_179 = arith.constant 1.000000e+00 : f32
    %688 = vector.broadcast %cst_179 : f32 to vector<8x32xf32>
    %689 = arith.divf %688, %687 : vector<8x32xf32>
    %690 = vector.extract_strided_slice %665 {offsets = [0, 64], sizes = [8, 32], strides = [1, 1]} : vector<8x96xf32> to vector<8x32xf32>
    %691 = vector.extract_strided_slice %669 {offsets = [0, 64], sizes = [8, 32], strides = [1, 1]} : vector<8x96xf32> to vector<8x32xf32>
    %692 = arith.mulf %679, %691 : vector<8x32xf32>
    %693 = arith.addf %690, %692 : vector<8x32xf32>
    %694 = math.tanh %693 : vector<8x32xf32>
    %cst_180 = arith.constant 1.000000e+00 : f32
    %695 = vector.broadcast %cst_180 : f32 to vector<8x32xf32>
    %696 = arith.subf %695, %689 : vector<8x32xf32>
    %697 = arith.mulf %696, %694 : vector<8x32xf32>
    %698 = arith.mulf %689, %616 : vector<8x32xf32>
    %699 = arith.addf %697, %698 : vector<8x32xf32>
    %700 = vector.shape_cast %620 : vector<8x1xi1> to vector<8x1xi1>
    %701 = vector.broadcast %700 : vector<8x1xi1> to vector<8x32xi1>
    %702 = arith.select %701, %699, %616 : vector<8x32xi1>, vector<8x32xf32>
    %c0_181 = arith.constant 0 : index
    %c0_182 = arith.constant 0 : index
    %703 = vector.load %arg6[%c0_181, %c0_182] : memref<96x32xf32, #tpu.memory_space<vmem>>, vector<32x32xf32>
    %c32 = arith.constant 32 : index
    %c0_183 = arith.constant 0 : index
    %704 = vector.load %arg6[%c32, %c0_183] : memref<96x32xf32, #tpu.memory_space<vmem>>, vector<32x32xf32>
    %c64 = arith.constant 64 : index
    %c0_184 = arith.constant 0 : index
    %705 = vector.load %arg6[%c64, %c0_184] : memref<96x32xf32, #tpu.memory_space<vmem>>, vector<32x32xf32>
    %c0_185 = arith.constant 0 : index
    %c0_186 = arith.constant 0 : index
    %706 = vector.load %arg7[%c0_185, %c0_186] : memref<3x32xf32, #tpu.memory_space<vmem>>, vector<1x32xf32>
    %c1_187 = arith.constant 1 : index
    %c0_188 = arith.constant 0 : index
    %707 = vector.load %arg7[%c1_187, %c0_188] : memref<3x32xf32, #tpu.memory_space<vmem>>, vector<1x32xf32>
    %c2_189 = arith.constant 2 : index
    %c0_190 = arith.constant 0 : index
    %708 = vector.load %arg7[%c2_189, %c0_190] : memref<3x32xf32, #tpu.memory_space<vmem>>, vector<1x32xf32>
    %cst_191 = arith.constant dense<0.000000e+00> : vector<8x32xf32>
    %709 = tpu.matmul %702, %703, %cst_191 {dimension_numbers = #tpu.dot_dimension_numbers<[1], [0], [0], [1], [0, 0, 1, 1], [], []>} : vector<8x32xf32>, vector<32x32xf32>, vector<8x32xf32> -> vector<8x32xf32>
    %710 = vector.broadcast %706 : vector<1x32xf32> to vector<8x32xf32>
    %711 = arith.addf %709, %710 : vector<8x32xf32>
    %712 = math.tanh %711 : vector<8x32xf32>
    %cst_192 = arith.constant dense<0.000000e+00> : vector<8x32xf32>
    %713 = tpu.matmul %712, %704, %cst_192 {dimension_numbers = #tpu.dot_dimension_numbers<[1], [0], [0], [1], [0, 0, 1, 1], [], []>} : vector<8x32xf32>, vector<32x32xf32>, vector<8x32xf32> -> vector<8x32xf32>
    %714 = vector.broadcast %707 : vector<1x32xf32> to vector<8x32xf32>
    %715 = arith.addf %713, %714 : vector<8x32xf32>
    %716 = math.tanh %715 : vector<8x32xf32>
    %cst_193 = arith.constant dense<0.000000e+00> : vector<8x32xf32>
    %717 = tpu.matmul %716, %705, %cst_193 {dimension_numbers = #tpu.dot_dimension_numbers<[1], [0], [0], [1], [0, 0, 1, 1], [], []>} : vector<8x32xf32>, vector<32x32xf32>, vector<8x32xf32> -> vector<8x32xf32>
    %718 = vector.broadcast %708 : vector<1x32xf32> to vector<8x32xf32>
    %719 = arith.addf %717, %718 : vector<8x32xf32>
    %720 = vector.extract_strided_slice %719 {offsets = [0, 0], sizes = [8, 1], strides = [1, 1]} : vector<8x32xf32> to vector<8x1xf32>
    %c0_194 = arith.constant 0 : index
    %c0_195 = arith.constant 0 : index
    %721 = vector.load %arg8[%c0_194, %c0_195] : memref<8x1xf32, #tpu.memory_space<vmem>>, vector<8x1xf32>
    tpu.vector_store %arg8[%c0_194, %c0_195], %720 {strides = array<i32>} : memref<8x1xf32, #tpu.memory_space<vmem>>, vector<8x1xf32>,
    return
  }
  func.func @transform_0(%arg0: i32) -> (i32, i32) {
    %c0_i32 = arith.constant 0 : i32
    %c0_i32_0 = arith.constant 0 : i32
    return %arg0, %c0_i32 : i32, i32
  }
  func.func @transform_1(%arg0: i32) -> (i32, i32, i32) {
    %c0_i32 = arith.constant 0 : i32
    %c0_i32_0 = arith.constant 0 : i32
    %c0_i32_1 = arith.constant 0 : i32
    return %c0_i32, %arg0, %c0_i32_0 : i32, i32, i32
  }
  func.func @transform_2(%arg0: i32) -> (i32, i32, i32) {
    %c0_i32 = arith.constant 0 : i32
    %c0_i32_0 = arith.constant 0 : i32
    %c0_i32_1 = arith.constant 0 : i32
    %c0_i32_2 = arith.constant 0 : i32
    return %c0_i32, %c0_i32_0, %c0_i32_1 : i32, i32, i32
  }
  func.func @transform_3(%arg0: i32) -> (i32, i32, i32) {
    %c0_i32 = arith.constant 0 : i32
    %c0_i32_0 = arith.constant 0 : i32
    %c0_i32_1 = arith.constant 0 : i32
    %c0_i32_2 = arith.constant 0 : i32
    return %c0_i32, %c0_i32_0, %c0_i32_1 : i32, i32, i32
  }
  func.func @transform_4(%arg0: i32) -> (i32, i32, i32) {
    %c0_i32 = arith.constant 0 : i32
    %c0_i32_0 = arith.constant 0 : i32
    %c0_i32_1 = arith.constant 0 : i32
    %c0_i32_2 = arith.constant 0 : i32
    return %c0_i32, %c0_i32_0, %c0_i32_1 : i32, i32, i32
  }
  func.func @transform_5(%arg0: i32) -> (i32, i32) {
    %c0_i32 = arith.constant 0 : i32
    %c0_i32_0 = arith.constant 0 : i32
    %c0_i32_1 = arith.constant 0 : i32
    return %c0_i32, %c0_i32_0 : i32, i32
  }
  func.func @transform_6(%arg0: i32) -> (i32, i32) {
    %c0_i32 = arith.constant 0 : i32
    %c0_i32_0 = arith.constant 0 : i32
    %c0_i32_1 = arith.constant 0 : i32
    return %c0_i32, %c0_i32_0 : i32, i32
  }
  func.func @transform_7(%arg0: i32) -> (i32, i32) {
    %c0_i32 = arith.constant 0 : i32
    %c0_i32_0 = arith.constant 0 : i32
    return %arg0, %c0_i32 : i32, i32
  }
}

</mosaic_0001>

<llo_original>
// kernel: tpu_custom_call.1
$region0: #{tpu_custom_call.1}
  #allocation0 [shape = 'u32[]', space=smem, size = 0x4, offset = 0x4, fixed_abs, tag = 'smem constant byte address 0x4 - core index']
  #allocation1 [shape = 'u32[144,128]{1,0:T(1,128)}', space=vmem, size = 0x12000, scoped, tag = 'internal scratch']
  %s0 = inlined_call_operand.vmem [shape: s32[8,1], index: 0, kind: input, shape index: {}]
  %s1 = inlined_call_operand.vmem [shape: f32[8,8,32], index: 1, kind: input, shape index: {}]
  %s2 = inlined_call_operand.vmem [shape: f32[2,32,96], index: 2, kind: input, shape index: {}]
  %s3 = inlined_call_operand.hbm [shape: f32[2,32,96], index: 3, kind: input, shape index: {}]
  %s4 = inlined_call_operand.vmem [shape: f32[2,2,96], index: 4, kind: input, shape index: {}]
  %s5 = inlined_call_operand.vmem [shape: f32[96,32], index: 5, kind: input, shape index: {}]
  %s6 = inlined_call_operand.vmem [shape: f32[3,32], index: 6, kind: input, shape index: {}]
  %s7 = inlined_call_operand.vmem [shape: f32[8,1], index: 7, kind: output, shape index: {}]
  %s8 = sld [smem:[#allocation0]]
  $region42: #{tpu_custom_call.1} parent=0
    _
  %s10 = ssub.s32 1, %s8
  %s11 = scalar_select 0, %s10, %s8
  $region1: #{tpu_custom_call.1} parent=0
    #allocation2 [shape = 'u8[32768]{0}', space=vmem, size = 0x8000, scoped, tag = 'input window, operand 3, single buffered']
    #allocation3 [shape = 's32[1]{0}', space=sflag, size = 0x4, scoped, tag = 'scoped memory for tpu_custom_call.1']
    %12 = vsyncpa [#allocation3], 0
    // Predicated region
    $region2: #{tpu_custom_call.1} parent=1 // pred_check
      _
    $region3: #{tpu_custom_call.1} parent=1 // pred_check_branch
      %14 = sbr.rel (0) target = $region5
    $region4: #{tpu_custom_call.1} parent=1 // pred_region
      _
    $region5: #{tpu_custom_call.1} parent=1 // pred_fallthru
      _
    // Predicated region
    $region6: #{tpu_custom_call.1} parent=1 // pred_check
      _
    $region7: #{tpu_custom_call.1} parent=1 // pred_check_branch
      %16 = sbr.rel (0) target = $region9
    $region8: #{tpu_custom_call.1} parent=1 // pred_region
      _
    $region9: #{tpu_custom_call.1} parent=1 // pred_fallthru
      _
    // Predicated region
    $region10: #{tpu_custom_call.1} parent=1 // pred_check
      _
    $region11: #{tpu_custom_call.1} parent=1 // pred_check_branch
      %18 = sbr.rel (0) target = $region13
    $region12: #{tpu_custom_call.1} parent=1 // pred_region
      _
    $region13: #{tpu_custom_call.1} parent=1 // pred_fallthru
      _
    // Predicated region
    $region14: #{tpu_custom_call.1} parent=1 // pred_check
      _
    $region15: #{tpu_custom_call.1} parent=1 // pred_check_branch
      %20 = sbr.rel (0) target = $region17
    $region16: #{tpu_custom_call.1} parent=1 // pred_region
      %s22 = ssub.s32 1024, 1024
      %23 = vsyncadd [#allocation3], %s22
      %s24 = sshll.u32 [#allocation2], 4
      %s25 = int_to_ptr.vmem [resolvable:$true] %s24
      %30 = dma.hbm_to_vmem [thread:$0]  %s3, 1024, %s25, [#allocation3], 128, 128, 8
    $region17: #{tpu_custom_call.1} parent=1 // pred_fallthru
      _
    // Predicated region
    $region18: #{tpu_custom_call.1} parent=1 // pred_check
      _
    $region19: #{tpu_custom_call.1} parent=1 // pred_check_branch
      %32 = sbr.rel (0) target = $region21
    $region20: #{tpu_custom_call.1} parent=1 // pred_region
      _
    $region21: #{tpu_custom_call.1} parent=1 // pred_fallthru
      _
    // Predicated region
    $region22: #{tpu_custom_call.1} parent=1 // pred_check
      _
    $region23: #{tpu_custom_call.1} parent=1 // pred_check_branch
      %34 = sbr.rel (0) target = $region25
    $region24: #{tpu_custom_call.1} parent=1 // pred_region
      _
    $region25: #{tpu_custom_call.1} parent=1 // pred_fallthru
      _
    // Predicated region
    $region26: #{tpu_custom_call.1} parent=1 // pred_check
      _
    $region27: #{tpu_custom_call.1} parent=1 // pred_check_branch
      %36 = sbr.rel (0) target = $region29
    $region28: #{tpu_custom_call.1} parent=1 // pred_region
      _
    $region29: #{tpu_custom_call.1} parent=1 // pred_fallthru
      _
    // Predicated region
    $region30: #{tpu_custom_call.1} parent=1 // pred_check
      _
    $region31: #{tpu_custom_call.1} parent=1 // pred_check_branch
      %38 = sbr.rel (0) target = $region33
    $region32: #{tpu_custom_call.1} parent=1 // pred_region
      %39 = dma.done [#allocation3], 1024
    $region33: #{tpu_custom_call.1} parent=1 // pred_fallthru
      _
    %v40 = vld [vmem:[%s0] sm:$0xff]
    %v41 = vld [vmem:[%s2] sm:$0xff]
    %v42 = vld [vmem:[%s2 + $0x8] sm:$0xff]
    %v43 = vld [vmem:[%s2 + $0x10] sm:$0xff]
    %v44 = vld [vmem:[%s2 + $0x18] sm:$0xff]
    %s45 = scalar_lea.vmem %s2, 32
    %v46 = vld [vmem:[%s45] sm:$0xff]
    %v47 = vld [vmem:[%s45 + $0x8] sm:$0xff]
    %v48 = vld [vmem:[%s45 + $0x10] sm:$0xff]
    %v49 = vld [vmem:[%s45 + $0x18] sm:$0xff]
    %v50 = vld [vmem:[#allocation2] sm:$0xff]
    %v51 = vld [vmem:[#allocation2 + $0x8] sm:$0xff]
    %v52 = vld [vmem:[#allocation2 + $0x10] sm:$0xff]
    %v53 = vld [vmem:[#allocation2 + $0x18] sm:$0xff]
    %s54 = scalar_lea.vmem [#allocation2], 32
    %v55 = vld [vmem:[%s54] sm:$0xff]
    %v56 = vld [vmem:[%s54 + $0x8] sm:$0xff]
    %v57 = vld [vmem:[%s54 + $0x10] sm:$0xff]
    %v58 = vld [vmem:[%s54 + $0x18] sm:$0xff]
    %v59 = vld [vmem:[%s4] sm:$0x3]
    %s60 = scalar_lea.vmem %s4, 2
    %v61 = vld [vmem:[%s60] sm:$0x3]
    %v62 = vld [vmem:[%s1] sm:$0xff]
    %vm63 = vcmp.gt.s32.totalorder %v40, 0
    %v64 = vlaneseq
    %v65 = vshrl.u32 %v64, 7
    %v66 = vsub.s32 0, %v65
    %v67 = vrot.slane %v59, %v66
    %vm68 = vcmask 261120
    %v70 = vsel %vm68, %v62, 0
    %72 = vmatprep.subr.mxu0 0.0
    %73 = vmatpush1.msra.mxu0 0.0
    %74 = vmatprep.subr.mxu0 0.0
    %75 = vmatpush1.msra.mxu0 0.0
    %76 = vmatprep.subr.mxu0 0.0
    %77 = vmatpush1.msra.mxu0 0.0
    %78 = vmatprep.subr.mxu0 0.0
    %79 = vmatpush1.msra.mxu0 0.0
    %80 = vmatprep.subr.mxu0 0.0
    %81 = vmatpush1.msra.mxu0 0.0
    %82 = vmatprep.subr.mxu0 0.0
    %83 = vmatpush1.msra.mxu0 0.0
    %84 = vmatprep.subr.mxu0 0.0
    %85 = vmatpush1.msra.mxu0 0.0
    %86 = vmatprep.subr.mxu0 0.0
    %87 = vmatpush1.msra.mxu0 0.0
    %88 = vmatprep.subr.mxu0 0.0
    %89 = vmatpush1.msra.mxu0 0.0
    %90 = vmatprep.subr.mxu0 0.0
    %91 = vmatpush1.msra.mxu0 0.0
    %92 = vmatprep.subr.mxu0 0.0
    %93 = vmatpush1.msra.mxu0 0.0
    %94 = vmatprep.subr.mxu0 0.0
    %95 = vmatpush1.msra.mxu0 0.0
    %96 = vmatprep.subr.mxu0 0.0
    %97 = vmatpush1.msra.mxu0 %v44
    %98 = vmatprep.subr.mxu0 0.0
    %99 = vmatpush1.msra.mxu0 %v43
    %100 = vmatprep.subr.mxu0 0.0
    %101 = vmatpush1.msra.mxu0 %v42
    %102 = vmatprep.subr.mxu0 0.0
    %103 = vmatpush1.msra.mxu0 %v41
    %104 = vmatprep.subr.mxu0 0.0
    %105 = vmatpush2.msra.mxu0 0.0
    %106 = vmatprep.subr.mxu0 0.0
    %107 = vmatpush2.msra.mxu0 0.0
    %108 = vmatprep.subr.mxu0 0.0
    %109 = vmatpush2.msra.mxu0 0.0
    %110 = vmatprep.subr.mxu0 0.0
    %111 = vmatpush2.msra.mxu0 0.0
    %112 = vmatprep.subr.mxu0 0.0
    %113 = vmatpush2.msra.mxu0 0.0
    %114 = vmatprep.subr.mxu0 0.0
    %115 = vmatpush2.msra.mxu0 0.0
    %116 = vmatprep.subr.mxu0 0.0
    %117 = vmatpush2.msra.mxu0 0.0
    %118 = vmatprep.subr.mxu0 0.0
    %119 = vmatpush2.msra.mxu0 0.0
    %120 = vmatprep.subr.mxu0 0.0
    %121 = vmatpush2.msra.mxu0 0.0
    %122 = vmatprep.subr.mxu0 0.0
    %123 = vmatpush2.msra.mxu0 0.0
    %124 = vmatprep.subr.mxu0 0.0
    %125 = vmatpush2.msra.mxu0 0.0
    %126 = vmatprep.subr.mxu0 0.0
    %127 = vmatpush2.msra.mxu0 0.0
    %128 = vmatprep.subr.mxu0 0.0
    %129 = vmatpush2.msra.mxu0 0.0
    %130 = vmatprep.subr.mxu0 0.0
    %131 = vmatpush2.msra.mxu0 0.0
    %132 = vmatprep.subr.mxu0 0.0
    %133 = vmatpush2.msra.mxu0 0.0
    %134 = vmatprep.subr.mxu0 0.0
    %135 = vmatpush2.msra.mxu0 0.0
    %136 = vmatprep.mubr.f32.mxu0 0.0
    %137 = vmatmul.mubr.f32.gmra.mxu0 %v70
    %v138 = vpop.f32.mrf.mxu0
    %v139 = vadd.f32 %v67, %v138
    %v140 = vpop.f32.mrf.mxu0
    %141 = vdwg.mxu0
    %v142 = vlaneseq
    %v143 = vshrl.u32 %v142, 7
    %v144 = vsub.s32 1, %v143
    %v145 = vrot.slane %v59, %v144
    %v147 = vsel %vm68, 0.0, 0
    %149 = vmatprep.subr.mxu0 0.0
    %150 = vmatpush1.msra.mxu0 0.0
    %151 = vmatprep.subr.mxu0 0.0
    %152 = vmatpush1.msra.mxu0 0.0
    %153 = vmatprep.subr.mxu0 0.0
    %154 = vmatpush1.msra.mxu0 0.0
    %155 = vmatprep.subr.mxu0 0.0
    %156 = vmatpush1.msra.mxu0 0.0
    %157 = vmatprep.subr.mxu0 0.0
    %158 = vmatpush1.msra.mxu0 0.0
    %159 = vmatprep.subr.mxu0 0.0
    %160 = vmatpush1.msra.mxu0 0.0
    %161 = vmatprep.subr.mxu0 0.0
    %162 = vmatpush1.msra.mxu0 0.0
    %163 = vmatprep.subr.mxu0 0.0
    %164 = vmatpush1.msra.mxu0 0.0
    %165 = vmatprep.subr.mxu0 0.0
    %166 = vmatpush1.msra.mxu0 0.0
    %167 = vmatprep.subr.mxu0 0.0
    %168 = vmatpush1.msra.mxu0 0.0
    %169 = vmatprep.subr.mxu0 0.0
    %170 = vmatpush1.msra.mxu0 0.0
    %171 = vmatprep.subr.mxu0 0.0
    %172 = vmatpush1.msra.mxu0 0.0
    %173 = vmatprep.subr.mxu0 0.0
    %174 = vmatpush1.msra.mxu0 %v53
    %175 = vmatprep.subr.mxu0 0.0
    %176 = vmatpush1.msra.mxu0 %v52
    %177 = vmatprep.subr.mxu0 0.0
    %178 = vmatpush1.msra.mxu0 %v51
    %179 = vmatprep.subr.mxu0 0.0
    %180 = vmatpush1.msra.mxu0 %v50
    %181 = vmatprep.subr.mxu0 0.0
    %182 = vmatpush2.msra.mxu0 0.0
    %183 = vmatprep.subr.mxu0 0.0
    %184 = vmatpush2.msra.mxu0 0.0
    %185 = vmatprep.subr.mxu0 0.0
    %186 = vmatpush2.msra.mxu0 0.0
    %187 = vmatprep.subr.mxu0 0.0
    %188 = vmatpush2.msra.mxu0 0.0
    %189 = vmatprep.subr.mxu0 0.0
    %190 = vmatpush2.msra.mxu0 0.0
    %191 = vmatprep.subr.mxu0 0.0
    %192 = vmatpush2.msra.mxu0 0.0
    %193 = vmatprep.subr.mxu0 0.0
    %194 = vmatpush2.msra.mxu0 0.0
    %195 = vmatprep.subr.mxu0 0.0
    %196 = vmatpush2.msra.mxu0 0.0
    %197 = vmatprep.subr.mxu0 0.0
    %198 = vmatpush2.msra.mxu0 0.0
    %199 = vmatprep.subr.mxu0 0.0
    %200 = vmatpush2.msra.mxu0 0.0
    %201 = vmatprep.subr.mxu0 0.0
    %202 = vmatpush2.msra.mxu0 0.0
    %203 = vmatprep.subr.mxu0 0.0
    %204 = vmatpush2.msra.mxu0 0.0
    %205 = vmatprep.subr.mxu0 0.0
    %206 = vmatpush2.msra.mxu0 0.0
    %207 = vmatprep.subr.mxu0 0.0
    %208 = vmatpush2.msra.mxu0 0.0
    %209 = vmatprep.subr.mxu0 0.0
    %210 = vmatpush2.msra.mxu0 0.0
    %211 = vmatprep.subr.mxu0 0.0
    %212 = vmatpush2.msra.mxu0 0.0
    %213 = vmatprep.mubr.f32.mxu0 0.0
    %214 = vmatmul.mubr.f32.gmra.mxu0 %v147
    %v215 = vpop.f32.mrf.mxu0
    %v216 = vadd.f32 %v145, %v215
    %v217 = vpop.f32.mrf.mxu0
    %218 = vdwg.mxu0
    %v219 = vadd.f32 %v139, %v216
    %v220 = vsub.f32 0.0, %v219
    %v221 = vmul.f32 %v220, 1.442695
    %v222 = vpow.pop %v221
    %v223 = vadd.f32 %v222, 1.0
    %v224 = vrcp.pop %v223
    %v225 = vmul.f32 1.0, %v224
    %227 = vrot.lane.b32.xlu0 %v216, 64
    %v228 = vpop.permute.xlu0 %227
    %v230 = vmul.f32 %v225, %v228
    %232 = vrot.lane.b32.xlu0 %v230, 64
    %v233 = vpop.permute.xlu0 %232
    %v235 = vadd.f32 %v139, %v233
    %v236 = vtanh.pop %v235
    %v237 = vsub.f32 1.0, %v225
    %239 = vrot.lane.b32.xlu0 %v236, 96
    %v240 = vpop.permute.xlu0 %239
    %v242 = vmul.f32 %v237, %v240
    %v243 = vmul.f32 %v225, 0.0
    %v244 = vadd.f32 %v242, %v243
    %v245 = vsel %vm63, 1, 0
    %246 = vset.pattern.permute.xlu0 0
    %247 = vperm.xlu0 %246, %v245
    %v248 = vpop.permute.xlu0 %247
    %vm249 = vcmp.eq.s32.totalorder %v248, 1
    %v250 = vsel %vm249, %v244, 0.0
    %v251 = vlaneseq
    %v252 = vshrl.u32 %v251, 7
    %v253 = vsub.s32 0, %v252
    %v254 = vrot.slane %v61, %v253
    %256 = vrot.lane.b32.xlu0 %v250, 96
    %v257 = vpop.permute.xlu0 %256
    %v258 = vsel %vm68, %v257, 0
    %260 = vmatprep.subr.mxu0 0.0
    %261 = vmatpush1.msra.mxu0 0.0
    %262 = vmatprep.subr.mxu0 0.0
    %263 = vmatpush1.msra.mxu0 0.0
    %264 = vmatprep.subr.mxu0 0.0
    %265 = vmatpush1.msra.mxu0 0.0
    %266 = vmatprep.subr.mxu0 0.0
    %267 = vmatpush1.msra.mxu0 0.0
    %268 = vmatprep.subr.mxu0 0.0
    %269 = vmatpush1.msra.mxu0 0.0
    %270 = vmatprep.subr.mxu0 0.0
    %271 = vmatpush1.msra.mxu0 0.0
    %272 = vmatprep.subr.mxu0 0.0
    %273 = vmatpush1.msra.mxu0 0.0
    %274 = vmatprep.subr.mxu0 0.0
    %275 = vmatpush1.msra.mxu0 0.0
    %276 = vmatprep.subr.mxu0 0.0
    %277 = vmatpush1.msra.mxu0 0.0
    %278 = vmatprep.subr.mxu0 0.0
    %279 = vmatpush1.msra.mxu0 0.0
    %280 = vmatprep.subr.mxu0 0.0
    %281 = vmatpush1.msra.mxu0 0.0
    %282 = vmatprep.subr.mxu0 0.0
    %283 = vmatpush1.msra.mxu0 0.0
    %284 = vmatprep.subr.mxu0 0.0
    %285 = vmatpush1.msra.mxu0 %v49
    %286 = vmatprep.subr.mxu0 0.0
    %287 = vmatpush1.msra.mxu0 %v48
    %288 = vmatprep.subr.mxu0 0.0
    %289 = vmatpush1.msra.mxu0 %v47
    %290 = vmatprep.subr.mxu0 0.0
    %291 = vmatpush1.msra.mxu0 %v46
    %292 = vmatprep.subr.mxu0 0.0
    %293 = vmatpush2.msra.mxu0 0.0
    %294 = vmatprep.subr.mxu0 0.0
    %295 = vmatpush2.msra.mxu0 0.0
    %296 = vmatprep.subr.mxu0 0.0
    %297 = vmatpush2.msra.mxu0 0.0
    %298 = vmatprep.subr.mxu0 0.0
    %299 = vmatpush2.msra.mxu0 0.0
    %300 = vmatprep.subr.mxu0 0.0
    %301 = vmatpush2.msra.mxu0 0.0
    %302 = vmatprep.subr.mxu0 0.0
    %303 = vmatpush2.msra.mxu0 0.0
    %304 = vmatprep.subr.mxu0 0.0
    %305 = vmatpush2.msra.mxu0 0.0
    %306 = vmatprep.subr.mxu0 0.0
    %307 = vmatpush2.msra.mxu0 0.0
    %308 = vmatprep.subr.mxu0 0.0
    %309 = vmatpush2.msra.mxu0 0.0
    %310 = vmatprep.subr.mxu0 0.0
    %311 = vmatpush2.msra.mxu0 0.0
    %312 = vmatprep.subr.mxu0 0.0
    %313 = vmatpush2.msra.mxu0 0.0
    %314 = vmatprep.subr.mxu0 0.0
    %315 = vmatpush2.msra.mxu0 0.0
    %316 = vmatprep.subr.mxu0 0.0
    %317 = vmatpush2.msra.mxu0 0.0
    %318 = vmatprep.subr.mxu0 0.0
    %319 = vmatpush2.msra.mxu0 0.0
    %320 = vmatprep.subr.mxu0 0.0
    %321 = vmatpush2.msra.mxu0 0.0
    %322 = vmatprep.subr.mxu0 0.0
    %323 = vmatpush2.msra.mxu0 0.0
    %324 = vmatprep.mubr.f32.mxu0 0.0
    %325 = vmatmul.mubr.f32.gmra.mxu0 %v258
    %v326 = vpop.f32.mrf.mxu0
    %v327 = vadd.f32 %v254, %v326
    %v328 = vpop.f32.mrf.mxu0
    %329 = vdwg.mxu0
    %v330 = vlaneseq
    %v331 = vshrl.u32 %v330, 7
    %v332 = vsub.s32 1, %v331
    %v333 = vrot.slane %v61, %v332
    %334 = vmatprep.subr.mxu0 0.0
    %335 = vmatpush1.msra.mxu0 0.0
    %336 = vmatprep.subr.mxu0 0.0
    %337 = vmatpush1.msra.mxu0 0.0
    %338 = vmatprep.subr.mxu0 0.0
    %339 = vmatpush1.msra.mxu0 0.0
    %340 = vmatprep.subr.mxu0 0.0
    %341 = vmatpush1.msra.mxu0 0.0
    %342 = vmatprep.subr.mxu0 0.0
    %343 = vmatpush1.msra.mxu0 0.0
    %344 = vmatprep.subr.mxu0 0.0
    %345 = vmatpush1.msra.mxu0 0.0
    %346 = vmatprep.subr.mxu0 0.0
    %347 = vmatpush1.msra.mxu0 0.0
    %348 = vmatprep.subr.mxu0 0.0
    %349 = vmatpush1.msra.mxu0 0.0
    %350 = vmatprep.subr.mxu0 0.0
    %351 = vmatpush1.msra.mxu0 0.0
    %352 = vmatprep.subr.mxu0 0.0
    %353 = vmatpush1.msra.mxu0 0.0
    %354 = vmatprep.subr.mxu0 0.0
    %355 = vmatpush1.msra.mxu0 0.0
    %356 = vmatprep.subr.mxu0 0.0
    %357 = vmatpush1.msra.mxu0 0.0
    %358 = vmatprep.subr.mxu0 0.0
    %359 = vmatpush1.msra.mxu0 %v58
    %360 = vmatprep.subr.mxu0 0.0
    %361 = vmatpush1.msra.mxu0 %v57
    %362 = vmatprep.subr.mxu0 0.0
    %363 = vmatpush1.msra.mxu0 %v56
    %364 = vmatprep.subr.mxu0 0.0
    %365 = vmatpush1.msra.mxu0 %v55
    %366 = vmatprep.subr.mxu0 0.0
    %367 = vmatpush2.msra.mxu0 0.0
    %368 = vmatprep.subr.mxu0 0.0
    %369 = vmatpush2.msra.mxu0 0.0
    %370 = vmatprep.subr.mxu0 0.0
    %371 = vmatpush2.msra.mxu0 0.0
    %372 = vmatprep.subr.mxu0 0.0
    %373 = vmatpush2.msra.mxu0 0.0
    %374 = vmatprep.subr.mxu0 0.0
    %375 = vmatpush2.msra.mxu0 0.0
    %376 = vmatprep.subr.mxu0 0.0
    %377 = vmatpush2.msra.mxu0 0.0
    %378 = vmatprep.subr.mxu0 0.0
    %379 = vmatpush2.msra.mxu0 0.0
    %380 = vmatprep.subr.mxu0 0.0
    %381 = vmatpush2.msra.mxu0 0.0
    %382 = vmatprep.subr.mxu0 0.0
    %383 = vmatpush2.msra.mxu0 0.0
    %384 = vmatprep.subr.mxu0 0.0
    %385 = vmatpush2.msra.mxu0 0.0
    %386 = vmatprep.subr.mxu0 0.0
    %387 = vmatpush2.msra.mxu0 0.0
    %388 = vmatprep.subr.mxu0 0.0
    %389 = vmatpush2.msra.mxu0 0.0
    %390 = vmatprep.subr.mxu0 0.0
    %391 = vmatpush2.msra.mxu0 0.0
    %392 = vmatprep.subr.mxu0 0.0
    %393 = vmatpush2.msra.mxu0 0.0
    %394 = vmatprep.subr.mxu0 0.0
    %395 = vmatpush2.msra.mxu0 0.0
    %396 = vmatprep.subr.mxu0 0.0
    %397 = vmatpush2.msra.mxu0 0.0
    %398 = vmatprep.mubr.f32.mxu0 0.0
    %399 = vmatmul.mubr.f32.gmra.mxu0 %v147
    %v400 = vpop.f32.mrf.mxu0
    %v401 = vadd.f32 %v333, %v400
    %v402 = vpop.f32.mrf.mxu0
    %403 = vdwg.mxu0
    %v404 = vadd.f32 %v327, %v401
    %v405 = vsub.f32 0.0, %v404
    %v406 = vmul.f32 %v405, 1.442695
    %v407 = vpow.pop %v406
    %v408 = vadd.f32 %v407, 1.0
    %v409 = vrcp.pop %v408
    %v410 = vmul.f32 1.0, %v409
    %412 = vrot.lane.b32.xlu0 %v401, 64
    %v413 = vpop.permute.xlu0 %412
    %v415 = vmul.f32 %v410, %v413
    %417 = vrot.lane.b32.xlu0 %v415, 64
    %v418 = vpop.permute.xlu0 %417
    %v420 = vadd.f32 %v327, %v418
    %v421 = vtanh.pop %v420
    %v422 = vsub.f32 1.0, %v410
    %424 = vrot.lane.b32.xlu0 %v421, 96
    %v425 = vpop.permute.xlu0 %424
    %v427 = vmul.f32 %v422, %v425
    %v428 = vmul.f32 %v410, 0.0
    %v429 = vadd.f32 %v427, %v428
    %v430 = vsel %vm249, %v429, 0.0
    %s431 = scalar_lea.vmem %s1, 8
    %v432 = vld [vmem:[%s431] sm:$0xff]
    %vm433 = vcmp.gt.s32.totalorder %v40, 1
    %v435 = vsel %vm68, %v432, 0
    %437 = vmatprep.subr.mxu0 0.0
    %438 = vmatpush1.msra.mxu0 0.0
    %439 = vmatprep.subr.mxu0 0.0
    %440 = vmatpush1.msra.mxu0 0.0
    %441 = vmatprep.subr.mxu0 0.0
    %442 = vmatpush1.msra.mxu0 0.0
    %443 = vmatprep.subr.mxu0 0.0
    %444 = vmatpush1.msra.mxu0 0.0
    %445 = vmatprep.subr.mxu0 0.0
    %446 = vmatpush1.msra.mxu0 0.0
    %447 = vmatprep.subr.mxu0 0.0
    %448 = vmatpush1.msra.mxu0 0.0
    %449 = vmatprep.subr.mxu0 0.0
    %450 = vmatpush1.msra.mxu0 0.0
    %451 = vmatprep.subr.mxu0 0.0
    %452 = vmatpush1.msra.mxu0 0.0
    %453 = vmatprep.subr.mxu0 0.0
    %454 = vmatpush1.msra.mxu0 0.0
    %455 = vmatprep.subr.mxu0 0.0
    %456 = vmatpush1.msra.mxu0 0.0
    %457 = vmatprep.subr.mxu0 0.0
    %458 = vmatpush1.msra.mxu0 0.0
    %459 = vmatprep.subr.mxu0 0.0
    %460 = vmatpush1.msra.mxu0 0.0
    %461 = vmatprep.subr.mxu0 0.0
    %462 = vmatpush1.msra.mxu0 %v44
    %463 = vmatprep.subr.mxu0 0.0
    %464 = vmatpush1.msra.mxu0 %v43
    %465 = vmatprep.subr.mxu0 0.0
    %466 = vmatpush1.msra.mxu0 %v42
    %467 = vmatprep.subr.mxu0 0.0
    %468 = vmatpush1.msra.mxu0 %v41
    %469 = vmatprep.subr.mxu0 0.0
    %470 = vmatpush2.msra.mxu0 0.0
    %471 = vmatprep.subr.mxu0 0.0
    %472 = vmatpush2.msra.mxu0 0.0
    %473 = vmatprep.subr.mxu0 0.0
    %474 = vmatpush2.msra.mxu0 0.0
    %475 = vmatprep.subr.mxu0 0.0
    %476 = vmatpush2.msra.mxu0 0.0
    %477 = vmatprep.subr.mxu0 0.0
    %478 = vmatpush2.msra.mxu0 0.0
    %479 = vmatprep.subr.mxu0 0.0
    %480 = vmatpush2.msra.mxu0 0.0
    %481 = vmatprep.subr.mxu0 0.0
    %482 = vmatpush2.msra.mxu0 0.0
    %483 = vmatprep.subr.mxu0 0.0
    %484 = vmatpush2.msra.mxu0 0.0
    %485 = vmatprep.subr.mxu0 0.0
    %486 = vmatpush2.msra.mxu0 0.0
    %487 = vmatprep.subr.mxu0 0.0
    %488 = vmatpush2.msra.mxu0 0.0
    %489 = vmatprep.subr.mxu0 0.0
    %490 = vmatpush2.msra.mxu0 0.0
    %491 = vmatprep.subr.mxu0 0.0
    %492 = vmatpush2.msra.mxu0 0.0
    %493 = vmatprep.subr.mxu0 0.0
    %494 = vmatpush2.msra.mxu0 0.0
    %495 = vmatprep.subr.mxu0 0.0
    %496 = vmatpush2.msra.mxu0 0.0
    %497 = vmatprep.subr.mxu0 0.0
    %498 = vmatpush2.msra.mxu0 0.0
    %499 = vmatprep.subr.mxu0 0.0
    %500 = vmatpush2.msra.mxu0 0.0
    %501 = vmatprep.mubr.f32.mxu0 0.0
    %502 = vmatmul.mubr.f32.gmra.mxu0 %v435
    %v503 = vpop.f32.mrf.mxu0
    %v504 = vadd.f32 %v67, %v503
    %v505 = vpop.f32.mrf.mxu0
    %506 = vdwg.mxu0
    %507 = vmatprep.subr.mxu0 0.0
    %508 = vmatpush1.msra.mxu0 0.0
    %509 = vmatprep.subr.mxu0 0.0
    %510 = vmatpush1.msra.mxu0 0.0
    %511 = vmatprep.subr.mxu0 0.0
    %512 = vmatpush1.msra.mxu0 0.0
    %513 = vmatprep.subr.mxu0 0.0
    %514 = vmatpush1.msra.mxu0 0.0
    %515 = vmatprep.subr.mxu0 0.0
    %516 = vmatpush1.msra.mxu0 0.0
    %517 = vmatprep.subr.mxu0 0.0
    %518 = vmatpush1.msra.mxu0 0.0
    %519 = vmatprep.subr.mxu0 0.0
    %520 = vmatpush1.msra.mxu0 0.0
    %521 = vmatprep.subr.mxu0 0.0
    %522 = vmatpush1.msra.mxu0 0.0
    %523 = vmatprep.subr.mxu0 0.0
    %524 = vmatpush1.msra.mxu0 0.0
    %525 = vmatprep.subr.mxu0 0.0
    %526 = vmatpush1.msra.mxu0 0.0
    %527 = vmatprep.subr.mxu0 0.0
    %528 = vmatpush1.msra.mxu0 0.0
    %529 = vmatprep.subr.mxu0 0.0
    %530 = vmatpush1.msra.mxu0 0.0
    %531 = vmatprep.subr.mxu0 0.0
    %532 = vmatpush1.msra.mxu0 %v53
    %533 = vmatprep.subr.mxu0 0.0
    %534 = vmatpush1.msra.mxu0 %v52
    %535 = vmatprep.subr.mxu0 0.0
    %536 = vmatpush1.msra.mxu0 %v51
    %537 = vmatprep.subr.mxu0 0.0
    %538 = vmatpush1.msra.mxu0 %v50
    %539 = vmatprep.subr.mxu0 0.0
    %540 = vmatpush2.msra.mxu0 0.0
    %541 = vmatprep.subr.mxu0 0.0
    %542 = vmatpush2.msra.mxu0 0.0
    %543 = vmatprep.subr.mxu0 0.0
    %544 = vmatpush2.msra.mxu0 0.0
    %545 = vmatprep.subr.mxu0 0.0
    %546 = vmatpush2.msra.mxu0 0.0
    %547 = vmatprep.subr.mxu0 0.0
    %548 = vmatpush2.msra.mxu0 0.0
    %549 = vmatprep.subr.mxu0 0.0
    %550 = vmatpush2.msra.mxu0 0.0
    %551 = vmatprep.subr.mxu0 0.0
    %552 = vmatpush2.msra.mxu0 0.0
    %553 = vmatprep.subr.mxu0 0.0
    %554 = vmatpush2.msra.mxu0 0.0
    %555 = vmatprep.subr.mxu0 0.0
    %556 = vmatpush2.msra.mxu0 0.0
    %557 = vmatprep.subr.mxu0 0.0
    %558 = vmatpush2.msra.mxu0 0.0
    %559 = vmatprep.subr.mxu0 0.0
    %560 = vmatpush2.msra.mxu0 0.0
    %561 = vmatprep.subr.mxu0 0.0
    %562 = vmatpush2.msra.mxu0 0.0
    %563 = vmatprep.subr.mxu0 0.0
    %564 = vmatpush2.msra.mxu0 0.0
    %565 = vmatprep.subr.mxu0 0.0
    %566 = vmatpush2.msra.mxu0 0.0
    %567 = vmatprep.subr.mxu0 0.0
    %568 = vmatpush2.msra.mxu0 0.0
    %569 = vmatprep.subr.mxu0 0.0
    %570 = vmatpush2.msra.mxu0 0.0
    %571 = vmatprep.mubr.f32.mxu0 0.0
    %572 = vmatmul.mubr.f32.gmra.mxu0 %v258
    %v573 = vpop.f32.mrf.mxu0
    %v574 = vadd.f32 %v145, %v573
    %v575 = vpop.f32.mrf.mxu0
    %576 = vdwg.mxu0
    %v577 = vadd.f32 %v504, %v574
    %v578 = vsub.f32 0.0, %v577
    %v579 = vmul.f32 %v578, 1.442695
    %v580 = vpow.pop %v579
    %v581 = vadd.f32 %v580, 1.0
    %v582 = vrcp.pop %v581
    %v583 = vmul.f32 1.0, %v582
    %585 = vrot.lane.b32.xlu0 %v574, 64
    %v586 = vpop.permute.xlu0 %585
    %v588 = vmul.f32 %v583, %v586
    %590 = vrot.lane.b32.xlu0 %v588, 64
    %v591 = vpop.permute.xlu0 %590
    %v593 = vadd.f32 %v504, %v591
    %v594 = vtanh.pop %v593
    %v595 = vsub.f32 1.0, %v583
    %597 = vrot.lane.b32.xlu0 %v594, 96
    %v598 = vpop.permute.xlu0 %597
    %v600 = vmul.f32 %v595, %v598
    %v601 = vmul.f32 %v583, %v250
    %v602 = vadd.f32 %v600, %v601
    %v603 = vsel %vm433, 1, 0
    %604 = vset.pattern.permute.xlu0 0
    %605 = vperm.xlu0 %604, %v603
    %v606 = vpop.permute.xlu0 %605
    %vm607 = vcmp.eq.s32.totalorder %v606, 1
    %v608 = vsel %vm607, %v602, %v250
    %610 = vrot.lane.b32.xlu0 %v608, 96
    %v611 = vpop.permute.xlu0 %610
    %v612 = vsel %vm68, %v611, 0
    %614 = vmatprep.subr.mxu0 0.0
    %615 = vmatpush1.msra.mxu0 0.0
    %616 = vmatprep.subr.mxu0 0.0
    %617 = vmatpush1.msra.mxu0 0.0
    %618 = vmatprep.subr.mxu0 0.0
    %619 = vmatpush1.msra.mxu0 0.0
    %620 = vmatprep.subr.mxu0 0.0
    %621 = vmatpush1.msra.mxu0 0.0
    %622 = vmatprep.subr.mxu0 0.0
    %623 = vmatpush1.msra.mxu0 0.0
    %624 = vmatprep.subr.mxu0 0.0
    %625 = vmatpush1.msra.mxu0 0.0
    %626 = vmatprep.subr.mxu0 0.0
    %627 = vmatpush1.msra.mxu0 0.0
    %628 = vmatprep.subr.mxu0 0.0
    %629 = vmatpush1.msra.mxu0 0.0
    %630 = vmatprep.subr.mxu0 0.0
    %631 = vmatpush1.msra.mxu0 0.0
    %632 = vmatprep.subr.mxu0 0.0
    %633 = vmatpush1.msra.mxu0 0.0
    %634 = vmatprep.subr.mxu0 0.0
    %635 = vmatpush1.msra.mxu0 0.0
    %636 = vmatprep.subr.mxu0 0.0
    %637 = vmatpush1.msra.mxu0 0.0
    %638 = vmatprep.subr.mxu0 0.0
    %639 = vmatpush1.msra.mxu0 %v49
    %640 = vmatprep.subr.mxu0 0.0
    %641 = vmatpush1.msra.mxu0 %v48
    %642 = vmatprep.subr.mxu0 0.0
    %643 = vmatpush1.msra.mxu0 %v47
    %644 = vmatprep.subr.mxu0 0.0
    %645 = vmatpush1.msra.mxu0 %v46
    %646 = vmatprep.subr.mxu0 0.0
    %647 = vmatpush2.msra.mxu0 0.0
    %648 = vmatprep.subr.mxu0 0.0
    %649 = vmatpush2.msra.mxu0 0.0
    %650 = vmatprep.subr.mxu0 0.0
    %651 = vmatpush2.msra.mxu0 0.0
    %652 = vmatprep.subr.mxu0 0.0
    %653 = vmatpush2.msra.mxu0 0.0
    %654 = vmatprep.subr.mxu0 0.0
    %655 = vmatpush2.msra.mxu0 0.0
    %656 = vmatprep.subr.mxu0 0.0
    %657 = vmatpush2.msra.mxu0 0.0
    %658 = vmatprep.subr.mxu0 0.0
    %659 = vmatpush2.msra.mxu0 0.0
    %660 = vmatprep.subr.mxu0 0.0
    %661 = vmatpush2.msra.mxu0 0.0
    %662 = vmatprep.subr.mxu0 0.0
    %663 = vmatpush2.msra.mxu0 0.0
    %664 = vmatprep.subr.mxu0 0.0
    %665 = vmatpush2.msra.mxu0 0.0
    %666 = vmatprep.subr.mxu0 0.0
    %667 = vmatpush2.msra.mxu0 0.0
    %668 = vmatprep.subr.mxu0 0.0
    %669 = vmatpush2.msra.mxu0 0.0
    %670 = vmatprep.subr.mxu0 0.0
    %671 = vmatpush2.msra.mxu0 0.0
    %672 = vmatprep.subr.mxu0 0.0
    %673 = vmatpush2.msra.mxu0 0.0
    %674 = vmatprep.subr.mxu0 0.0
    %675 = vmatpush2.msra.mxu0 0.0
    %676 = vmatprep.subr.mxu0 0.0
    %677 = vmatpush2.msra.mxu0 0.0
    %678 = vmatprep.mubr.f32.mxu0 0.0
    %679 = vmatmul.mubr.f32.gmra.mxu0 %v612
    %v680 = vpop.f32.mrf.mxu0
    %v681 = vadd.f32 %v254, %v680
    %v682 = vpop.f32.mrf.mxu0
    %683 = vdwg.mxu0
    %685 = vrot.lane.b32.xlu0 %v430, 96
    %v686 = vpop.permute.xlu0 %685
    %v687 = vsel %vm68, %v686, 0
    %689 = vmatprep.subr.mxu0 0.0
    %690 = vmatpush1.msra.mxu0 0.0
    %691 = vmatprep.subr.mxu0 0.0
    %692 = vmatpush1.msra.mxu0 0.0
    %693 = vmatprep.subr.mxu0 0.0
    %694 = vmatpush1.msra.mxu0 0.0
    %695 = vmatprep.subr.mxu0 0.0
    %696 = vmatpush1.msra.mxu0 0.0
    %697 = vmatprep.subr.mxu0 0.0
    %698 = vmatpush1.msra.mxu0 0.0
    %699 = vmatprep.subr.mxu0 0.0
    %700 = vmatpush1.msra.mxu0 0.0
    %701 = vmatprep.subr.mxu0 0.0
    %702 = vmatpush1.msra.mxu0 0.0
    %703 = vmatprep.subr.mxu0 0.0
    %704 = vmatpush1.msra.mxu0 0.0
    %705 = vmatprep.subr.mxu0 0.0
    %706 = vmatpush1.msra.mxu0 0.0
    %707 = vmatprep.subr.mxu0 0.0
    %708 = vmatpush1.msra.mxu0 0.0
    %709 = vmatprep.subr.mxu0 0.0
    %710 = vmatpush1.msra.mxu0 0.0
    %711 = vmatprep.subr.mxu0 0.0
    %712 = vmatpush1.msra.mxu0 0.0
    %713 = vmatprep.subr.mxu0 0.0
    %714 = vmatpush1.msra.mxu0 %v58
    %715 = vmatprep.subr.mxu0 0.0
    %716 = vmatpush1.msra.mxu0 %v57
    %717 = vmatprep.subr.mxu0 0.0
    %718 = vmatpush1.msra.mxu0 %v56
    %719 = vmatprep.subr.mxu0 0.0
    %720 = vmatpush1.msra.mxu0 %v55
    %721 = vmatprep.subr.mxu0 0.0
    %722 = vmatpush2.msra.mxu0 0.0
    %723 = vmatprep.subr.mxu0 0.0
    %724 = vmatpush2.msra.mxu0 0.0
    %725 = vmatprep.subr.mxu0 0.0
    %726 = vmatpush2.msra.mxu0 0.0
    %727 = vmatprep.subr.mxu0 0.0
    %728 = vmatpush2.msra.mxu0 0.0
    %729 = vmatprep.subr.mxu0 0.0
    %730 = vmatpush2.msra.mxu0 0.0
    %731 = vmatprep.subr.mxu0 0.0
    %732 = vmatpush2.msra.mxu0 0.0
    %733 = vmatprep.subr.mxu0 0.0
    %734 = vmatpush2.msra.mxu0 0.0
    %735 = vmatprep.subr.mxu0 0.0
    %736 = vmatpush2.msra.mxu0 0.0
    %737 = vmatprep.subr.mxu0 0.0
    %738 = vmatpush2.msra.mxu0 0.0
    %739 = vmatprep.subr.mxu0 0.0
    %740 = vmatpush2.msra.mxu0 0.0
    %741 = vmatprep.subr.mxu0 0.0
    %742 = vmatpush2.msra.mxu0 0.0
    %743 = vmatprep.subr.mxu0 0.0
    %744 = vmatpush2.msra.mxu0 0.0
    %745 = vmatprep.subr.mxu0 0.0
    %746 = vmatpush2.msra.mxu0 0.0
    %747 = vmatprep.subr.mxu0 0.0
    %748 = vmatpush2.msra.mxu0 0.0
    %749 = vmatprep.subr.mxu0 0.0
    %750 = vmatpush2.msra.mxu0 0.0
    %751 = vmatprep.subr.mxu0 0.0
    %752 = vmatpush2.msra.mxu0 0.0
    %753 = vmatprep.mubr.f32.mxu0 0.0
    %754 = vmatmul.mubr.f32.gmra.mxu0 %v687
    %v755 = vpop.f32.mrf.mxu0
    %v756 = vadd.f32 %v333, %v755
    %v757 = vpop.f32.mrf.mxu0
    %758 = vdwg.mxu0
    %v759 = vadd.f32 %v681, %v756
    %v760 = vsub.f32 0.0, %v759
    %v761 = vmul.f32 %v760, 1.442695
    %v762 = vpow.pop %v761
    %v763 = vadd.f32 %v762, 1.0
    %v764 = vrcp.pop %v763
    %v765 = vmul.f32 1.0, %v764
    %767 = vrot.lane.b32.xlu0 %v756, 64
    %v768 = vpop.permute.xlu0 %767
    %v770 = vmul.f32 %v765, %v768
    %772 = vrot.lane.b32.xlu0 %v770, 64
    %v773 = vpop.permute.xlu0 %772
    %v775 = vadd.f32 %v681, %v773
    %v776 = vtanh.pop %v775
    %v777 = vsub.f32 1.0, %v765
    %779 = vrot.lane.b32.xlu0 %v776, 96
    %v780 = vpop.permute.xlu0 %779
    %v782 = vmul.f32 %v777, %v780
    %v783 = vmul.f32 %v765, %v430
    %v784 = vadd.f32 %v782, %v783
    %v785 = vsel %vm607, %v784, %v430
    %s786 = scalar_lea.vmem %s1, 16
    %v787 = vld [vmem:[%s786] sm:$0xff]
    %vm788 = vcmp.gt.s32.totalorder %v40, 2
    %v790 = vsel %vm68, %v787, 0
    %792 = vmatprep.subr.mxu0 0.0
    %793 = vmatpush1.msra.mxu0 0.0
    %794 = vmatprep.subr.mxu0 0.0
    %795 = vmatpush1.msra.mxu0 0.0
    %796 = vmatprep.subr.mxu0 0.0
    %797 = vmatpush1.msra.mxu0 0.0
    %798 = vmatprep.subr.mxu0 0.0
    %799 = vmatpush1.msra.mxu0 0.0
    %800 = vmatprep.subr.mxu0 0.0
    %801 = vmatpush1.msra.mxu0 0.0
    %802 = vmatprep.subr.mxu0 0.0
    %803 = vmatpush1.msra.mxu0 0.0
    %804 = vmatprep.subr.mxu0 0.0
    %805 = vmatpush1.msra.mxu0 0.0
    %806 = vmatprep.subr.mxu0 0.0
    %807 = vmatpush1.msra.mxu0 0.0
    %808 = vmatprep.subr.mxu0 0.0
    %809 = vmatpush1.msra.mxu0 0.0
    %810 = vmatprep.subr.mxu0 0.0
    %811 = vmatpush1.msra.mxu0 0.0
    %812 = vmatprep.subr.mxu0 0.0
    %813 = vmatpush1.msra.mxu0 0.0
    %814 = vmatprep.subr.mxu0 0.0
    %815 = vmatpush1.msra.mxu0 0.0
    %816 = vmatprep.subr.mxu0 0.0
    %817 = vmatpush1.msra.mxu0 %v44
    %818 = vmatprep.subr.mxu0 0.0
    %819 = vmatpush1.msra.mxu0 %v43
    %820 = vmatprep.subr.mxu0 0.0
    %821 = vmatpush1.msra.mxu0 %v42
    %822 = vmatprep.subr.mxu0 0.0
    %823 = vmatpush1.msra.mxu0 %v41
    %824 = vmatprep.subr.mxu0 0.0
    %825 = vmatpush2.msra.mxu0 0.0
    %826 = vmatprep.subr.mxu0 0.0
    %827 = vmatpush2.msra.mxu0 0.0
    %828 = vmatprep.subr.mxu0 0.0
    %829 = vmatpush2.msra.mxu0 0.0
    %830 = vmatprep.subr.mxu0 0.0
    %831 = vmatpush2.msra.mxu0 0.0
    %832 = vmatprep.subr.mxu0 0.0
    %833 = vmatpush2.msra.mxu0 0.0
    %834 = vmatprep.subr.mxu0 0.0
    %835 = vmatpush2.msra.mxu0 0.0
    %836 = vmatprep.subr.mxu0 0.0
    %837 = vmatpush2.msra.mxu0 0.0
    %838 = vmatprep.subr.mxu0 0.0
    %839 = vmatpush2.msra.mxu0 0.0
    %840 = vmatprep.subr.mxu0 0.0
    %841 = vmatpush2.msra.mxu0 0.0
    %842 = vmatprep.subr.mxu0 0.0
    %843 = vmatpush2.msra.mxu0 0.0
    %844 = vmatprep.subr.mxu0 0.0
    %845 = vmatpush2.msra.mxu0 0.0
    %846 = vmatprep.subr.mxu0 0.0
    %847 = vmatpush2.msra.mxu0 0.0
    %848 = vmatprep.subr.mxu0 0.0
    %849 = vmatpush2.msra.mxu0 0.0
    %850 = vmatprep.subr.mxu0 0.0
    %851 = vmatpush2.msra.mxu0 0.0
    %852 = vmatprep.subr.mxu0 0.0
    %853 = vmatpush2.msra.mxu0 0.0
    %854 = vmatprep.subr.mxu0 0.0
    %855 = vmatpush2.msra.mxu0 0.0
    %856 = vmatprep.mubr.f32.mxu0 0.0
    %857 = vmatmul.mubr.f32.gmra.mxu0 %v790
    %v858 = vpop.f32.mrf.mxu0
    %v859 = vadd.f32 %v67, %v858
    %v860 = vpop.f32.mrf.mxu0
    %861 = vdwg.mxu0
    %862 = vmatprep.subr.mxu0 0.0
    %863 = vmatpush1.msra.mxu0 0.0
    %864 = vmatprep.subr.mxu0 0.0
    %865 = vmatpush1.msra.mxu0 0.0
    %866 = vmatprep.subr.mxu0 0.0
    %867 = vmatpush1.msra.mxu0 0.0
    %868 = vmatprep.subr.mxu0 0.0
    %869 = vmatpush1.msra.mxu0 0.0
    %870 = vmatprep.subr.mxu0 0.0
    %871 = vmatpush1.msra.mxu0 0.0
    %872 = vmatprep.subr.mxu0 0.0
    %873 = vmatpush1.msra.mxu0 0.0
    %874 = vmatprep.subr.mxu0 0.0
    %875 = vmatpush1.msra.mxu0 0.0
    %876 = vmatprep.subr.mxu0 0.0
    %877 = vmatpush1.msra.mxu0 0.0
    %878 = vmatprep.subr.mxu0 0.0
    %879 = vmatpush1.msra.mxu0 0.0
    %880 = vmatprep.subr.mxu0 0.0
    %881 = vmatpush1.msra.mxu0 0.0
    %882 = vmatprep.subr.mxu0 0.0
    %883 = vmatpush1.msra.mxu0 0.0
    %884 = vmatprep.subr.mxu0 0.0
    %885 = vmatpush1.msra.mxu0 0.0
    %886 = vmatprep.subr.mxu0 0.0
    %887 = vmatpush1.msra.mxu0 %v53
    %888 = vmatprep.subr.mxu0 0.0
    %889 = vmatpush1.msra.mxu0 %v52
    %890 = vmatprep.subr.mxu0 0.0
    %891 = vmatpush1.msra.mxu0 %v51
    %892 = vmatprep.subr.mxu0 0.0
    %893 = vmatpush1.msra.mxu0 %v50
    %894 = vmatprep.subr.mxu0 0.0
    %895 = vmatpush2.msra.mxu0 0.0
    %896 = vmatprep.subr.mxu0 0.0
    %897 = vmatpush2.msra.mxu0 0.0
    %898 = vmatprep.subr.mxu0 0.0
    %899 = vmatpush2.msra.mxu0 0.0
    %900 = vmatprep.subr.mxu0 0.0
    %901 = vmatpush2.msra.mxu0 0.0
    %902 = vmatprep.subr.mxu0 0.0
    %903 = vmatpush2.msra.mxu0 0.0
    %904 = vmatprep.subr.mxu0 0.0
    %905 = vmatpush2.msra.mxu0 0.0
    %906 = vmatprep.subr.mxu0 0.0
    %907 = vmatpush2.msra.mxu0 0.0
    %908 = vmatprep.subr.mxu0 0.0
    %909 = vmatpush2.msra.mxu0 0.0
    %910 = vmatprep.subr.mxu0 0.0
    %911 = vmatpush2.msra.mxu0 0.0
    %912 = vmatprep.subr.mxu0 0.0
    %913 = vmatpush2.msra.mxu0 0.0
    %914 = vmatprep.subr.mxu0 0.0
    %915 = vmatpush2.msra.mxu0 0.0
    %916 = vmatprep.subr.mxu0 0.0
    %917 = vmatpush2.msra.mxu0 0.0
    %918 = vmatprep.subr.mxu0 0.0
    %919 = vmatpush2.msra.mxu0 0.0
    %920 = vmatprep.subr.mxu0 0.0
    %921 = vmatpush2.msra.mxu0 0.0
    %922 = vmatprep.subr.mxu0 0.0
    %923 = vmatpush2.msra.mxu0 0.0
    %924 = vmatprep.subr.mxu0 0.0
    %925 = vmatpush2.msra.mxu0 0.0
    %926 = vmatprep.mubr.f32.mxu0 0.0
    %927 = vmatmul.mubr.f32.gmra.mxu0 %v612
    %v928 = vpop.f32.mrf.mxu0
    %v929 = vadd.f32 %v145, %v928
    %v930 = vpop.f32.mrf.mxu0
    %931 = vdwg.mxu0
    %v932 = vadd.f32 %v859, %v929
    %v933 = vsub.f32 0.0, %v932
    %v934 = vmul.f32 %v933, 1.442695
    %v935 = vpow.pop %v934
    %v936 = vadd.f32 %v935, 1.0
    %v937 = vrcp.pop %v936
    %v938 = vmul.f32 1.0, %v937
    %940 = vrot.lane.b32.xlu0 %v929, 64
    %v941 = vpop.permute.xlu0 %940
    %v943 = vmul.f32 %v938, %v941
    %945 = vrot.lane.b32.xlu0 %v943, 64
    %v946 = vpop.permute.xlu0 %945
    %v948 = vadd.f32 %v859, %v946
    %v949 = vtanh.pop %v948
    %v950 = vsub.f32 1.0, %v938
    %952 = vrot.lane.b32.xlu0 %v949, 96
    %v953 = vpop.permute.xlu0 %952
    %v955 = vmul.f32 %v950, %v953
    %v956 = vmul.f32 %v938, %v608
    %v957 = vadd.f32 %v955, %v956
    %v958 = vsel %vm788, 1, 0
    %959 = vset.pattern.permute.xlu0 0
    %960 = vperm.xlu0 %959, %v958
    %v961 = vpop.permute.xlu0 %960
    %vm962 = vcmp.eq.s32.totalorder %v961, 1
    %v963 = vsel %vm962, %v957, %v608
    %965 = vrot.lane.b32.xlu0 %v963, 96
    %v966 = vpop.permute.xlu0 %965
    %v967 = vsel %vm68, %v966, 0
    %969 = vmatprep.subr.mxu0 0.0
    %970 = vmatpush1.msra.mxu0 0.0
    %971 = vmatprep.subr.mxu0 0.0
    %972 = vmatpush1.msra.mxu0 0.0
    %973 = vmatprep.subr.mxu0 0.0
    %974 = vmatpush1.msra.mxu0 0.0
    %975 = vmatprep.subr.mxu0 0.0
    %976 = vmatpush1.msra.mxu0 0.0
    %977 = vmatprep.subr.mxu0 0.0
    %978 = vmatpush1.msra.mxu0 0.0
    %979 = vmatprep.subr.mxu0 0.0
    %980 = vmatpush1.msra.mxu0 0.0
    %981 = vmatprep.subr.mxu0 0.0
    %982 = vmatpush1.msra.mxu0 0.0
    %983 = vmatprep.subr.mxu0 0.0
    %984 = vmatpush1.msra.mxu0 0.0
    %985 = vmatprep.subr.mxu0 0.0
    %986 = vmatpush1.msra.mxu0 0.0
    %987 = vmatprep.subr.mxu0 0.0
    %988 = vmatpush1.msra.mxu0 0.0
    %989 = vmatprep.subr.mxu0 0.0
    %990 = vmatpush1.msra.mxu0 0.0
    %991 = vmatprep.subr.mxu0 0.0
    %992 = vmatpush1.msra.mxu0 0.0
    %993 = vmatprep.subr.mxu0 0.0
    %994 = vmatpush1.msra.mxu0 %v49
    %995 = vmatprep.subr.mxu0 0.0
    %996 = vmatpush1.msra.mxu0 %v48
    %997 = vmatprep.subr.mxu0 0.0
    %998 = vmatpush1.msra.mxu0 %v47
    %999 = vmatprep.subr.mxu0 0.0
    %1000 = vmatpush1.msra.mxu0 %v46
    %1001 = vmatprep.subr.mxu0 0.0
    %1002 = vmatpush2.msra.mxu0 0.0
    %1003 = vmatprep.subr.mxu0 0.0
    %1004 = vmatpush2.msra.mxu0 0.0
    %1005 = vmatprep.subr.mxu0 0.0
    %1006 = vmatpush2.msra.mxu0 0.0
    %1007 = vmatprep.subr.mxu0 0.0
    %1008 = vmatpush2.msra.mxu0 0.0
    %1009 = vmatprep.subr.mxu0 0.0
    %1010 = vmatpush2.msra.mxu0 0.0
    %1011 = vmatprep.subr.mxu0 0.0
    %1012 = vmatpush2.msra.mxu0 0.0
    %1013 = vmatprep.subr.mxu0 0.0
    %1014 = vmatpush2.msra.mxu0 0.0
    %1015 = vmatprep.subr.mxu0 0.0
    %1016 = vmatpush2.msra.mxu0 0.0
    %1017 = vmatprep.subr.mxu0 0.0
    %1018 = vmatpush2.msra.mxu0 0.0
    %1019 = vmatprep.subr.mxu0 0.0
    %1020 = vmatpush2.msra.mxu0 0.0
    %1021 = vmatprep.subr.mxu0 0.0
    %1022 = vmatpush2.msra.mxu0 0.0
    %1023 = vmatprep.subr.mxu0 0.0
    %1024 = vmatpush2.msra.mxu0 0.0
    %1025 = vmatprep.subr.mxu0 0.0
    %1026 = vmatpush2.msra.mxu0 0.0
    %1027 = vmatprep.subr.mxu0 0.0
    %1028 = vmatpush2.msra.mxu0 0.0
    %1029 = vmatprep.subr.mxu0 0.0
    %1030 = vmatpush2.msra.mxu0 0.0
    %1031 = vmatprep.subr.mxu0 0.0
    %1032 = vmatpush2.msra.mxu0 0.0
    %1033 = vmatprep.mubr.f32.mxu0 0.0
    %1034 = vmatmul.mubr.f32.gmra.mxu0 %v967
    %v1035 = vpop.f32.mrf.mxu0
    %v1036 = vadd.f32 %v254, %v1035
    %v1037 = vpop.f32.mrf.mxu0
    %1038 = vdwg.mxu0
    %1040 = vrot.lane.b32.xlu0 %v785, 96
    %v1041 = vpop.permute.xlu0 %1040
    %v1042 = vsel %vm68, %v1041, 0
    %1044 = vmatprep.subr.mxu0 0.0
    %1045 = vmatpush1.msra.mxu0 0.0
    %1046 = vmatprep.subr.mxu0 0.0
    %1047 = vmatpush1.msra.mxu0 0.0
    %1048 = vmatprep.subr.mxu0 0.0
    %1049 = vmatpush1.msra.mxu0 0.0
    %1050 = vmatprep.subr.mxu0 0.0
    %1051 = vmatpush1.msra.mxu0 0.0
    %1052 = vmatprep.subr.mxu0 0.0
    %1053 = vmatpush1.msra.mxu0 0.0
    %1054 = vmatprep.subr.mxu0 0.0
    %1055 = vmatpush1.msra.mxu0 0.0
    %1056 = vmatprep.subr.mxu0 0.0
    %1057 = vmatpush1.msra.mxu0 0.0
    %1058 = vmatprep.subr.mxu0 0.0
    %1059 = vmatpush1.msra.mxu0 0.0
    %1060 = vmatprep.subr.mxu0 0.0
    %1061 = vmatpush1.msra.mxu0 0.0
    %1062 = vmatprep.subr.mxu0 0.0
    %1063 = vmatpush1.msra.mxu0 0.0
    %1064 = vmatprep.subr.mxu0 0.0
    %1065 = vmatpush1.msra.mxu0 0.0
    %1066 = vmatprep.subr.mxu0 0.0
    %1067 = vmatpush1.msra.mxu0 0.0
    %1068 = vmatprep.subr.mxu0 0.0
    %1069 = vmatpush1.msra.mxu0 %v58
    %1070 = vmatprep.subr.mxu0 0.0
    %1071 = vmatpush1.msra.mxu0 %v57
    %1072 = vmatprep.subr.mxu0 0.0
    %1073 = vmatpush1.msra.mxu0 %v56
    %1074 = vmatprep.subr.mxu0 0.0
    %1075 = vmatpush1.msra.mxu0 %v55
    %1076 = vmatprep.subr.mxu0 0.0
    %1077 = vmatpush2.msra.mxu0 0.0
    %1078 = vmatprep.subr.mxu0 0.0
    %1079 = vmatpush2.msra.mxu0 0.0
    %1080 = vmatprep.subr.mxu0 0.0
    %1081 = vmatpush2.msra.mxu0 0.0
    %1082 = vmatprep.subr.mxu0 0.0
    %1083 = vmatpush2.msra.mxu0 0.0
    %1084 = vmatprep.subr.mxu0 0.0
    %1085 = vmatpush2.msra.mxu0 0.0
    %1086 = vmatprep.subr.mxu0 0.0
    %1087 = vmatpush2.msra.mxu0 0.0
    %1088 = vmatprep.subr.mxu0 0.0
    %1089 = vmatpush2.msra.mxu0 0.0
    %1090 = vmatprep.subr.mxu0 0.0
    %1091 = vmatpush2.msra.mxu0 0.0
    %1092 = vmatprep.subr.mxu0 0.0
    %1093 = vmatpush2.msra.mxu0 0.0
    %1094 = vmatprep.subr.mxu0 0.0
    %1095 = vmatpush2.msra.mxu0 0.0
    %1096 = vmatprep.subr.mxu0 0.0
    %1097 = vmatpush2.msra.mxu0 0.0
    %1098 = vmatprep.subr.mxu0 0.0
    %1099 = vmatpush2.msra.mxu0 0.0
    %1100 = vmatprep.subr.mxu0 0.0
    %1101 = vmatpush2.msra.mxu0 0.0
    %1102 = vmatprep.subr.mxu0 0.0
    %1103 = vmatpush2.msra.mxu0 0.0
    %1104 = vmatprep.subr.mxu0 0.0
    %1105 = vmatpush2.msra.mxu0 0.0
    %1106 = vmatprep.subr.mxu0 0.0
    %1107 = vmatpush2.msra.mxu0 0.0
    %1108 = vmatprep.mubr.f32.mxu0 0.0
    %1109 = vmatmul.mubr.f32.gmra.mxu0 %v1042
    %v1110 = vpop.f32.mrf.mxu0
    %v1111 = vadd.f32 %v333, %v1110
    %v1112 = vpop.f32.mrf.mxu0
    %1113 = vdwg.mxu0
    %v1114 = vadd.f32 %v1036, %v1111
    %v1115 = vsub.f32 0.0, %v1114
    %v1116 = vmul.f32 %v1115, 1.442695
    %v1117 = vpow.pop %v1116
    %v1118 = vadd.f32 %v1117, 1.0
    %v1119 = vrcp.pop %v1118
    %v1120 = vmul.f32 1.0, %v1119
    %1122 = vrot.lane.b32.xlu0 %v1111, 64
    %v1123 = vpop.permute.xlu0 %1122
    %v1125 = vmul.f32 %v1120, %v1123
    %1127 = vrot.lane.b32.xlu0 %v1125, 64
    %v1128 = vpop.permute.xlu0 %1127
    %v1130 = vadd.f32 %v1036, %v1128
    %v1131 = vtanh.pop %v1130
    %v1132 = vsub.f32 1.0, %v1120
    %1134 = vrot.lane.b32.xlu0 %v1131, 96
    %v1135 = vpop.permute.xlu0 %1134
    %v1137 = vmul.f32 %v1132, %v1135
    %v1138 = vmul.f32 %v1120, %v785
    %v1139 = vadd.f32 %v1137, %v1138
    %v1140 = vsel %vm962, %v1139, %v785
    %s1141 = scalar_lea.vmem %s1, 24
    %v1142 = vld [vmem:[%s1141] sm:$0xff]
    %vm1143 = vcmp.gt.s32.totalorder %v40, 3
    %v1145 = vsel %vm68, %v1142, 0
    %1147 = vmatprep.subr.mxu0 0.0
    %1148 = vmatpush1.msra.mxu0 0.0
    %1149 = vmatprep.subr.mxu0 0.0
    %1150 = vmatpush1.msra.mxu0 0.0
    %1151 = vmatprep.subr.mxu0 0.0
    %1152 = vmatpush1.msra.mxu0 0.0
    %1153 = vmatprep.subr.mxu0 0.0
    %1154 = vmatpush1.msra.mxu0 0.0
    %1155 = vmatprep.subr.mxu0 0.0
    %1156 = vmatpush1.msra.mxu0 0.0
    %1157 = vmatprep.subr.mxu0 0.0
    %1158 = vmatpush1.msra.mxu0 0.0
    %1159 = vmatprep.subr.mxu0 0.0
    %1160 = vmatpush1.msra.mxu0 0.0
    %1161 = vmatprep.subr.mxu0 0.0
    %1162 = vmatpush1.msra.mxu0 0.0
    %1163 = vmatprep.subr.mxu0 0.0
    %1164 = vmatpush1.msra.mxu0 0.0
    %1165 = vmatprep.subr.mxu0 0.0
    %1166 = vmatpush1.msra.mxu0 0.0
    %1167 = vmatprep.subr.mxu0 0.0
    %1168 = vmatpush1.msra.mxu0 0.0
    %1169 = vmatprep.subr.mxu0 0.0
    %1170 = vmatpush1.msra.mxu0 0.0
    %1171 = vmatprep.subr.mxu0 0.0
    %1172 = vmatpush1.msra.mxu0 %v44
    %1173 = vmatprep.subr.mxu0 0.0
    %1174 = vmatpush1.msra.mxu0 %v43
    %1175 = vmatprep.subr.mxu0 0.0
    %1176 = vmatpush1.msra.mxu0 %v42
    %1177 = vmatprep.subr.mxu0 0.0
    %1178 = vmatpush1.msra.mxu0 %v41
    %1179 = vmatprep.subr.mxu0 0.0
    %1180 = vmatpush2.msra.mxu0 0.0
    %1181 = vmatprep.subr.mxu0 0.0
    %1182 = vmatpush2.msra.mxu0 0.0
    %1183 = vmatprep.subr.mxu0 0.0
    %1184 = vmatpush2.msra.mxu0 0.0
    %1185 = vmatprep.subr.mxu0 0.0
    %1186 = vmatpush2.msra.mxu0 0.0
    %1187 = vmatprep.subr.mxu0 0.0
    %1188 = vmatpush2.msra.mxu0 0.0
    %1189 = vmatprep.subr.mxu0 0.0
    %1190 = vmatpush2.msra.mxu0 0.0
    %1191 = vmatprep.subr.mxu0 0.0
    %1192 = vmatpush2.msra.mxu0 0.0
    %1193 = vmatprep.subr.mxu0 0.0
    %1194 = vmatpush2.msra.mxu0 0.0
    %1195 = vmatprep.subr.mxu0 0.0
    %1196 = vmatpush2.msra.mxu0 0.0
    %1197 = vmatprep.subr.mxu0 0.0
    %1198 = vmatpush2.msra.mxu0 0.0
    %1199 = vmatprep.subr.mxu0 0.0
    %1200 = vmatpush2.msra.mxu0 0.0
    %1201 = vmatprep.subr.mxu0 0.0
    %1202 = vmatpush2.msra.mxu0 0.0
    %1203 = vmatprep.subr.mxu0 0.0
    %1204 = vmatpush2.msra.mxu0 0.0
    %1205 = vmatprep.subr.mxu0 0.0
    %1206 = vmatpush2.msra.mxu0 0.0
    %1207 = vmatprep.subr.mxu0 0.0
    %1208 = vmatpush2.msra.mxu0 0.0
    %1209 = vmatprep.subr.mxu0 0.0
    %1210 = vmatpush2.msra.mxu0 0.0
    %1211 = vmatprep.mubr.f32.mxu0 0.0
    %1212 = vmatmul.mubr.f32.gmra.mxu0 %v1145
    %v1213 = vpop.f32.mrf.mxu0
    %v1214 = vadd.f32 %v67, %v1213
    %v1215 = vpop.f32.mrf.mxu0
    %1216 = vdwg.mxu0
    %1217 = vmatprep.subr.mxu0 0.0
    %1218 = vmatpush1.msra.mxu0 0.0
    %1219 = vmatprep.subr.mxu0 0.0
    %1220 = vmatpush1.msra.mxu0 0.0
    %1221 = vmatprep.subr.mxu0 0.0
    %1222 = vmatpush1.msra.mxu0 0.0
    %1223 = vmatprep.subr.mxu0 0.0
    %1224 = vmatpush1.msra.mxu0 0.0
    %1225 = vmatprep.subr.mxu0 0.0
    %1226 = vmatpush1.msra.mxu0 0.0
    %1227 = vmatprep.subr.mxu0 0.0
    %1228 = vmatpush1.msra.mxu0 0.0
    %1229 = vmatprep.subr.mxu0 0.0
    %1230 = vmatpush1.msra.mxu0 0.0
    %1231 = vmatprep.subr.mxu0 0.0
    %1232 = vmatpush1.msra.mxu0 0.0
    %1233 = vmatprep.subr.mxu0 0.0
    %1234 = vmatpush1.msra.mxu0 0.0
    %1235 = vmatprep.subr.mxu0 0.0
    %1236 = vmatpush1.msra.mxu0 0.0
    %1237 = vmatprep.subr.mxu0 0.0
    %1238 = vmatpush1.msra.mxu0 0.0
    %1239 = vmatprep.subr.mxu0 0.0
    %1240 = vmatpush1.msra.mxu0 0.0
    %1241 = vmatprep.subr.mxu0 0.0
    %1242 = vmatpush1.msra.mxu0 %v53
    %1243 = vmatprep.subr.mxu0 0.0
    %1244 = vmatpush1.msra.mxu0 %v52
    %1245 = vmatprep.subr.mxu0 0.0
    %1246 = vmatpush1.msra.mxu0 %v51
    %1247 = vmatprep.subr.mxu0 0.0
    %1248 = vmatpush1.msra.mxu0 %v50
    %1249 = vmatprep.subr.mxu0 0.0
    %1250 = vmatpush2.msra.mxu0 0.0
    %1251 = vmatprep.subr.mxu0 0.0
    %1252 = vmatpush2.msra.mxu0 0.0
    %1253 = vmatprep.subr.mxu0 0.0
    %1254 = vmatpush2.msra.mxu0 0.0
    %1255 = vmatprep.subr.mxu0 0.0
    %1256 = vmatpush2.msra.mxu0 0.0
    %1257 = vmatprep.subr.mxu0 0.0
    %1258 = vmatpush2.msra.mxu0 0.0
    %1259 = vmatprep.subr.mxu0 0.0
    %1260 = vmatpush2.msra.mxu0 0.0
    %1261 = vmatprep.subr.mxu0 0.0
    %1262 = vmatpush2.msra.mxu0 0.0
    %1263 = vmatprep.subr.mxu0 0.0
    %1264 = vmatpush2.msra.mxu0 0.0
    %1265 = vmatprep.subr.mxu0 0.0
    %1266 = vmatpush2.msra.mxu0 0.0
    %1267 = vmatprep.subr.mxu0 0.0
    %1268 = vmatpush2.msra.mxu0 0.0
    %1269 = vmatprep.subr.mxu0 0.0
    %1270 = vmatpush2.msra.mxu0 0.0
    %1271 = vmatprep.subr.mxu0 0.0
    %1272 = vmatpush2.msra.mxu0 0.0
    %1273 = vmatprep.subr.mxu0 0.0
    %1274 = vmatpush2.msra.mxu0 0.0
    %1275 = vmatprep.subr.mxu0 0.0
    %1276 = vmatpush2.msra.mxu0 0.0
    %1277 = vmatprep.subr.mxu0 0.0
    %1278 = vmatpush2.msra.mxu0 0.0
    %1279 = vmatprep.subr.mxu0 0.0
    %1280 = vmatpush2.msra.mxu0 0.0
    %1281 = vmatprep.mubr.f32.mxu0 0.0
    %1282 = vmatmul.mubr.f32.gmra.mxu0 %v967
    %v1283 = vpop.f32.mrf.mxu0
    %v1284 = vadd.f32 %v145, %v1283
    %v1285 = vpop.f32.mrf.mxu0
    %1286 = vdwg.mxu0
    %v1287 = vadd.f32 %v1214, %v1284
    %v1288 = vsub.f32 0.0, %v1287
    %v1289 = vmul.f32 %v1288, 1.442695
    %v1290 = vpow.pop %v1289
    %v1291 = vadd.f32 %v1290, 1.0
    %v1292 = vrcp.pop %v1291
    %v1293 = vmul.f32 1.0, %v1292
    %1295 = vrot.lane.b32.xlu0 %v1284, 64
    %v1296 = vpop.permute.xlu0 %1295
    %v1298 = vmul.f32 %v1293, %v1296
    %1300 = vrot.lane.b32.xlu0 %v1298, 64
    %v1301 = vpop.permute.xlu0 %1300
    %v1303 = vadd.f32 %v1214, %v1301
    %v1304 = vtanh.pop %v1303
    %v1305 = vsub.f32 1.0, %v1293
    %1307 = vrot.lane.b32.xlu0 %v1304, 96
    %v1308 = vpop.permute.xlu0 %1307
    %v1310 = vmul.f32 %v1305, %v1308
    %v1311 = vmul.f32 %v1293, %v963
    %v1312 = vadd.f32 %v1310, %v1311
    %v1313 = vsel %vm1143, 1, 0
    %1314 = vset.pattern.permute.xlu0 0
    %1315 = vperm.xlu0 %1314, %v1313
    %v1316 = vpop.permute.xlu0 %1315
    %vm1317 = vcmp.eq.s32.totalorder %v1316, 1
    %v1318 = vsel %vm1317, %v1312, %v963
    %1320 = vrot.lane.b32.xlu0 %v1318, 96
    %v1321 = vpop.permute.xlu0 %1320
    %v1322 = vsel %vm68, %v1321, 0
    %1324 = vmatprep.subr.mxu0 0.0
    %1325 = vmatpush1.msra.mxu0 0.0
    %1326 = vmatprep.subr.mxu0 0.0
    %1327 = vmatpush1.msra.mxu0 0.0
    %1328 = vmatprep.subr.mxu0 0.0
    %1329 = vmatpush1.msra.mxu0 0.0
    %1330 = vmatprep.subr.mxu0 0.0
    %1331 = vmatpush1.msra.mxu0 0.0
    %1332 = vmatprep.subr.mxu0 0.0
    %1333 = vmatpush1.msra.mxu0 0.0
    %1334 = vmatprep.subr.mxu0 0.0
    %1335 = vmatpush1.msra.mxu0 0.0
    %1336 = vmatprep.subr.mxu0 0.0
    %1337 = vmatpush1.msra.mxu0 0.0
    %1338 = vmatprep.subr.mxu0 0.0
    %1339 = vmatpush1.msra.mxu0 0.0
    %1340 = vmatprep.subr.mxu0 0.0
    %1341 = vmatpush1.msra.mxu0 0.0
    %1342 = vmatprep.subr.mxu0 0.0
    %1343 = vmatpush1.msra.mxu0 0.0
    %1344 = vmatprep.subr.mxu0 0.0
    %1345 = vmatpush1.msra.mxu0 0.0
    %1346 = vmatprep.subr.mxu0 0.0
    %1347 = vmatpush1.msra.mxu0 0.0
    %1348 = vmatprep.subr.mxu0 0.0
    %1349 = vmatpush1.msra.mxu0 %v49
    %1350 = vmatprep.subr.mxu0 0.0
    %1351 = vmatpush1.msra.mxu0 %v48
    %1352 = vmatprep.subr.mxu0 0.0
    %1353 = vmatpush1.msra.mxu0 %v47
    %1354 = vmatprep.subr.mxu0 0.0
    %1355 = vmatpush1.msra.mxu0 %v46
    %1356 = vmatprep.subr.mxu0 0.0
    %1357 = vmatpush2.msra.mxu0 0.0
    %1358 = vmatprep.subr.mxu0 0.0
    %1359 = vmatpush2.msra.mxu0 0.0
    %1360 = vmatprep.subr.mxu0 0.0
    %1361 = vmatpush2.msra.mxu0 0.0
    %1362 = vmatprep.subr.mxu0 0.0
    %1363 = vmatpush2.msra.mxu0 0.0
    %1364 = vmatprep.subr.mxu0 0.0
    %1365 = vmatpush2.msra.mxu0 0.0
    %1366 = vmatprep.subr.mxu0 0.0
    %1367 = vmatpush2.msra.mxu0 0.0
    %1368 = vmatprep.subr.mxu0 0.0
    %1369 = vmatpush2.msra.mxu0 0.0
    %1370 = vmatprep.subr.mxu0 0.0
    %1371 = vmatpush2.msra.mxu0 0.0
    %1372 = vmatprep.subr.mxu0 0.0
    %1373 = vmatpush2.msra.mxu0 0.0
    %1374 = vmatprep.subr.mxu0 0.0
    %1375 = vmatpush2.msra.mxu0 0.0
    %1376 = vmatprep.subr.mxu0 0.0
    %1377 = vmatpush2.msra.mxu0 0.0
    %1378 = vmatprep.subr.mxu0 0.0
    %1379 = vmatpush2.msra.mxu0 0.0
    %1380 = vmatprep.subr.mxu0 0.0
    %1381 = vmatpush2.msra.mxu0 0.0
    %1382 = vmatprep.subr.mxu0 0.0
    %1383 = vmatpush2.msra.mxu0 0.0
    %1384 = vmatprep.subr.mxu0 0.0
    %1385 = vmatpush2.msra.mxu0 0.0
    %1386 = vmatprep.subr.mxu0 0.0
    %1387 = vmatpush2.msra.mxu0 0.0
    %1388 = vmatprep.mubr.f32.mxu0 0.0
    %1389 = vmatmul.mubr.f32.gmra.mxu0 %v1322
    %v1390 = vpop.f32.mrf.mxu0
    %v1391 = vadd.f32 %v254, %v1390
    %v1392 = vpop.f32.mrf.mxu0
    %1393 = vdwg.mxu0
    %1395 = vrot.lane.b32.xlu0 %v1140, 96
    %v1396 = vpop.permute.xlu0 %1395
    %v1397 = vsel %vm68, %v1396, 0
    %1399 = vmatprep.subr.mxu0 0.0
    %1400 = vmatpush1.msra.mxu0 0.0
    %1401 = vmatprep.subr.mxu0 0.0
    %1402 = vmatpush1.msra.mxu0 0.0
    %1403 = vmatprep.subr.mxu0 0.0
    %1404 = vmatpush1.msra.mxu0 0.0
    %1405 = vmatprep.subr.mxu0 0.0
    %1406 = vmatpush1.msra.mxu0 0.0
    %1407 = vmatprep.subr.mxu0 0.0
    %1408 = vmatpush1.msra.mxu0 0.0
    %1409 = vmatprep.subr.mxu0 0.0
    %1410 = vmatpush1.msra.mxu0 0.0
    %1411 = vmatprep.subr.mxu0 0.0
    %1412 = vmatpush1.msra.mxu0 0.0
    %1413 = vmatprep.subr.mxu0 0.0
    %1414 = vmatpush1.msra.mxu0 0.0
    %1415 = vmatprep.subr.mxu0 0.0
    %1416 = vmatpush1.msra.mxu0 0.0
    %1417 = vmatprep.subr.mxu0 0.0
    %1418 = vmatpush1.msra.mxu0 0.0
    %1419 = vmatprep.subr.mxu0 0.0
    %1420 = vmatpush1.msra.mxu0 0.0
    %1421 = vmatprep.subr.mxu0 0.0
    %1422 = vmatpush1.msra.mxu0 0.0
    %1423 = vmatprep.subr.mxu0 0.0
    %1424 = vmatpush1.msra.mxu0 %v58
    %1425 = vmatprep.subr.mxu0 0.0
    %1426 = vmatpush1.msra.mxu0 %v57
    %1427 = vmatprep.subr.mxu0 0.0
    %1428 = vmatpush1.msra.mxu0 %v56
    %1429 = vmatprep.subr.mxu0 0.0
    %1430 = vmatpush1.msra.mxu0 %v55
    %1431 = vmatprep.subr.mxu0 0.0
    %1432 = vmatpush2.msra.mxu0 0.0
    %1433 = vmatprep.subr.mxu0 0.0
    %1434 = vmatpush2.msra.mxu0 0.0
    %1435 = vmatprep.subr.mxu0 0.0
    %1436 = vmatpush2.msra.mxu0 0.0
    %1437 = vmatprep.subr.mxu0 0.0
    %1438 = vmatpush2.msra.mxu0 0.0
    %1439 = vmatprep.subr.mxu0 0.0
    %1440 = vmatpush2.msra.mxu0 0.0
    %1441 = vmatprep.subr.mxu0 0.0
    %1442 = vmatpush2.msra.mxu0 0.0
    %1443 = vmatprep.subr.mxu0 0.0
    %1444 = vmatpush2.msra.mxu0 0.0
    %1445 = vmatprep.subr.mxu0 0.0
    %1446 = vmatpush2.msra.mxu0 0.0
    %1447 = vmatprep.subr.mxu0 0.0
    %1448 = vmatpush2.msra.mxu0 0.0
    %1449 = vmatprep.subr.mxu0 0.0
    %1450 = vmatpush2.msra.mxu0 0.0
    %1451 = vmatprep.subr.mxu0 0.0
    %1452 = vmatpush2.msra.mxu0 0.0
    %1453 = vmatprep.subr.mxu0 0.0
    %1454 = vmatpush2.msra.mxu0 0.0
    %1455 = vmatprep.subr.mxu0 0.0
    %1456 = vmatpush2.msra.mxu0 0.0
    %1457 = vmatprep.subr.mxu0 0.0
    %1458 = vmatpush2.msra.mxu0 0.0
    %1459 = vmatprep.subr.mxu0 0.0
    %1460 = vmatpush2.msra.mxu0 0.0
    %1461 = vmatprep.subr.mxu0 0.0
    %1462 = vmatpush2.msra.mxu0 0.0
    %1463 = vmatprep.mubr.f32.mxu0 0.0
    %1464 = vmatmul.mubr.f32.gmra.mxu0 %v1397
    %v1465 = vpop.f32.mrf.mxu0
    %v1466 = vadd.f32 %v333, %v1465
    %v1467 = vpop.f32.mrf.mxu0
    %1468 = vdwg.mxu0
    %v1469 = vadd.f32 %v1391, %v1466
    %v1470 = vsub.f32 0.0, %v1469
    %v1471 = vmul.f32 %v1470, 1.442695
    %v1472 = vpow.pop %v1471
    %v1473 = vadd.f32 %v1472, 1.0
    %v1474 = vrcp.pop %v1473
    %v1475 = vmul.f32 1.0, %v1474
    %1477 = vrot.lane.b32.xlu0 %v1466, 64
    %v1478 = vpop.permute.xlu0 %1477
    %v1480 = vmul.f32 %v1475, %v1478
    %1482 = vrot.lane.b32.xlu0 %v1480, 64
    %v1483 = vpop.permute.xlu0 %1482
    %v1485 = vadd.f32 %v1391, %v1483
    %v1486 = vtanh.pop %v1485
    %v1487 = vsub.f32 1.0, %v1475
    %1489 = vrot.lane.b32.xlu0 %v1486, 96
    %v1490 = vpop.permute.xlu0 %1489
    %v1492 = vmul.f32 %v1487, %v1490
    %v1493 = vmul.f32 %v1475, %v1140
    %v1494 = vadd.f32 %v1492, %v1493
    %v1495 = vsel %vm1317, %v1494, %v1140
    %s1496 = scalar_lea.vmem %s1, 32
    %v1497 = vld [vmem:[%s1496] sm:$0xff]
    %vm1498 = vcmp.gt.s32.totalorder %v40, 4
    %v1500 = vsel %vm68, %v1497, 0
    %1502 = vmatprep.subr.mxu0 0.0
    %1503 = vmatpush1.msra.mxu0 0.0
    %1504 = vmatprep.subr.mxu0 0.0
    %1505 = vmatpush1.msra.mxu0 0.0
    %1506 = vmatprep.subr.mxu0 0.0
    %1507 = vmatpush1.msra.mxu0 0.0
    %1508 = vmatprep.subr.mxu0 0.0
    %1509 = vmatpush1.msra.mxu0 0.0
    %1510 = vmatprep.subr.mxu0 0.0
    %1511 = vmatpush1.msra.mxu0 0.0
    %1512 = vmatprep.subr.mxu0 0.0
    %1513 = vmatpush1.msra.mxu0 0.0
    %1514 = vmatprep.subr.mxu0 0.0
    %1515 = vmatpush1.msra.mxu0 0.0
    %1516 = vmatprep.subr.mxu0 0.0
    %1517 = vmatpush1.msra.mxu0 0.0
    %1518 = vmatprep.subr.mxu0 0.0
    %1519 = vmatpush1.msra.mxu0 0.0
    %1520 = vmatprep.subr.mxu0 0.0
    %1521 = vmatpush1.msra.mxu0 0.0
    %1522 = vmatprep.subr.mxu0 0.0
    %1523 = vmatpush1.msra.mxu0 0.0
    %1524 = vmatprep.subr.mxu0 0.0
    %1525 = vmatpush1.msra.mxu0 0.0
    %1526 = vmatprep.subr.mxu0 0.0
    %1527 = vmatpush1.msra.mxu0 %v44
    %1528 = vmatprep.subr.mxu0 0.0
    %1529 = vmatpush1.msra.mxu0 %v43
    %1530 = vmatprep.subr.mxu0 0.0
    %1531 = vmatpush1.msra.mxu0 %v42
    %1532 = vmatprep.subr.mxu0 0.0
    %1533 = vmatpush1.msra.mxu0 %v41
    %1534 = vmatprep.subr.mxu0 0.0
    %1535 = vmatpush2.msra.mxu0 0.0
    %1536 = vmatprep.subr.mxu0 0.0
    %1537 = vmatpush2.msra.mxu0 0.0
    %1538 = vmatprep.subr.mxu0 0.0
    %1539 = vmatpush2.msra.mxu0 0.0
    %1540 = vmatprep.subr.mxu0 0.0
    %1541 = vmatpush2.msra.mxu0 0.0
    %1542 = vmatprep.subr.mxu0 0.0
    %1543 = vmatpush2.msra.mxu0 0.0
    %1544 = vmatprep.subr.mxu0 0.0
    %1545 = vmatpush2.msra.mxu0 0.0
    %1546 = vmatprep.subr.mxu0 0.0
    %1547 = vmatpush2.msra.mxu0 0.0
    %1548 = vmatprep.subr.mxu0 0.0
    %1549 = vmatpush2.msra.mxu0 0.0
    %1550 = vmatprep.subr.mxu0 0.0
    %1551 = vmatpush2.msra.mxu0 0.0
    %1552 = vmatprep.subr.mxu0 0.0
    %1553 = vmatpush2.msra.mxu0 0.0
    %1554 = vmatprep.subr.mxu0 0.0
    %1555 = vmatpush2.msra.mxu0 0.0
    %1556 = vmatprep.subr.mxu0 0.0
    %1557 = vmatpush2.msra.mxu0 0.0
    %1558 = vmatprep.subr.mxu0 0.0
    %1559 = vmatpush2.msra.mxu0 0.0
    %1560 = vmatprep.subr.mxu0 0.0
    %1561 = vmatpush2.msra.mxu0 0.0
    %1562 = vmatprep.subr.mxu0 0.0
    %1563 = vmatpush2.msra.mxu0 0.0
    %1564 = vmatprep.subr.mxu0 0.0
    %1565 = vmatpush2.msra.mxu0 0.0
    %1566 = vmatprep.mubr.f32.mxu0 0.0
    %1567 = vmatmul.mubr.f32.gmra.mxu0 %v1500
    %v1568 = vpop.f32.mrf.mxu0
    %v1569 = vadd.f32 %v67, %v1568
    %v1570 = vpop.f32.mrf.mxu0
    %1571 = vdwg.mxu0
    %1572 = vmatprep.subr.mxu0 0.0
    %1573 = vmatpush1.msra.mxu0 0.0
    %1574 = vmatprep.subr.mxu0 0.0
    %1575 = vmatpush1.msra.mxu0 0.0
    %1576 = vmatprep.subr.mxu0 0.0
    %1577 = vmatpush1.msra.mxu0 0.0
    %1578 = vmatprep.subr.mxu0 0.0
    %1579 = vmatpush1.msra.mxu0 0.0
    %1580 = vmatprep.subr.mxu0 0.0
    %1581 = vmatpush1.msra.mxu0 0.0
    %1582 = vmatprep.subr.mxu0 0.0
    %1583 = vmatpush1.msra.mxu0 0.0
    %1584 = vmatprep.subr.mxu0 0.0
    %1585 = vmatpush1.msra.mxu0 0.0
    %1586 = vmatprep.subr.mxu0 0.0
    %1587 = vmatpush1.msra.mxu0 0.0
    %1588 = vmatprep.subr.mxu0 0.0
    %1589 = vmatpush1.msra.mxu0 0.0
    %1590 = vmatprep.subr.mxu0 0.0
    %1591 = vmatpush1.msra.mxu0 0.0
    %1592 = vmatprep.subr.mxu0 0.0
    %1593 = vmatpush1.msra.mxu0 0.0
    %1594 = vmatprep.subr.mxu0 0.0
    %1595 = vmatpush1.msra.mxu0 0.0
    %1596 = vmatprep.subr.mxu0 0.0
    %1597 = vmatpush1.msra.mxu0 %v53
    %1598 = vmatprep.subr.mxu0 0.0
    %1599 = vmatpush1.msra.mxu0 %v52
    %1600 = vmatprep.subr.mxu0 0.0
    %1601 = vmatpush1.msra.mxu0 %v51
    %1602 = vmatprep.subr.mxu0 0.0
    %1603 = vmatpush1.msra.mxu0 %v50
    %1604 = vmatprep.subr.mxu0 0.0
    %1605 = vmatpush2.msra.mxu0 0.0
    %1606 = vmatprep.subr.mxu0 0.0
    %1607 = vmatpush2.msra.mxu0 0.0
    %1608 = vmatprep.subr.mxu0 0.0
    %1609 = vmatpush2.msra.mxu0 0.0
    %1610 = vmatprep.subr.mxu0 0.0
    %1611 = vmatpush2.msra.mxu0 0.0
    %1612 = vmatprep.subr.mxu0 0.0
    %1613 = vmatpush2.msra.mxu0 0.0
    %1614 = vmatprep.subr.mxu0 0.0
    %1615 = vmatpush2.msra.mxu0 0.0
    %1616 = vmatprep.subr.mxu0 0.0
    %1617 = vmatpush2.msra.mxu0 0.0
    %1618 = vmatprep.subr.mxu0 0.0
    %1619 = vmatpush2.msra.mxu0 0.0
    %1620 = vmatprep.subr.mxu0 0.0
    %1621 = vmatpush2.msra.mxu0 0.0
    %1622 = vmatprep.subr.mxu0 0.0
    %1623 = vmatpush2.msra.mxu0 0.0
    %1624 = vmatprep.subr.mxu0 0.0
    %1625 = vmatpush2.msra.mxu0 0.0
    %1626 = vmatprep.subr.mxu0 0.0
    %1627 = vmatpush2.msra.mxu0 0.0
    %1628 = vmatprep.subr.mxu0 0.0
    %1629 = vmatpush2.msra.mxu0 0.0
    %1630 = vmatprep.subr.mxu0 0.0
    %1631 = vmatpush2.msra.mxu0 0.0
    %1632 = vmatprep.subr.mxu0 0.0
    %1633 = vmatpush2.msra.mxu0 0.0
    %1634 = vmatprep.subr.mxu0 0.0
    %1635 = vmatpush2.msra.mxu0 0.0
    %1636 = vmatprep.mubr.f32.mxu0 0.0
    %1637 = vmatmul.mubr.f32.gmra.mxu0 %v1322
    %v1638 = vpop.f32.mrf.mxu0
    %v1639 = vadd.f32 %v145, %v1638
    %v1640 = vpop.f32.mrf.mxu0
    %1641 = vdwg.mxu0
    %v1642 = vadd.f32 %v1569, %v1639
    %v1643 = vsub.f32 0.0, %v1642
    %v1644 = vmul.f32 %v1643, 1.442695
    %v1645 = vpow.pop %v1644
    %v1646 = vadd.f32 %v1645, 1.0
    %v1647 = vrcp.pop %v1646
    %v1648 = vmul.f32 1.0, %v1647
    %1650 = vrot.lane.b32.xlu0 %v1639, 64
    %v1651 = vpop.permute.xlu0 %1650
    %v1653 = vmul.f32 %v1648, %v1651
    %1655 = vrot.lane.b32.xlu0 %v1653, 64
    %v1656 = vpop.permute.xlu0 %1655
    %v1658 = vadd.f32 %v1569, %v1656
    %v1659 = vtanh.pop %v1658
    %v1660 = vsub.f32 1.0, %v1648
    %1662 = vrot.lane.b32.xlu0 %v1659, 96
    %v1663 = vpop.permute.xlu0 %1662
    %v1665 = vmul.f32 %v1660, %v1663
    %v1666 = vmul.f32 %v1648, %v1318
    %v1667 = vadd.f32 %v1665, %v1666
    %v1668 = vsel %vm1498, 1, 0
    %1669 = vset.pattern.permute.xlu0 0
    %1670 = vperm.xlu0 %1669, %v1668
    %v1671 = vpop.permute.xlu0 %1670
    %vm1672 = vcmp.eq.s32.totalorder %v1671, 1
    %v1673 = vsel %vm1672, %v1667, %v1318
    %1675 = vrot.lane.b32.xlu0 %v1673, 96
    %v1676 = vpop.permute.xlu0 %1675
    %v1677 = vsel %vm68, %v1676, 0
    %1679 = vmatprep.subr.mxu0 0.0
    %1680 = vmatpush1.msra.mxu0 0.0
    %1681 = vmatprep.subr.mxu0 0.0
    %1682 = vmatpush1.msra.mxu0 0.0
    %1683 = vmatprep.subr.mxu0 0.0
    %1684 = vmatpush1.msra.mxu0 0.0
    %1685 = vmatprep.subr.mxu0 0.0
    %1686 = vmatpush1.msra.mxu0 0.0
    %1687 = vmatprep.subr.mxu0 0.0
    %1688 = vmatpush1.msra.mxu0 0.0
    %1689 = vmatprep.subr.mxu0 0.0
    %1690 = vmatpush1.msra.mxu0 0.0
    %1691 = vmatprep.subr.mxu0 0.0
    %1692 = vmatpush1.msra.mxu0 0.0
    %1693 = vmatprep.subr.mxu0 0.0
    %1694 = vmatpush1.msra.mxu0 0.0
    %1695 = vmatprep.subr.mxu0 0.0
    %1696 = vmatpush1.msra.mxu0 0.0
    %1697 = vmatprep.subr.mxu0 0.0
    %1698 = vmatpush1.msra.mxu0 0.0
    %1699 = vmatprep.subr.mxu0 0.0
    %1700 = vmatpush1.msra.mxu0 0.0
    %1701 = vmatprep.subr.mxu0 0.0
    %1702 = vmatpush1.msra.mxu0 0.0
    %1703 = vmatprep.subr.mxu0 0.0
    %1704 = vmatpush1.msra.mxu0 %v49
    %1705 = vmatprep.subr.mxu0 0.0
    %1706 = vmatpush1.msra.mxu0 %v48
    %1707 = vmatprep.subr.mxu0 0.0
    %1708 = vmatpush1.msra.mxu0 %v47
    %1709 = vmatprep.subr.mxu0 0.0
    %1710 = vmatpush1.msra.mxu0 %v46
    %1711 = vmatprep.subr.mxu0 0.0
    %1712 = vmatpush2.msra.mxu0 0.0
    %1713 = vmatprep.subr.mxu0 0.0
    %1714 = vmatpush2.msra.mxu0 0.0
    %1715 = vmatprep.subr.mxu0 0.0
    %1716 = vmatpush2.msra.mxu0 0.0
    %1717 = vmatprep.subr.mxu0 0.0
    %1718 = vmatpush2.msra.mxu0 0.0
    %1719 = vmatprep.subr.mxu0 0.0
    %1720 = vmatpush2.msra.mxu0 0.0
    %1721 = vmatprep.subr.mxu0 0.0
    %1722 = vmatpush2.msra.mxu0 0.0
    %1723 = vmatprep.subr.mxu0 0.0
    %1724 = vmatpush2.msra.mxu0 0.0
    %1725 = vmatprep.subr.mxu0 0.0
    %1726 = vmatpush2.msra.mxu0 0.0
    %1727 = vmatprep.subr.mxu0 0.0
    %1728 = vmatpush2.msra.mxu0 0.0
    %1729 = vmatprep.subr.mxu0 0.0
    %1730 = vmatpush2.msra.mxu0 0.0
    %1731 = vmatprep.subr.mxu0 0.0
    %1732 = vmatpush2.msra.mxu0 0.0
    %1733 = vmatprep.subr.mxu0 0.0
    %1734 = vmatpush2.msra.mxu0 0.0
    %1735 = vmatprep.subr.mxu0 0.0
    %1736 = vmatpush2.msra.mxu0 0.0
    %1737 = vmatprep.subr.mxu0 0.0
    %1738 = vmatpush2.msra.mxu0 0.0
    %1739 = vmatprep.subr.mxu0 0.0
    %1740 = vmatpush2.msra.mxu0 0.0
    %1741 = vmatprep.subr.mxu0 0.0
    %1742 = vmatpush2.msra.mxu0 0.0
    %1743 = vmatprep.mubr.f32.mxu0 0.0
    %1744 = vmatmul.mubr.f32.gmra.mxu0 %v1677
    %v1745 = vpop.f32.mrf.mxu0
    %v1746 = vadd.f32 %v254, %v1745
    %v1747 = vpop.f32.mrf.mxu0
    %1748 = vdwg.mxu0
    %1750 = vrot.lane.b32.xlu0 %v1495, 96
    %v1751 = vpop.permute.xlu0 %1750
    %v1752 = vsel %vm68, %v1751, 0
    %1754 = vmatprep.subr.mxu0 0.0
    %1755 = vmatpush1.msra.mxu0 0.0
    %1756 = vmatprep.subr.mxu0 0.0
    %1757 = vmatpush1.msra.mxu0 0.0
    %1758 = vmatprep.subr.mxu0 0.0
    %1759 = vmatpush1.msra.mxu0 0.0
    %1760 = vmatprep.subr.mxu0 0.0
    %1761 = vmatpush1.msra.mxu0 0.0
    %1762 = vmatprep.subr.mxu0 0.0
    %1763 = vmatpush1.msra.mxu0 0.0
    %1764 = vmatprep.subr.mxu0 0.0
    %1765 = vmatpush1.msra.mxu0 0.0
    %1766 = vmatprep.subr.mxu0 0.0
    %1767 = vmatpush1.msra.mxu0 0.0
    %1768 = vmatprep.subr.mxu0 0.0
    %1769 = vmatpush1.msra.mxu0 0.0
    %1770 = vmatprep.subr.mxu0 0.0
    %1771 = vmatpush1.msra.mxu0 0.0
    %1772 = vmatprep.subr.mxu0 0.0
    %1773 = vmatpush1.msra.mxu0 0.0
    %1774 = vmatprep.subr.mxu0 0.0
    %1775 = vmatpush1.msra.mxu0 0.0
    %1776 = vmatprep.subr.mxu0 0.0
    %1777 = vmatpush1.msra.mxu0 0.0
    %1778 = vmatprep.subr.mxu0 0.0
    %1779 = vmatpush1.msra.mxu0 %v58
    %1780 = vmatprep.subr.mxu0 0.0
    %1781 = vmatpush1.msra.mxu0 %v57
    %1782 = vmatprep.subr.mxu0 0.0
    %1783 = vmatpush1.msra.mxu0 %v56
    %1784 = vmatprep.subr.mxu0 0.0
    %1785 = vmatpush1.msra.mxu0 %v55
    %1786 = vmatprep.subr.mxu0 0.0
    %1787 = vmatpush2.msra.mxu0 0.0
    %1788 = vmatprep.subr.mxu0 0.0
    %1789 = vmatpush2.msra.mxu0 0.0
    %1790 = vmatprep.subr.mxu0 0.0
    %1791 = vmatpush2.msra.mxu0 0.0
    %1792 = vmatprep.subr.mxu0 0.0
    %1793 = vmatpush2.msra.mxu0 0.0
    %1794 = vmatprep.subr.mxu0 0.0
    %1795 = vmatpush2.msra.mxu0 0.0
    %1796 = vmatprep.subr.mxu0 0.0
    %1797 = vmatpush2.msra.mxu0 0.0
    %1798 = vmatprep.subr.mxu0 0.0
    %1799 = vmatpush2.msra.mxu0 0.0
    %1800 = vmatprep.subr.mxu0 0.0
    %1801 = vmatpush2.msra.mxu0 0.0
    %1802 = vmatprep.subr.mxu0 0.0
    %1803 = vmatpush2.msra.mxu0 0.0
    %1804 = vmatprep.subr.mxu0 0.0
    %1805 = vmatpush2.msra.mxu0 0.0
    %1806 = vmatprep.subr.mxu0 0.0
    %1807 = vmatpush2.msra.mxu0 0.0
    %1808 = vmatprep.subr.mxu0 0.0
    %1809 = vmatpush2.msra.mxu0 0.0
    %1810 = vmatprep.subr.mxu0 0.0
    %1811 = vmatpush2.msra.mxu0 0.0
    %1812 = vmatprep.subr.mxu0 0.0
    %1813 = vmatpush2.msra.mxu0 0.0
    %1814 = vmatprep.subr.mxu0 0.0
    %1815 = vmatpush2.msra.mxu0 0.0
    %1816 = vmatprep.subr.mxu0 0.0
    %1817 = vmatpush2.msra.mxu0 0.0
    %1818 = vmatprep.mubr.f32.mxu0 0.0
    %1819 = vmatmul.mubr.f32.gmra.mxu0 %v1752
    %v1820 = vpop.f32.mrf.mxu0
    %v1821 = vadd.f32 %v333, %v1820
    %v1822 = vpop.f32.mrf.mxu0
    %1823 = vdwg.mxu0
    %v1824 = vadd.f32 %v1746, %v1821
    %v1825 = vsub.f32 0.0, %v1824
    %v1826 = vmul.f32 %v1825, 1.442695
    %v1827 = vpow.pop %v1826
    %v1828 = vadd.f32 %v1827, 1.0
    %v1829 = vrcp.pop %v1828
    %v1830 = vmul.f32 1.0, %v1829
    %1832 = vrot.lane.b32.xlu0 %v1821, 64
    %v1833 = vpop.permute.xlu0 %1832
    %v1835 = vmul.f32 %v1830, %v1833
    %1837 = vrot.lane.b32.xlu0 %v1835, 64
    %v1838 = vpop.permute.xlu0 %1837
    %v1840 = vadd.f32 %v1746, %v1838
    %v1841 = vtanh.pop %v1840
    %v1842 = vsub.f32 1.0, %v1830
    %1844 = vrot.lane.b32.xlu0 %v1841, 96
    %v1845 = vpop.permute.xlu0 %1844
    %v1847 = vmul.f32 %v1842, %v1845
    %v1848 = vmul.f32 %v1830, %v1495
    %v1849 = vadd.f32 %v1847, %v1848
    %v1850 = vsel %vm1672, %v1849, %v1495
    %s1851 = scalar_lea.vmem %s1, 40
    %v1852 = vld [vmem:[%s1851] sm:$0xff]
    %vm1853 = vcmp.gt.s32.totalorder %v40, 5
    %v1855 = vsel %vm68, %v1852, 0
    %1857 = vmatprep.subr.mxu0 0.0
    %1858 = vmatpush1.msra.mxu0 0.0
    %1859 = vmatprep.subr.mxu0 0.0
    %1860 = vmatpush1.msra.mxu0 0.0
    %1861 = vmatprep.subr.mxu0 0.0
    %1862 = vmatpush1.msra.mxu0 0.0
    %1863 = vmatprep.subr.mxu0 0.0
    %1864 = vmatpush1.msra.mxu0 0.0
    %1865 = vmatprep.subr.mxu0 0.0
    %1866 = vmatpush1.msra.mxu0 0.0
    %1867 = vmatprep.subr.mxu0 0.0
    %1868 = vmatpush1.msra.mxu0 0.0
    %1869 = vmatprep.subr.mxu0 0.0
    %1870 = vmatpush1.msra.mxu0 0.0
    %1871 = vmatprep.subr.mxu0 0.0
    %1872 = vmatpush1.msra.mxu0 0.0
    %1873 = vmatprep.subr.mxu0 0.0
    %1874 = vmatpush1.msra.mxu0 0.0
    %1875 = vmatprep.subr.mxu0 0.0
    %1876 = vmatpush1.msra.mxu0 0.0
    %1877 = vmatprep.subr.mxu0 0.0
    %1878 = vmatpush1.msra.mxu0 0.0
    %1879 = vmatprep.subr.mxu0 0.0
    %1880 = vmatpush1.msra.mxu0 0.0
    %1881 = vmatprep.subr.mxu0 0.0
    %1882 = vmatpush1.msra.mxu0 %v44
    %1883 = vmatprep.subr.mxu0 0.0
    %1884 = vmatpush1.msra.mxu0 %v43
    %1885 = vmatprep.subr.mxu0 0.0
    %1886 = vmatpush1.msra.mxu0 %v42
    %1887 = vmatprep.subr.mxu0 0.0
    %1888 = vmatpush1.msra.mxu0 %v41
    %1889 = vmatprep.subr.mxu0 0.0
    %1890 = vmatpush2.msra.mxu0 0.0
    %1891 = vmatprep.subr.mxu0 0.0
    %1892 = vmatpush2.msra.mxu0 0.0
    %1893 = vmatprep.subr.mxu0 0.0
    %1894 = vmatpush2.msra.mxu0 0.0
    %1895 = vmatprep.subr.mxu0 0.0
    %1896 = vmatpush2.msra.mxu0 0.0
    %1897 = vmatprep.subr.mxu0 0.0
    %1898 = vmatpush2.msra.mxu0 0.0
    %1899 = vmatprep.subr.mxu0 0.0
    %1900 = vmatpush2.msra.mxu0 0.0
    %1901 = vmatprep.subr.mxu0 0.0
    %1902 = vmatpush2.msra.mxu0 0.0
    %1903 = vmatprep.subr.mxu0 0.0
    %1904 = vmatpush2.msra.mxu0 0.0
    %1905 = vmatprep.subr.mxu0 0.0
    %1906 = vmatpush2.msra.mxu0 0.0
    %1907 = vmatprep.subr.mxu0 0.0
    %1908 = vmatpush2.msra.mxu0 0.0
    %1909 = vmatprep.subr.mxu0 0.0
    %1910 = vmatpush2.msra.mxu0 0.0
    %1911 = vmatprep.subr.mxu0 0.0
    %1912 = vmatpush2.msra.mxu0 0.0
    %1913 = vmatprep.subr.mxu0 0.0
    %1914 = vmatpush2.msra.mxu0 0.0
    %1915 = vmatprep.subr.mxu0 0.0
    %1916 = vmatpush2.msra.mxu0 0.0
    %1917 = vmatprep.subr.mxu0 0.0
    %1918 = vmatpush2.msra.mxu0 0.0
    %1919 = vmatprep.subr.mxu0 0.0
    %1920 = vmatpush2.msra.mxu0 0.0
    %1921 = vmatprep.mubr.f32.mxu0 0.0
    %1922 = vmatmul.mubr.f32.gmra.mxu0 %v1855
    %v1923 = vpop.f32.mrf.mxu0
    %v1924 = vadd.f32 %v67, %v1923
    %v1925 = vpop.f32.mrf.mxu0
    %1926 = vdwg.mxu0
    %1927 = vmatprep.subr.mxu0 0.0
    %1928 = vmatpush1.msra.mxu0 0.0
    %1929 = vmatprep.subr.mxu0 0.0
    %1930 = vmatpush1.msra.mxu0 0.0
    %1931 = vmatprep.subr.mxu0 0.0
    %1932 = vmatpush1.msra.mxu0 0.0
    %1933 = vmatprep.subr.mxu0 0.0
    %1934 = vmatpush1.msra.mxu0 0.0
    %1935 = vmatprep.subr.mxu0 0.0
    %1936 = vmatpush1.msra.mxu0 0.0
    %1937 = vmatprep.subr.mxu0 0.0
    %1938 = vmatpush1.msra.mxu0 0.0
    %1939 = vmatprep.subr.mxu0 0.0
    %1940 = vmatpush1.msra.mxu0 0.0
    %1941 = vmatprep.subr.mxu0 0.0
    %1942 = vmatpush1.msra.mxu0 0.0
    %1943 = vmatprep.subr.mxu0 0.0
    %1944 = vmatpush1.msra.mxu0 0.0
    %1945 = vmatprep.subr.mxu0 0.0
    %1946 = vmatpush1.msra.mxu0 0.0
    %1947 = vmatprep.subr.mxu0 0.0
    %1948 = vmatpush1.msra.mxu0 0.0
    %1949 = vmatprep.subr.mxu0 0.0
    %1950 = vmatpush1.msra.mxu0 0.0
    %1951 = vmatprep.subr.mxu0 0.0
    %1952 = vmatpush1.msra.mxu0 %v53
    %1953 = vmatprep.subr.mxu0 0.0
    %1954 = vmatpush1.msra.mxu0 %v52
    %1955 = vmatprep.subr.mxu0 0.0
    %1956 = vmatpush1.msra.mxu0 %v51
    %1957 = vmatprep.subr.mxu0 0.0
    %1958 = vmatpush1.msra.mxu0 %v50
    %1959 = vmatprep.subr.mxu0 0.0
    %1960 = vmatpush2.msra.mxu0 0.0
    %1961 = vmatprep.subr.mxu0 0.0
    %1962 = vmatpush2.msra.mxu0 0.0
    %1963 = vmatprep.subr.mxu0 0.0
    %1964 = vmatpush2.msra.mxu0 0.0
    %1965 = vmatprep.subr.mxu0 0.0
    %1966 = vmatpush2.msra.mxu0 0.0
    %1967 = vmatprep.subr.mxu0 0.0
    %1968 = vmatpush2.msra.mxu0 0.0
    %1969 = vmatprep.subr.mxu0 0.0
    %1970 = vmatpush2.msra.mxu0 0.0
    %1971 = vmatprep.subr.mxu0 0.0
    %1972 = vmatpush2.msra.mxu0 0.0
    %1973 = vmatprep.subr.mxu0 0.0
    %1974 = vmatpush2.msra.mxu0 0.0
    %1975 = vmatprep.subr.mxu0 0.0
    %1976 = vmatpush2.msra.mxu0 0.0
    %1977 = vmatprep.subr.mxu0 0.0
    %1978 = vmatpush2.msra.mxu0 0.0
    %1979 = vmatprep.subr.mxu0 0.0
    %1980 = vmatpush2.msra.mxu0 0.0
    %1981 = vmatprep.subr.mxu0 0.0
    %1982 = vmatpush2.msra.mxu0 0.0
    %1983 = vmatprep.subr.mxu0 0.0
    %1984 = vmatpush2.msra.mxu0 0.0
    %1985 = vmatprep.subr.mxu0 0.0
    %1986 = vmatpush2.msra.mxu0 0.0
    %1987 = vmatprep.subr.mxu0 0.0
    %1988 = vmatpush2.msra.mxu0 0.0
    %1989 = vmatprep.subr.mxu0 0.0
    %1990 = vmatpush2.msra.mxu0 0.0
    %1991 = vmatprep.mubr.f32.mxu0 0.0
    %1992 = vmatmul.mubr.f32.gmra.mxu0 %v1677
    %v1993 = vpop.f32.mrf.mxu0
    %v1994 = vadd.f32 %v145, %v1993
    %v1995 = vpop.f32.mrf.mxu0
    %1996 = vdwg.mxu0
    %v1997 = vadd.f32 %v1924, %v1994
    %v1998 = vsub.f32 0.0, %v1997
    %v1999 = vmul.f32 %v1998, 1.442695
    %v2000 = vpow.pop %v1999
    %v2001 = vadd.f32 %v2000, 1.0
    %v2002 = vrcp.pop %v2001
    %v2003 = vmul.f32 1.0, %v2002
    %2005 = vrot.lane.b32.xlu0 %v1994, 64
    %v2006 = vpop.permute.xlu0 %2005
    %v2008 = vmul.f32 %v2003, %v2006
    %2010 = vrot.lane.b32.xlu0 %v2008, 64
    %v2011 = vpop.permute.xlu0 %2010
    %v2013 = vadd.f32 %v1924, %v2011
    %v2014 = vtanh.pop %v2013
    %v2015 = vsub.f32 1.0, %v2003
    %2017 = vrot.lane.b32.xlu0 %v2014, 96
    %v2018 = vpop.permute.xlu0 %2017
    %v2020 = vmul.f32 %v2015, %v2018
    %v2021 = vmul.f32 %v2003, %v1673
    %v2022 = vadd.f32 %v2020, %v2021
    %v2023 = vsel %vm1853, 1, 0
    %2024 = vset.pattern.permute.xlu0 0
    %2025 = vperm.xlu0 %2024, %v2023
    %v2026 = vpop.permute.xlu0 %2025
    %vm2027 = vcmp.eq.s32.totalorder %v2026, 1
    %v2028 = vsel %vm2027, %v2022, %v1673
    %2030 = vrot.lane.b32.xlu0 %v2028, 96
    %v2031 = vpop.permute.xlu0 %2030
    %v2032 = vsel %vm68, %v2031, 0
    %2034 = vmatprep.subr.mxu0 0.0
    %2035 = vmatpush1.msra.mxu0 0.0
    %2036 = vmatprep.subr.mxu0 0.0
    %2037 = vmatpush1.msra.mxu0 0.0
    %2038 = vmatprep.subr.mxu0 0.0
    %2039 = vmatpush1.msra.mxu0 0.0
    %2040 = vmatprep.subr.mxu0 0.0
    %2041 = vmatpush1.msra.mxu0 0.0
    %2042 = vmatprep.subr.mxu0 0.0
    %2043 = vmatpush1.msra.mxu0 0.0
    %2044 = vmatprep.subr.mxu0 0.0
    %2045 = vmatpush1.msra.mxu0 0.0
    %2046 = vmatprep.subr.mxu0 0.0
    %2047 = vmatpush1.msra.mxu0 0.0
    %2048 = vmatprep.subr.mxu0 0.0
    %2049 = vmatpush1.msra.mxu0 0.0
    %2050 = vmatprep.subr.mxu0 0.0
    %2051 = vmatpush1.msra.mxu0 0.0
    %2052 = vmatprep.subr.mxu0 0.0
    %2053 = vmatpush1.msra.mxu0 0.0
    %2054 = vmatprep.subr.mxu0 0.0
    %2055 = vmatpush1.msra.mxu0 0.0
    %2056 = vmatprep.subr.mxu0 0.0
    %2057 = vmatpush1.msra.mxu0 0.0
    %2058 = vmatprep.subr.mxu0 0.0
    %2059 = vmatpush1.msra.mxu0 %v49
    %2060 = vmatprep.subr.mxu0 0.0
    %2061 = vmatpush1.msra.mxu0 %v48
    %2062 = vmatprep.subr.mxu0 0.0
    %2063 = vmatpush1.msra.mxu0 %v47
    %2064 = vmatprep.subr.mxu0 0.0
    %2065 = vmatpush1.msra.mxu0 %v46
    %2066 = vmatprep.subr.mxu0 0.0
    %2067 = vmatpush2.msra.mxu0 0.0
    %2068 = vmatprep.subr.mxu0 0.0
    %2069 = vmatpush2.msra.mxu0 0.0
    %2070 = vmatprep.subr.mxu0 0.0
    %2071 = vmatpush2.msra.mxu0 0.0
    %2072 = vmatprep.subr.mxu0 0.0
    %2073 = vmatpush2.msra.mxu0 0.0
    %2074 = vmatprep.subr.mxu0 0.0
    %2075 = vmatpush2.msra.mxu0 0.0
    %2076 = vmatprep.subr.mxu0 0.0
    %2077 = vmatpush2.msra.mxu0 0.0
    %2078 = vmatprep.subr.mxu0 0.0
    %2079 = vmatpush2.msra.mxu0 0.0
    %2080 = vmatprep.subr.mxu0 0.0
    %2081 = vmatpush2.msra.mxu0 0.0
    %2082 = vmatprep.subr.mxu0 0.0
    %2083 = vmatpush2.msra.mxu0 0.0
    %2084 = vmatprep.subr.mxu0 0.0
    %2085 = vmatpush2.msra.mxu0 0.0
    %2086 = vmatprep.subr.mxu0 0.0
    %2087 = vmatpush2.msra.mxu0 0.0
    %2088 = vmatprep.subr.mxu0 0.0
    %2089 = vmatpush2.msra.mxu0 0.0
    %2090 = vmatprep.subr.mxu0 0.0
    %2091 = vmatpush2.msra.mxu0 0.0
    %2092 = vmatprep.subr.mxu0 0.0
    %2093 = vmatpush2.msra.mxu0 0.0
    %2094 = vmatprep.subr.mxu0 0.0
    %2095 = vmatpush2.msra.mxu0 0.0
    %2096 = vmatprep.subr.mxu0 0.0
    %2097 = vmatpush2.msra.mxu0 0.0
    %2098 = vmatprep.mubr.f32.mxu0 0.0
    %2099 = vmatmul.mubr.f32.gmra.mxu0 %v2032
    %v2100 = vpop.f32.mrf.mxu0
    %v2101 = vadd.f32 %v254, %v2100
    %v2102 = vpop.f32.mrf.mxu0
    %2103 = vdwg.mxu0
    %2105 = vrot.lane.b32.xlu0 %v1850, 96
    %v2106 = vpop.permute.xlu0 %2105
    %v2107 = vsel %vm68, %v2106, 0
    %2109 = vmatprep.subr.mxu0 0.0
    %2110 = vmatpush1.msra.mxu0 0.0
    %2111 = vmatprep.subr.mxu0 0.0
    %2112 = vmatpush1.msra.mxu0 0.0
    %2113 = vmatprep.subr.mxu0 0.0
    %2114 = vmatpush1.msra.mxu0 0.0
    %2115 = vmatprep.subr.mxu0 0.0
    %2116 = vmatpush1.msra.mxu0 0.0
    %2117 = vmatprep.subr.mxu0 0.0
    %2118 = vmatpush1.msra.mxu0 0.0
    %2119 = vmatprep.subr.mxu0 0.0
    %2120 = vmatpush1.msra.mxu0 0.0
    %2121 = vmatprep.subr.mxu0 0.0
    %2122 = vmatpush1.msra.mxu0 0.0
    %2123 = vmatprep.subr.mxu0 0.0
    %2124 = vmatpush1.msra.mxu0 0.0
    %2125 = vmatprep.subr.mxu0 0.0
    %2126 = vmatpush1.msra.mxu0 0.0
    %2127 = vmatprep.subr.mxu0 0.0
    %2128 = vmatpush1.msra.mxu0 0.0
    %2129 = vmatprep.subr.mxu0 0.0
    %2130 = vmatpush1.msra.mxu0 0.0
    %2131 = vmatprep.subr.mxu0 0.0
    %2132 = vmatpush1.msra.mxu0 0.0
    %2133 = vmatprep.subr.mxu0 0.0
    %2134 = vmatpush1.msra.mxu0 %v58
    %2135 = vmatprep.subr.mxu0 0.0
    %2136 = vmatpush1.msra.mxu0 %v57
    %2137 = vmatprep.subr.mxu0 0.0
    %2138 = vmatpush1.msra.mxu0 %v56
    %2139 = vmatprep.subr.mxu0 0.0
    %2140 = vmatpush1.msra.mxu0 %v55
    %2141 = vmatprep.subr.mxu0 0.0
    %2142 = vmatpush2.msra.mxu0 0.0
    %2143 = vmatprep.subr.mxu0 0.0
    %2144 = vmatpush2.msra.mxu0 0.0
    %2145 = vmatprep.subr.mxu0 0.0
    %2146 = vmatpush2.msra.mxu0 0.0
    %2147 = vmatprep.subr.mxu0 0.0
    %2148 = vmatpush2.msra.mxu0 0.0
    %2149 = vmatprep.subr.mxu0 0.0
    %2150 = vmatpush2.msra.mxu0 0.0
    %2151 = vmatprep.subr.mxu0 0.0
    %2152 = vmatpush2.msra.mxu0 0.0
    %2153 = vmatprep.subr.mxu0 0.0
    %2154 = vmatpush2.msra.mxu0 0.0
    %2155 = vmatprep.subr.mxu0 0.0
    %2156 = vmatpush2.msra.mxu0 0.0
    %2157 = vmatprep.subr.mxu0 0.0
    %2158 = vmatpush2.msra.mxu0 0.0
    %2159 = vmatprep.subr.mxu0 0.0
    %2160 = vmatpush2.msra.mxu0 0.0
    %2161 = vmatprep.subr.mxu0 0.0
    %2162 = vmatpush2.msra.mxu0 0.0
    %2163 = vmatprep.subr.mxu0 0.0
    %2164 = vmatpush2.msra.mxu0 0.0
    %2165 = vmatprep.subr.mxu0 0.0
    %2166 = vmatpush2.msra.mxu0 0.0
    %2167 = vmatprep.subr.mxu0 0.0
    %2168 = vmatpush2.msra.mxu0 0.0
    %2169 = vmatprep.subr.mxu0 0.0
    %2170 = vmatpush2.msra.mxu0 0.0
    %2171 = vmatprep.subr.mxu0 0.0
    %2172 = vmatpush2.msra.mxu0 0.0
    %2173 = vmatprep.mubr.f32.mxu0 0.0
    %2174 = vmatmul.mubr.f32.gmra.mxu0 %v2107
    %v2175 = vpop.f32.mrf.mxu0
    %v2176 = vadd.f32 %v333, %v2175
    %v2177 = vpop.f32.mrf.mxu0
    %2178 = vdwg.mxu0
    %v2179 = vadd.f32 %v2101, %v2176
    %v2180 = vsub.f32 0.0, %v2179
    %v2181 = vmul.f32 %v2180, 1.442695
    %v2182 = vpow.pop %v2181
    %v2183 = vadd.f32 %v2182, 1.0
    %v2184 = vrcp.pop %v2183
    %v2185 = vmul.f32 1.0, %v2184
    %2187 = vrot.lane.b32.xlu0 %v2176, 64
    %v2188 = vpop.permute.xlu0 %2187
    %v2190 = vmul.f32 %v2185, %v2188
    %2192 = vrot.lane.b32.xlu0 %v2190, 64
    %v2193 = vpop.permute.xlu0 %2192
    %v2195 = vadd.f32 %v2101, %v2193
    %v2196 = vtanh.pop %v2195
    %v2197 = vsub.f32 1.0, %v2185
    %2199 = vrot.lane.b32.xlu0 %v2196, 96
    %v2200 = vpop.permute.xlu0 %2199
    %v2202 = vmul.f32 %v2197, %v2200
    %v2203 = vmul.f32 %v2185, %v1850
    %v2204 = vadd.f32 %v2202, %v2203
    %v2205 = vsel %vm2027, %v2204, %v1850
    %s2206 = scalar_lea.vmem %s1, 48
    %v2207 = vld [vmem:[%s2206] sm:$0xff]
    %vm2208 = vcmp.gt.s32.totalorder %v40, 6
    %v2210 = vsel %vm68, %v2207, 0
    %2212 = vmatprep.subr.mxu0 0.0
    %2213 = vmatpush1.msra.mxu0 0.0
    %2214 = vmatprep.subr.mxu0 0.0
    %2215 = vmatpush1.msra.mxu0 0.0
    %2216 = vmatprep.subr.mxu0 0.0
    %2217 = vmatpush1.msra.mxu0 0.0
    %2218 = vmatprep.subr.mxu0 0.0
    %2219 = vmatpush1.msra.mxu0 0.0
    %2220 = vmatprep.subr.mxu0 0.0
    %2221 = vmatpush1.msra.mxu0 0.0
    %2222 = vmatprep.subr.mxu0 0.0
    %2223 = vmatpush1.msra.mxu0 0.0
    %2224 = vmatprep.subr.mxu0 0.0
    %2225 = vmatpush1.msra.mxu0 0.0
    %2226 = vmatprep.subr.mxu0 0.0
    %2227 = vmatpush1.msra.mxu0 0.0
    %2228 = vmatprep.subr.mxu0 0.0
    %2229 = vmatpush1.msra.mxu0 0.0
    %2230 = vmatprep.subr.mxu0 0.0
    %2231 = vmatpush1.msra.mxu0 0.0
    %2232 = vmatprep.subr.mxu0 0.0
    %2233 = vmatpush1.msra.mxu0 0.0
    %2234 = vmatprep.subr.mxu0 0.0
    %2235 = vmatpush1.msra.mxu0 0.0
    %2236 = vmatprep.subr.mxu0 0.0
    %2237 = vmatpush1.msra.mxu0 %v44
    %2238 = vmatprep.subr.mxu0 0.0
    %2239 = vmatpush1.msra.mxu0 %v43
    %2240 = vmatprep.subr.mxu0 0.0
    %2241 = vmatpush1.msra.mxu0 %v42
    %2242 = vmatprep.subr.mxu0 0.0
    %2243 = vmatpush1.msra.mxu0 %v41
    %2244 = vmatprep.subr.mxu0 0.0
    %2245 = vmatpush2.msra.mxu0 0.0
    %2246 = vmatprep.subr.mxu0 0.0
    %2247 = vmatpush2.msra.mxu0 0.0
    %2248 = vmatprep.subr.mxu0 0.0
    %2249 = vmatpush2.msra.mxu0 0.0
    %2250 = vmatprep.subr.mxu0 0.0
    %2251 = vmatpush2.msra.mxu0 0.0
    %2252 = vmatprep.subr.mxu0 0.0
    %2253 = vmatpush2.msra.mxu0 0.0
    %2254 = vmatprep.subr.mxu0 0.0
    %2255 = vmatpush2.msra.mxu0 0.0
    %2256 = vmatprep.subr.mxu0 0.0
    %2257 = vmatpush2.msra.mxu0 0.0
    %2258 = vmatprep.subr.mxu0 0.0
    %2259 = vmatpush2.msra.mxu0 0.0
    %2260 = vmatprep.subr.mxu0 0.0
    %2261 = vmatpush2.msra.mxu0 0.0
    %2262 = vmatprep.subr.mxu0 0.0
    %2263 = vmatpush2.msra.mxu0 0.0
    %2264 = vmatprep.subr.mxu0 0.0
    %2265 = vmatpush2.msra.mxu0 0.0
    %2266 = vmatprep.subr.mxu0 0.0
    %2267 = vmatpush2.msra.mxu0 0.0
    %2268 = vmatprep.subr.mxu0 0.0
    %2269 = vmatpush2.msra.mxu0 0.0
    %2270 = vmatprep.subr.mxu0 0.0
    %2271 = vmatpush2.msra.mxu0 0.0
    %2272 = vmatprep.subr.mxu0 0.0
    %2273 = vmatpush2.msra.mxu0 0.0
    %2274 = vmatprep.subr.mxu0 0.0
    %2275 = vmatpush2.msra.mxu0 0.0
    %2276 = vmatprep.mubr.f32.mxu0 0.0
    %2277 = vmatmul.mubr.f32.gmra.mxu0 %v2210
    %v2278 = vpop.f32.mrf.mxu0
    %v2279 = vadd.f32 %v67, %v2278
    %v2280 = vpop.f32.mrf.mxu0
    %2281 = vdwg.mxu0
    %2282 = vmatprep.subr.mxu0 0.0
    %2283 = vmatpush1.msra.mxu0 0.0
    %2284 = vmatprep.subr.mxu0 0.0
    %2285 = vmatpush1.msra.mxu0 0.0
    %2286 = vmatprep.subr.mxu0 0.0
    %2287 = vmatpush1.msra.mxu0 0.0
    %2288 = vmatprep.subr.mxu0 0.0
    %2289 = vmatpush1.msra.mxu0 0.0
    %2290 = vmatprep.subr.mxu0 0.0
    %2291 = vmatpush1.msra.mxu0 0.0
    %2292 = vmatprep.subr.mxu0 0.0
    %2293 = vmatpush1.msra.mxu0 0.0
    %2294 = vmatprep.subr.mxu0 0.0
    %2295 = vmatpush1.msra.mxu0 0.0
    %2296 = vmatprep.subr.mxu0 0.0
    %2297 = vmatpush1.msra.mxu0 0.0
    %2298 = vmatprep.subr.mxu0 0.0
    %2299 = vmatpush1.msra.mxu0 0.0
    %2300 = vmatprep.subr.mxu0 0.0
    %2301 = vmatpush1.msra.mxu0 0.0
    %2302 = vmatprep.subr.mxu0 0.0
    %2303 = vmatpush1.msra.mxu0 0.0
    %2304 = vmatprep.subr.mxu0 0.0
    %2305 = vmatpush1.msra.mxu0 0.0
    %2306 = vmatprep.subr.mxu0 0.0
    %2307 = vmatpush1.msra.mxu0 %v53
    %2308 = vmatprep.subr.mxu0 0.0
    %2309 = vmatpush1.msra.mxu0 %v52
    %2310 = vmatprep.subr.mxu0 0.0
    %2311 = vmatpush1.msra.mxu0 %v51
    %2312 = vmatprep.subr.mxu0 0.0
    %2313 = vmatpush1.msra.mxu0 %v50
    %2314 = vmatprep.subr.mxu0 0.0
    %2315 = vmatpush2.msra.mxu0 0.0
    %2316 = vmatprep.subr.mxu0 0.0
    %2317 = vmatpush2.msra.mxu0 0.0
    %2318 = vmatprep.subr.mxu0 0.0
    %2319 = vmatpush2.msra.mxu0 0.0
    %2320 = vmatprep.subr.mxu0 0.0
    %2321 = vmatpush2.msra.mxu0 0.0
    %2322 = vmatprep.subr.mxu0 0.0
    %2323 = vmatpush2.msra.mxu0 0.0
    %2324 = vmatprep.subr.mxu0 0.0
    %2325 = vmatpush2.msra.mxu0 0.0
    %2326 = vmatprep.subr.mxu0 0.0
    %2327 = vmatpush2.msra.mxu0 0.0
    %2328 = vmatprep.subr.mxu0 0.0
    %2329 = vmatpush2.msra.mxu0 0.0
    %2330 = vmatprep.subr.mxu0 0.0
    %2331 = vmatpush2.msra.mxu0 0.0
    %2332 = vmatprep.subr.mxu0 0.0
    %2333 = vmatpush2.msra.mxu0 0.0
    %2334 = vmatprep.subr.mxu0 0.0
    %2335 = vmatpush2.msra.mxu0 0.0
    %2336 = vmatprep.subr.mxu0 0.0
    %2337 = vmatpush2.msra.mxu0 0.0
    %2338 = vmatprep.subr.mxu0 0.0
    %2339 = vmatpush2.msra.mxu0 0.0
    %2340 = vmatprep.subr.mxu0 0.0
    %2341 = vmatpush2.msra.mxu0 0.0
    %2342 = vmatprep.subr.mxu0 0.0
    %2343 = vmatpush2.msra.mxu0 0.0
    %2344 = vmatprep.subr.mxu0 0.0
    %2345 = vmatpush2.msra.mxu0 0.0
    %2346 = vmatprep.mubr.f32.mxu0 0.0
    %2347 = vmatmul.mubr.f32.gmra.mxu0 %v2032
    %v2348 = vpop.f32.mrf.mxu0
    %v2349 = vadd.f32 %v145, %v2348
    %v2350 = vpop.f32.mrf.mxu0
    %2351 = vdwg.mxu0
    %v2352 = vadd.f32 %v2279, %v2349
    %v2353 = vsub.f32 0.0, %v2352
    %v2354 = vmul.f32 %v2353, 1.442695
    %v2355 = vpow.pop %v2354
    %v2356 = vadd.f32 %v2355, 1.0
    %v2357 = vrcp.pop %v2356
    %v2358 = vmul.f32 1.0, %v2357
    %2360 = vrot.lane.b32.xlu0 %v2349, 64
    %v2361 = vpop.permute.xlu0 %2360
    %v2363 = vmul.f32 %v2358, %v2361
    %2365 = vrot.lane.b32.xlu0 %v2363, 64
    %v2366 = vpop.permute.xlu0 %2365
    %v2368 = vadd.f32 %v2279, %v2366
    %v2369 = vtanh.pop %v2368
    %v2370 = vsub.f32 1.0, %v2358
    %2372 = vrot.lane.b32.xlu0 %v2369, 96
    %v2373 = vpop.permute.xlu0 %2372
    %v2375 = vmul.f32 %v2370, %v2373
    %v2376 = vmul.f32 %v2358, %v2028
    %v2377 = vadd.f32 %v2375, %v2376
    %v2378 = vsel %vm2208, 1, 0
    %2379 = vset.pattern.permute.xlu0 0
    %2380 = vperm.xlu0 %2379, %v2378
    %v2381 = vpop.permute.xlu0 %2380
    %vm2382 = vcmp.eq.s32.totalorder %v2381, 1
    %v2383 = vsel %vm2382, %v2377, %v2028
    %2385 = vrot.lane.b32.xlu0 %v2383, 96
    %v2386 = vpop.permute.xlu0 %2385
    %v2387 = vsel %vm68, %v2386, 0
    %2389 = vmatprep.subr.mxu0 0.0
    %2390 = vmatpush1.msra.mxu0 0.0
    %2391 = vmatprep.subr.mxu0 0.0
    %2392 = vmatpush1.msra.mxu0 0.0
    %2393 = vmatprep.subr.mxu0 0.0
    %2394 = vmatpush1.msra.mxu0 0.0
    %2395 = vmatprep.subr.mxu0 0.0
    %2396 = vmatpush1.msra.mxu0 0.0
    %2397 = vmatprep.subr.mxu0 0.0
    %2398 = vmatpush1.msra.mxu0 0.0
    %2399 = vmatprep.subr.mxu0 0.0
    %2400 = vmatpush1.msra.mxu0 0.0
    %2401 = vmatprep.subr.mxu0 0.0
    %2402 = vmatpush1.msra.mxu0 0.0
    %2403 = vmatprep.subr.mxu0 0.0
    %2404 = vmatpush1.msra.mxu0 0.0
    %2405 = vmatprep.subr.mxu0 0.0
    %2406 = vmatpush1.msra.mxu0 0.0
    %2407 = vmatprep.subr.mxu0 0.0
    %2408 = vmatpush1.msra.mxu0 0.0
    %2409 = vmatprep.subr.mxu0 0.0
    %2410 = vmatpush1.msra.mxu0 0.0
    %2411 = vmatprep.subr.mxu0 0.0
    %2412 = vmatpush1.msra.mxu0 0.0
    %2413 = vmatprep.subr.mxu0 0.0
    %2414 = vmatpush1.msra.mxu0 %v49
    %2415 = vmatprep.subr.mxu0 0.0
    %2416 = vmatpush1.msra.mxu0 %v48
    %2417 = vmatprep.subr.mxu0 0.0
    %2418 = vmatpush1.msra.mxu0 %v47
    %2419 = vmatprep.subr.mxu0 0.0
    %2420 = vmatpush1.msra.mxu0 %v46
    %2421 = vmatprep.subr.mxu0 0.0
    %2422 = vmatpush2.msra.mxu0 0.0
    %2423 = vmatprep.subr.mxu0 0.0
    %2424 = vmatpush2.msra.mxu0 0.0
    %2425 = vmatprep.subr.mxu0 0.0
    %2426 = vmatpush2.msra.mxu0 0.0
    %2427 = vmatprep.subr.mxu0 0.0
    %2428 = vmatpush2.msra.mxu0 0.0
    %2429 = vmatprep.subr.mxu0 0.0
    %2430 = vmatpush2.msra.mxu0 0.0
    %2431 = vmatprep.subr.mxu0 0.0
    %2432 = vmatpush2.msra.mxu0 0.0
    %2433 = vmatprep.subr.mxu0 0.0
    %2434 = vmatpush2.msra.mxu0 0.0
    %2435 = vmatprep.subr.mxu0 0.0
    %2436 = vmatpush2.msra.mxu0 0.0
    %2437 = vmatprep.subr.mxu0 0.0
    %2438 = vmatpush2.msra.mxu0 0.0
    %2439 = vmatprep.subr.mxu0 0.0
    %2440 = vmatpush2.msra.mxu0 0.0
    %2441 = vmatprep.subr.mxu0 0.0
    %2442 = vmatpush2.msra.mxu0 0.0
    %2443 = vmatprep.subr.mxu0 0.0
    %2444 = vmatpush2.msra.mxu0 0.0
    %2445 = vmatprep.subr.mxu0 0.0
    %2446 = vmatpush2.msra.mxu0 0.0
    %2447 = vmatprep.subr.mxu0 0.0
    %2448 = vmatpush2.msra.mxu0 0.0
    %2449 = vmatprep.subr.mxu0 0.0
    %2450 = vmatpush2.msra.mxu0 0.0
    %2451 = vmatprep.subr.mxu0 0.0
    %2452 = vmatpush2.msra.mxu0 0.0
    %2453 = vmatprep.mubr.f32.mxu0 0.0
    %2454 = vmatmul.mubr.f32.gmra.mxu0 %v2387
    %v2455 = vpop.f32.mrf.mxu0
    %v2456 = vadd.f32 %v254, %v2455
    %v2457 = vpop.f32.mrf.mxu0
    %2458 = vdwg.mxu0
    %2460 = vrot.lane.b32.xlu0 %v2205, 96
    %v2461 = vpop.permute.xlu0 %2460
    %v2462 = vsel %vm68, %v2461, 0
    %2464 = vmatprep.subr.mxu0 0.0
    %2465 = vmatpush1.msra.mxu0 0.0
    %2466 = vmatprep.subr.mxu0 0.0
    %2467 = vmatpush1.msra.mxu0 0.0
    %2468 = vmatprep.subr.mxu0 0.0
    %2469 = vmatpush1.msra.mxu0 0.0
    %2470 = vmatprep.subr.mxu0 0.0
    %2471 = vmatpush1.msra.mxu0 0.0
    %2472 = vmatprep.subr.mxu0 0.0
    %2473 = vmatpush1.msra.mxu0 0.0
    %2474 = vmatprep.subr.mxu0 0.0
    %2475 = vmatpush1.msra.mxu0 0.0
    %2476 = vmatprep.subr.mxu0 0.0
    %2477 = vmatpush1.msra.mxu0 0.0
    %2478 = vmatprep.subr.mxu0 0.0
    %2479 = vmatpush1.msra.mxu0 0.0
    %2480 = vmatprep.subr.mxu0 0.0
    %2481 = vmatpush1.msra.mxu0 0.0
    %2482 = vmatprep.subr.mxu0 0.0
    %2483 = vmatpush1.msra.mxu0 0.0
    %2484 = vmatprep.subr.mxu0 0.0
    %2485 = vmatpush1.msra.mxu0 0.0
    %2486 = vmatprep.subr.mxu0 0.0
    %2487 = vmatpush1.msra.mxu0 0.0
    %2488 = vmatprep.subr.mxu0 0.0
    %2489 = vmatpush1.msra.mxu0 %v58
    %2490 = vmatprep.subr.mxu0 0.0
    %2491 = vmatpush1.msra.mxu0 %v57
    %2492 = vmatprep.subr.mxu0 0.0
    %2493 = vmatpush1.msra.mxu0 %v56
    %2494 = vmatprep.subr.mxu0 0.0
    %2495 = vmatpush1.msra.mxu0 %v55
    %2496 = vmatprep.subr.mxu0 0.0
    %2497 = vmatpush2.msra.mxu0 0.0
    %2498 = vmatprep.subr.mxu0 0.0
    %2499 = vmatpush2.msra.mxu0 0.0
    %2500 = vmatprep.subr.mxu0 0.0
    %2501 = vmatpush2.msra.mxu0 0.0
    %2502 = vmatprep.subr.mxu0 0.0
    %2503 = vmatpush2.msra.mxu0 0.0
    %2504 = vmatprep.subr.mxu0 0.0
    %2505 = vmatpush2.msra.mxu0 0.0
    %2506 = vmatprep.subr.mxu0 0.0
    %2507 = vmatpush2.msra.mxu0 0.0
    %2508 = vmatprep.subr.mxu0 0.0
    %2509 = vmatpush2.msra.mxu0 0.0
    %2510 = vmatprep.subr.mxu0 0.0
    %2511 = vmatpush2.msra.mxu0 0.0
    %2512 = vmatprep.subr.mxu0 0.0
    %2513 = vmatpush2.msra.mxu0 0.0
    %2514 = vmatprep.subr.mxu0 0.0
    %2515 = vmatpush2.msra.mxu0 0.0
    %2516 = vmatprep.subr.mxu0 0.0
    %2517 = vmatpush2.msra.mxu0 0.0
    %2518 = vmatprep.subr.mxu0 0.0
    %2519 = vmatpush2.msra.mxu0 0.0
    %2520 = vmatprep.subr.mxu0 0.0
    %2521 = vmatpush2.msra.mxu0 0.0
    %2522 = vmatprep.subr.mxu0 0.0
    %2523 = vmatpush2.msra.mxu0 0.0
    %2524 = vmatprep.subr.mxu0 0.0
    %2525 = vmatpush2.msra.mxu0 0.0
    %2526 = vmatprep.subr.mxu0 0.0
    %2527 = vmatpush2.msra.mxu0 0.0
    %2528 = vmatprep.mubr.f32.mxu0 0.0
    %2529 = vmatmul.mubr.f32.gmra.mxu0 %v2462
    %v2530 = vpop.f32.mrf.mxu0
    %v2531 = vadd.f32 %v333, %v2530
    %v2532 = vpop.f32.mrf.mxu0
    %2533 = vdwg.mxu0
    %v2534 = vadd.f32 %v2456, %v2531
    %v2535 = vsub.f32 0.0, %v2534
    %v2536 = vmul.f32 %v2535, 1.442695
    %v2537 = vpow.pop %v2536
    %v2538 = vadd.f32 %v2537, 1.0
    %v2539 = vrcp.pop %v2538
    %v2540 = vmul.f32 1.0, %v2539
    %2542 = vrot.lane.b32.xlu0 %v2531, 64
    %v2543 = vpop.permute.xlu0 %2542
    %v2545 = vmul.f32 %v2540, %v2543
    %2547 = vrot.lane.b32.xlu0 %v2545, 64
    %v2548 = vpop.permute.xlu0 %2547
    %v2550 = vadd.f32 %v2456, %v2548
    %v2551 = vtanh.pop %v2550
    %v2552 = vsub.f32 1.0, %v2540
    %2554 = vrot.lane.b32.xlu0 %v2551, 96
    %v2555 = vpop.permute.xlu0 %2554
    %v2557 = vmul.f32 %v2552, %v2555
    %v2558 = vmul.f32 %v2540, %v2205
    %v2559 = vadd.f32 %v2557, %v2558
    %v2560 = vsel %vm2382, %v2559, %v2205
    %s2561 = scalar_lea.vmem %s1, 56
    %v2562 = vld [vmem:[%s2561] sm:$0xff]
    %vm2563 = vcmp.gt.s32.totalorder %v40, 7
    %v2565 = vsel %vm68, %v2562, 0
    %2567 = vmatprep.subr.mxu0 0.0
    %2568 = vmatpush1.msra.mxu0 0.0
    %2569 = vmatprep.subr.mxu0 0.0
    %2570 = vmatpush1.msra.mxu0 0.0
    %2571 = vmatprep.subr.mxu0 0.0
    %2572 = vmatpush1.msra.mxu0 0.0
    %2573 = vmatprep.subr.mxu0 0.0
    %2574 = vmatpush1.msra.mxu0 0.0
    %2575 = vmatprep.subr.mxu0 0.0
    %2576 = vmatpush1.msra.mxu0 0.0
    %2577 = vmatprep.subr.mxu0 0.0
    %2578 = vmatpush1.msra.mxu0 0.0
    %2579 = vmatprep.subr.mxu0 0.0
    %2580 = vmatpush1.msra.mxu0 0.0
    %2581 = vmatprep.subr.mxu0 0.0
    %2582 = vmatpush1.msra.mxu0 0.0
    %2583 = vmatprep.subr.mxu0 0.0
    %2584 = vmatpush1.msra.mxu0 0.0
    %2585 = vmatprep.subr.mxu0 0.0
    %2586 = vmatpush1.msra.mxu0 0.0
    %2587 = vmatprep.subr.mxu0 0.0
    %2588 = vmatpush1.msra.mxu0 0.0
    %2589 = vmatprep.subr.mxu0 0.0
    %2590 = vmatpush1.msra.mxu0 0.0
    %2591 = vmatprep.subr.mxu0 0.0
    %2592 = vmatpush1.msra.mxu0 %v44
    %2593 = vmatprep.subr.mxu0 0.0
    %2594 = vmatpush1.msra.mxu0 %v43
    %2595 = vmatprep.subr.mxu0 0.0
    %2596 = vmatpush1.msra.mxu0 %v42
    %2597 = vmatprep.subr.mxu0 0.0
    %2598 = vmatpush1.msra.mxu0 %v41
    %2599 = vmatprep.subr.mxu0 0.0
    %2600 = vmatpush2.msra.mxu0 0.0
    %2601 = vmatprep.subr.mxu0 0.0
    %2602 = vmatpush2.msra.mxu0 0.0
    %2603 = vmatprep.subr.mxu0 0.0
    %2604 = vmatpush2.msra.mxu0 0.0
    %2605 = vmatprep.subr.mxu0 0.0
    %2606 = vmatpush2.msra.mxu0 0.0
    %2607 = vmatprep.subr.mxu0 0.0
    %2608 = vmatpush2.msra.mxu0 0.0
    %2609 = vmatprep.subr.mxu0 0.0
    %2610 = vmatpush2.msra.mxu0 0.0
    %2611 = vmatprep.subr.mxu0 0.0
    %2612 = vmatpush2.msra.mxu0 0.0
    %2613 = vmatprep.subr.mxu0 0.0
    %2614 = vmatpush2.msra.mxu0 0.0
    %2615 = vmatprep.subr.mxu0 0.0
    %2616 = vmatpush2.msra.mxu0 0.0
    %2617 = vmatprep.subr.mxu0 0.0
    %2618 = vmatpush2.msra.mxu0 0.0
    %2619 = vmatprep.subr.mxu0 0.0
    %2620 = vmatpush2.msra.mxu0 0.0
    %2621 = vmatprep.subr.mxu0 0.0
    %2622 = vmatpush2.msra.mxu0 0.0
    %2623 = vmatprep.subr.mxu0 0.0
    %2624 = vmatpush2.msra.mxu0 0.0
    %2625 = vmatprep.subr.mxu0 0.0
    %2626 = vmatpush2.msra.mxu0 0.0
    %2627 = vmatprep.subr.mxu0 0.0
    %2628 = vmatpush2.msra.mxu0 0.0
    %2629 = vmatprep.subr.mxu0 0.0
    %2630 = vmatpush2.msra.mxu0 0.0
    %2631 = vmatprep.mubr.f32.mxu0 0.0
    %2632 = vmatmul.mubr.f32.gmra.mxu0 %v2565
    %v2633 = vpop.f32.mrf.mxu0
    %v2634 = vadd.f32 %v67, %v2633
    %v2635 = vpop.f32.mrf.mxu0
    %2636 = vdwg.mxu0
    %2637 = vmatprep.subr.mxu0 0.0
    %2638 = vmatpush1.msra.mxu0 0.0
    %2639 = vmatprep.subr.mxu0 0.0
    %2640 = vmatpush1.msra.mxu0 0.0
    %2641 = vmatprep.subr.mxu0 0.0
    %2642 = vmatpush1.msra.mxu0 0.0
    %2643 = vmatprep.subr.mxu0 0.0
    %2644 = vmatpush1.msra.mxu0 0.0
    %2645 = vmatprep.subr.mxu0 0.0
    %2646 = vmatpush1.msra.mxu0 0.0
    %2647 = vmatprep.subr.mxu0 0.0
    %2648 = vmatpush1.msra.mxu0 0.0
    %2649 = vmatprep.subr.mxu0 0.0
    %2650 = vmatpush1.msra.mxu0 0.0
    %2651 = vmatprep.subr.mxu0 0.0
    %2652 = vmatpush1.msra.mxu0 0.0
    %2653 = vmatprep.subr.mxu0 0.0
    %2654 = vmatpush1.msra.mxu0 0.0
    %2655 = vmatprep.subr.mxu0 0.0
    %2656 = vmatpush1.msra.mxu0 0.0
    %2657 = vmatprep.subr.mxu0 0.0
    %2658 = vmatpush1.msra.mxu0 0.0
    %2659 = vmatprep.subr.mxu0 0.0
    %2660 = vmatpush1.msra.mxu0 0.0
    %2661 = vmatprep.subr.mxu0 0.0
    %2662 = vmatpush1.msra.mxu0 %v53
    %2663 = vmatprep.subr.mxu0 0.0
    %2664 = vmatpush1.msra.mxu0 %v52
    %2665 = vmatprep.subr.mxu0 0.0
    %2666 = vmatpush1.msra.mxu0 %v51
    %2667 = vmatprep.subr.mxu0 0.0
    %2668 = vmatpush1.msra.mxu0 %v50
    %2669 = vmatprep.subr.mxu0 0.0
    %2670 = vmatpush2.msra.mxu0 0.0
    %2671 = vmatprep.subr.mxu0 0.0
    %2672 = vmatpush2.msra.mxu0 0.0
    %2673 = vmatprep.subr.mxu0 0.0
    %2674 = vmatpush2.msra.mxu0 0.0
    %2675 = vmatprep.subr.mxu0 0.0
    %2676 = vmatpush2.msra.mxu0 0.0
    %2677 = vmatprep.subr.mxu0 0.0
    %2678 = vmatpush2.msra.mxu0 0.0
    %2679 = vmatprep.subr.mxu0 0.0
    %2680 = vmatpush2.msra.mxu0 0.0
    %2681 = vmatprep.subr.mxu0 0.0
    %2682 = vmatpush2.msra.mxu0 0.0
    %2683 = vmatprep.subr.mxu0 0.0
    %2684 = vmatpush2.msra.mxu0 0.0
    %2685 = vmatprep.subr.mxu0 0.0
    %2686 = vmatpush2.msra.mxu0 0.0
    %2687 = vmatprep.subr.mxu0 0.0
    %2688 = vmatpush2.msra.mxu0 0.0
    %2689 = vmatprep.subr.mxu0 0.0
    %2690 = vmatpush2.msra.mxu0 0.0
    %2691 = vmatprep.subr.mxu0 0.0
    %2692 = vmatpush2.msra.mxu0 0.0
    %2693 = vmatprep.subr.mxu0 0.0
    %2694 = vmatpush2.msra.mxu0 0.0
    %2695 = vmatprep.subr.mxu0 0.0
    %2696 = vmatpush2.msra.mxu0 0.0
    %2697 = vmatprep.subr.mxu0 0.0
    %2698 = vmatpush2.msra.mxu0 0.0
    %2699 = vmatprep.subr.mxu0 0.0
    %2700 = vmatpush2.msra.mxu0 0.0
    %2701 = vmatprep.mubr.f32.mxu0 0.0
    %2702 = vmatmul.mubr.f32.gmra.mxu0 %v2387
    %v2703 = vpop.f32.mrf.mxu0
    %v2704 = vadd.f32 %v145, %v2703
    %v2705 = vpop.f32.mrf.mxu0
    %2706 = vdwg.mxu0
    %v2707 = vadd.f32 %v2634, %v2704
    %v2708 = vsub.f32 0.0, %v2707
    %v2709 = vmul.f32 %v2708, 1.442695
    %v2710 = vpow.pop %v2709
    %v2711 = vadd.f32 %v2710, 1.0
    %v2712 = vrcp.pop %v2711
    %v2713 = vmul.f32 1.0, %v2712
    %2715 = vrot.lane.b32.xlu0 %v2704, 64
    %v2716 = vpop.permute.xlu0 %2715
    %v2718 = vmul.f32 %v2713, %v2716
    %2720 = vrot.lane.b32.xlu0 %v2718, 64
    %v2721 = vpop.permute.xlu0 %2720
    %v2723 = vadd.f32 %v2634, %v2721
    %v2724 = vtanh.pop %v2723
    %v2725 = vsub.f32 1.0, %v2713
    %2727 = vrot.lane.b32.xlu0 %v2724, 96
    %v2728 = vpop.permute.xlu0 %2727
    %v2730 = vmul.f32 %v2725, %v2728
    %v2731 = vmul.f32 %v2713, %v2383
    %v2732 = vadd.f32 %v2730, %v2731
    %v2733 = vsel %vm2563, 1, 0
    %2734 = vset.pattern.permute.xlu0 0
    %2735 = vperm.xlu0 %2734, %v2733
    %v2736 = vpop.permute.xlu0 %2735
    %vm2737 = vcmp.eq.s32.totalorder %v2736, 1
    %v2738 = vsel %vm2737, %v2732, %v2383
    %2740 = vrot.lane.b32.xlu0 %v2738, 96
    %v2741 = vpop.permute.xlu0 %2740
    %v2742 = vsel %vm68, %v2741, 0
    %2744 = vmatprep.subr.mxu0 0.0
    %2745 = vmatpush1.msra.mxu0 0.0
    %2746 = vmatprep.subr.mxu0 0.0
    %2747 = vmatpush1.msra.mxu0 0.0
    %2748 = vmatprep.subr.mxu0 0.0
    %2749 = vmatpush1.msra.mxu0 0.0
    %2750 = vmatprep.subr.mxu0 0.0
    %2751 = vmatpush1.msra.mxu0 0.0
    %2752 = vmatprep.subr.mxu0 0.0
    %2753 = vmatpush1.msra.mxu0 0.0
    %2754 = vmatprep.subr.mxu0 0.0
    %2755 = vmatpush1.msra.mxu0 0.0
    %2756 = vmatprep.subr.mxu0 0.0
    %2757 = vmatpush1.msra.mxu0 0.0
    %2758 = vmatprep.subr.mxu0 0.0
    %2759 = vmatpush1.msra.mxu0 0.0
    %2760 = vmatprep.subr.mxu0 0.0
    %2761 = vmatpush1.msra.mxu0 0.0
    %2762 = vmatprep.subr.mxu0 0.0
    %2763 = vmatpush1.msra.mxu0 0.0
    %2764 = vmatprep.subr.mxu0 0.0
    %2765 = vmatpush1.msra.mxu0 0.0
    %2766 = vmatprep.subr.mxu0 0.0
    %2767 = vmatpush1.msra.mxu0 0.0
    %2768 = vmatprep.subr.mxu0 0.0
    %2769 = vmatpush1.msra.mxu0 %v49
    %2770 = vmatprep.subr.mxu0 0.0
    %2771 = vmatpush1.msra.mxu0 %v48
    %2772 = vmatprep.subr.mxu0 0.0
    %2773 = vmatpush1.msra.mxu0 %v47
    %2774 = vmatprep.subr.mxu0 0.0
    %2775 = vmatpush1.msra.mxu0 %v46
    %2776 = vmatprep.subr.mxu0 0.0
    %2777 = vmatpush2.msra.mxu0 0.0
    %2778 = vmatprep.subr.mxu0 0.0
    %2779 = vmatpush2.msra.mxu0 0.0
    %2780 = vmatprep.subr.mxu0 0.0
    %2781 = vmatpush2.msra.mxu0 0.0
    %2782 = vmatprep.subr.mxu0 0.0
    %2783 = vmatpush2.msra.mxu0 0.0
    %2784 = vmatprep.subr.mxu0 0.0
    %2785 = vmatpush2.msra.mxu0 0.0
    %2786 = vmatprep.subr.mxu0 0.0
    %2787 = vmatpush2.msra.mxu0 0.0
    %2788 = vmatprep.subr.mxu0 0.0
    %2789 = vmatpush2.msra.mxu0 0.0
    %2790 = vmatprep.subr.mxu0 0.0
    %2791 = vmatpush2.msra.mxu0 0.0
    %2792 = vmatprep.subr.mxu0 0.0
    %2793 = vmatpush2.msra.mxu0 0.0
    %2794 = vmatprep.subr.mxu0 0.0
    %2795 = vmatpush2.msra.mxu0 0.0
    %2796 = vmatprep.subr.mxu0 0.0
    %2797 = vmatpush2.msra.mxu0 0.0
    %2798 = vmatprep.subr.mxu0 0.0
    %2799 = vmatpush2.msra.mxu0 0.0
    %2800 = vmatprep.subr.mxu0 0.0
    %2801 = vmatpush2.msra.mxu0 0.0
    %2802 = vmatprep.subr.mxu0 0.0
    %2803 = vmatpush2.msra.mxu0 0.0
    %2804 = vmatprep.subr.mxu0 0.0
    %2805 = vmatpush2.msra.mxu0 0.0
    %2806 = vmatprep.subr.mxu0 0.0
    %2807 = vmatpush2.msra.mxu0 0.0
    %2808 = vmatprep.mubr.f32.mxu0 0.0
    %2809 = vmatmul.mubr.f32.gmra.mxu0 %v2742
    %v2810 = vpop.f32.mrf.mxu0
    %v2811 = vadd.f32 %v254, %v2810
    %v2812 = vpop.f32.mrf.mxu0
    %2813 = vdwg.mxu0
    %2815 = vrot.lane.b32.xlu0 %v2560, 96
    %v2816 = vpop.permute.xlu0 %2815
    %v2817 = vsel %vm68, %v2816, 0
    %2819 = vmatprep.subr.mxu0 0.0
    %2820 = vmatpush1.msra.mxu0 0.0
    %2821 = vmatprep.subr.mxu0 0.0
    %2822 = vmatpush1.msra.mxu0 0.0
    %2823 = vmatprep.subr.mxu0 0.0
    %2824 = vmatpush1.msra.mxu0 0.0
    %2825 = vmatprep.subr.mxu0 0.0
    %2826 = vmatpush1.msra.mxu0 0.0
    %2827 = vmatprep.subr.mxu0 0.0
    %2828 = vmatpush1.msra.mxu0 0.0
    %2829 = vmatprep.subr.mxu0 0.0
    %2830 = vmatpush1.msra.mxu0 0.0
    %2831 = vmatprep.subr.mxu0 0.0
    %2832 = vmatpush1.msra.mxu0 0.0
    %2833 = vmatprep.subr.mxu0 0.0
    %2834 = vmatpush1.msra.mxu0 0.0
    %2835 = vmatprep.subr.mxu0 0.0
    %2836 = vmatpush1.msra.mxu0 0.0
    %2837 = vmatprep.subr.mxu0 0.0
    %2838 = vmatpush1.msra.mxu0 0.0
    %2839 = vmatprep.subr.mxu0 0.0
    %2840 = vmatpush1.msra.mxu0 0.0
    %2841 = vmatprep.subr.mxu0 0.0
    %2842 = vmatpush1.msra.mxu0 0.0
    %2843 = vmatprep.subr.mxu0 0.0
    %2844 = vmatpush1.msra.mxu0 %v58
    %2845 = vmatprep.subr.mxu0 0.0
    %2846 = vmatpush1.msra.mxu0 %v57
    %2847 = vmatprep.subr.mxu0 0.0
    %2848 = vmatpush1.msra.mxu0 %v56
    %2849 = vmatprep.subr.mxu0 0.0
    %2850 = vmatpush1.msra.mxu0 %v55
    %2851 = vmatprep.subr.mxu0 0.0
    %2852 = vmatpush2.msra.mxu0 0.0
    %2853 = vmatprep.subr.mxu0 0.0
    %2854 = vmatpush2.msra.mxu0 0.0
    %2855 = vmatprep.subr.mxu0 0.0
    %2856 = vmatpush2.msra.mxu0 0.0
    %2857 = vmatprep.subr.mxu0 0.0
    %2858 = vmatpush2.msra.mxu0 0.0
    %2859 = vmatprep.subr.mxu0 0.0
    %2860 = vmatpush2.msra.mxu0 0.0
    %2861 = vmatprep.subr.mxu0 0.0
    %2862 = vmatpush2.msra.mxu0 0.0
    %2863 = vmatprep.subr.mxu0 0.0
    %2864 = vmatpush2.msra.mxu0 0.0
    %2865 = vmatprep.subr.mxu0 0.0
    %2866 = vmatpush2.msra.mxu0 0.0
    %2867 = vmatprep.subr.mxu0 0.0
    %2868 = vmatpush2.msra.mxu0 0.0
    %2869 = vmatprep.subr.mxu0 0.0
    %2870 = vmatpush2.msra.mxu0 0.0
    %2871 = vmatprep.subr.mxu0 0.0
    %2872 = vmatpush2.msra.mxu0 0.0
    %2873 = vmatprep.subr.mxu0 0.0
    %2874 = vmatpush2.msra.mxu0 0.0
    %2875 = vmatprep.subr.mxu0 0.0
    %2876 = vmatpush2.msra.mxu0 0.0
    %2877 = vmatprep.subr.mxu0 0.0
    %2878 = vmatpush2.msra.mxu0 0.0
    %2879 = vmatprep.subr.mxu0 0.0
    %2880 = vmatpush2.msra.mxu0 0.0
    %2881 = vmatprep.subr.mxu0 0.0
    %2882 = vmatpush2.msra.mxu0 0.0
    %2883 = vmatprep.mubr.f32.mxu0 0.0
    %2884 = vmatmul.mubr.f32.gmra.mxu0 %v2817
    %v2885 = vpop.f32.mrf.mxu0
    %v2886 = vadd.f32 %v333, %v2885
    %v2887 = vpop.f32.mrf.mxu0
    %2888 = vdwg.mxu0
    %v2889 = vadd.f32 %v2811, %v2886
    %v2890 = vsub.f32 0.0, %v2889
    %v2891 = vmul.f32 %v2890, 1.442695
    %v2892 = vpow.pop %v2891
    %v2893 = vadd.f32 %v2892, 1.0
    %v2894 = vrcp.pop %v2893
    %v2895 = vmul.f32 1.0, %v2894
    %2897 = vrot.lane.b32.xlu0 %v2886, 64
    %v2898 = vpop.permute.xlu0 %2897
    %v2900 = vmul.f32 %v2895, %v2898
    %2902 = vrot.lane.b32.xlu0 %v2900, 64
    %v2903 = vpop.permute.xlu0 %2902
    %v2905 = vadd.f32 %v2811, %v2903
    %v2906 = vtanh.pop %v2905
    %v2907 = vsub.f32 1.0, %v2895
    %2909 = vrot.lane.b32.xlu0 %v2906, 96
    %v2910 = vpop.permute.xlu0 %2909
    %v2912 = vmul.f32 %v2907, %v2910
    %v2913 = vmul.f32 %v2895, %v2560
    %v2914 = vadd.f32 %v2912, %v2913
    %v2915 = vsel %vm2737, %v2914, %v2560
    %v2916 = vld [vmem:[%s5] sm:$0xff]
    %v2917 = vld [vmem:[%s5 + $0x8] sm:$0xff]
    %v2918 = vld [vmem:[%s5 + $0x10] sm:$0xff]
    %v2919 = vld [vmem:[%s5 + $0x18] sm:$0xff]
    %v2920 = vld [vmem:[%s5 + $0x20] sm:$0xff]
    %v2921 = vld [vmem:[%s5 + $0x28] sm:$0xff]
    %v2922 = vld [vmem:[%s5 + $0x30] sm:$0xff]
    %v2923 = vld [vmem:[%s5 + $0x38] sm:$0xff]
    %v2924 = vld [vmem:[%s5 + $0x40] sm:$0xff]
    %v2925 = vld [vmem:[%s5 + $0x48] sm:$0xff]
    %v2926 = vld [vmem:[%s5 + $0x50] sm:$0xff]
    %v2927 = vld [vmem:[%s5 + $0x58] sm:$0xff]
    %v2928 = vld [vmem:[%s6] sm:$0x1]
    %v2929 = vld [vmem:[%s6 + $0x1] sm:$0x1]
    %v2930 = vld [vmem:[%s6 + $0x2] sm:$0x1]
    %v2931 = vlaneseq
    %v2932 = vshrl.u32 %v2931, 7
    %v2933 = vsub.s32 0, %v2932
    %v2934 = vrot.slane %v2928, %v2933
    %2936 = vrot.lane.b32.xlu0 %v2915, 96
    %v2937 = vpop.permute.xlu0 %2936
    %v2938 = vsel %vm68, %v2937, 0
    %2940 = vmatprep.subr.mxu0 0.0
    %2941 = vmatpush1.msra.mxu0 0.0
    %2942 = vmatprep.subr.mxu0 0.0
    %2943 = vmatpush1.msra.mxu0 0.0
    %2944 = vmatprep.subr.mxu0 0.0
    %2945 = vmatpush1.msra.mxu0 0.0
    %2946 = vmatprep.subr.mxu0 0.0
    %2947 = vmatpush1.msra.mxu0 0.0
    %2948 = vmatprep.subr.mxu0 0.0
    %2949 = vmatpush1.msra.mxu0 0.0
    %2950 = vmatprep.subr.mxu0 0.0
    %2951 = vmatpush1.msra.mxu0 0.0
    %2952 = vmatprep.subr.mxu0 0.0
    %2953 = vmatpush1.msra.mxu0 0.0
    %2954 = vmatprep.subr.mxu0 0.0
    %2955 = vmatpush1.msra.mxu0 0.0
    %2956 = vmatprep.subr.mxu0 0.0
    %2957 = vmatpush1.msra.mxu0 0.0
    %2958 = vmatprep.subr.mxu0 0.0
    %2959 = vmatpush1.msra.mxu0 0.0
    %2960 = vmatprep.subr.mxu0 0.0
    %2961 = vmatpush1.msra.mxu0 0.0
    %2962 = vmatprep.subr.mxu0 0.0
    %2963 = vmatpush1.msra.mxu0 0.0
    %2964 = vmatprep.subr.mxu0 0.0
    %2965 = vmatpush1.msra.mxu0 %v2919
    %2966 = vmatprep.subr.mxu0 0.0
    %2967 = vmatpush1.msra.mxu0 %v2918
    %2968 = vmatprep.subr.mxu0 0.0
    %2969 = vmatpush1.msra.mxu0 %v2917
    %2970 = vmatprep.subr.mxu0 0.0
    %2971 = vmatpush1.msra.mxu0 %v2916
    %2972 = vmatprep.subr.mxu0 0.0
    %2973 = vmatpush2.msra.mxu0 0.0
    %2974 = vmatprep.subr.mxu0 0.0
    %2975 = vmatpush2.msra.mxu0 0.0
    %2976 = vmatprep.subr.mxu0 0.0
    %2977 = vmatpush2.msra.mxu0 0.0
    %2978 = vmatprep.subr.mxu0 0.0
    %2979 = vmatpush2.msra.mxu0 0.0
    %2980 = vmatprep.subr.mxu0 0.0
    %2981 = vmatpush2.msra.mxu0 0.0
    %2982 = vmatprep.subr.mxu0 0.0
    %2983 = vmatpush2.msra.mxu0 0.0
    %2984 = vmatprep.subr.mxu0 0.0
    %2985 = vmatpush2.msra.mxu0 0.0
    %2986 = vmatprep.subr.mxu0 0.0
    %2987 = vmatpush2.msra.mxu0 0.0
    %2988 = vmatprep.subr.mxu0 0.0
    %2989 = vmatpush2.msra.mxu0 0.0
    %2990 = vmatprep.subr.mxu0 0.0
    %2991 = vmatpush2.msra.mxu0 0.0
    %2992 = vmatprep.subr.mxu0 0.0
    %2993 = vmatpush2.msra.mxu0 0.0
    %2994 = vmatprep.subr.mxu0 0.0
    %2995 = vmatpush2.msra.mxu0 0.0
    %2996 = vmatprep.subr.mxu0 0.0
    %2997 = vmatpush2.msra.mxu0 0.0
    %2998 = vmatprep.subr.mxu0 0.0
    %2999 = vmatpush2.msra.mxu0 0.0
    %3000 = vmatprep.subr.mxu0 0.0
    %3001 = vmatpush2.msra.mxu0 0.0
    %3002 = vmatprep.subr.mxu0 0.0
    %3003 = vmatpush2.msra.mxu0 0.0
    %3004 = vmatprep.mubr.f32.mxu0 0.0
    %3005 = vmatmul.mubr.f32.gmra.mxu0 %v2938
    %v3006 = vpop.f32.mrf.mxu0
    %v3007 = vadd.f32 %v2934, %v3006
    %v3008 = vpop.f32.mrf.mxu0
    %3009 = vdwg.mxu0
    %v3010 = vtanh.pop %v3007
    %v3011 = vlaneseq
    %v3012 = vshrl.u32 %v3011, 7
    %v3013 = vsub.s32 0, %v3012
    %v3014 = vrot.slane %v2929, %v3013
    %v3016 = vsel %vm68, %v3010, 0
    %3018 = vmatprep.subr.mxu0 0.0
    %3019 = vmatpush1.msra.mxu0 0.0
    %3020 = vmatprep.subr.mxu0 0.0
    %3021 = vmatpush1.msra.mxu0 0.0
    %3022 = vmatprep.subr.mxu0 0.0
    %3023 = vmatpush1.msra.mxu0 0.0
    %3024 = vmatprep.subr.mxu0 0.0
    %3025 = vmatpush1.msra.mxu0 0.0
    %3026 = vmatprep.subr.mxu0 0.0
    %3027 = vmatpush1.msra.mxu0 0.0
    %3028 = vmatprep.subr.mxu0 0.0
    %3029 = vmatpush1.msra.mxu0 0.0
    %3030 = vmatprep.subr.mxu0 0.0
    %3031 = vmatpush1.msra.mxu0 0.0
    %3032 = vmatprep.subr.mxu0 0.0
    %3033 = vmatpush1.msra.mxu0 0.0
    %3034 = vmatprep.subr.mxu0 0.0
    %3035 = vmatpush1.msra.mxu0 0.0
    %3036 = vmatprep.subr.mxu0 0.0
    %3037 = vmatpush1.msra.mxu0 0.0
    %3038 = vmatprep.subr.mxu0 0.0
    %3039 = vmatpush1.msra.mxu0 0.0
    %3040 = vmatprep.subr.mxu0 0.0
    %3041 = vmatpush1.msra.mxu0 0.0
    %3042 = vmatprep.subr.mxu0 0.0
    %3043 = vmatpush1.msra.mxu0 %v2923
    %3044 = vmatprep.subr.mxu0 0.0
    %3045 = vmatpush1.msra.mxu0 %v2922
    %3046 = vmatprep.subr.mxu0 0.0
    %3047 = vmatpush1.msra.mxu0 %v2921
    %3048 = vmatprep.subr.mxu0 0.0
    %3049 = vmatpush1.msra.mxu0 %v2920
    %3050 = vmatprep.subr.mxu0 0.0
    %3051 = vmatpush2.msra.mxu0 0.0
    %3052 = vmatprep.subr.mxu0 0.0
    %3053 = vmatpush2.msra.mxu0 0.0
    %3054 = vmatprep.subr.mxu0 0.0
    %3055 = vmatpush2.msra.mxu0 0.0
    %3056 = vmatprep.subr.mxu0 0.0
    %3057 = vmatpush2.msra.mxu0 0.0
    %3058 = vmatprep.subr.mxu0 0.0
    %3059 = vmatpush2.msra.mxu0 0.0
    %3060 = vmatprep.subr.mxu0 0.0
    %3061 = vmatpush2.msra.mxu0 0.0
    %3062 = vmatprep.subr.mxu0 0.0
    %3063 = vmatpush2.msra.mxu0 0.0
    %3064 = vmatprep.subr.mxu0 0.0
    %3065 = vmatpush2.msra.mxu0 0.0
    %3066 = vmatprep.subr.mxu0 0.0
    %3067 = vmatpush2.msra.mxu0 0.0
    %3068 = vmatprep.subr.mxu0 0.0
    %3069 = vmatpush2.msra.mxu0 0.0
    %3070 = vmatprep.subr.mxu0 0.0
    %3071 = vmatpush2.msra.mxu0 0.0
    %3072 = vmatprep.subr.mxu0 0.0
    %3073 = vmatpush2.msra.mxu0 0.0
    %3074 = vmatprep.subr.mxu0 0.0
    %3075 = vmatpush2.msra.mxu0 0.0
    %3076 = vmatprep.subr.mxu0 0.0
    %3077 = vmatpush2.msra.mxu0 0.0
    %3078 = vmatprep.subr.mxu0 0.0
    %3079 = vmatpush2.msra.mxu0 0.0
    %3080 = vmatprep.subr.mxu0 0.0
    %3081 = vmatpush2.msra.mxu0 0.0
    %3082 = vmatprep.mubr.f32.mxu0 0.0
    %3083 = vmatmul.mubr.f32.gmra.mxu0 %v3016
    %v3084 = vpop.f32.mrf.mxu0
    %v3085 = vadd.f32 %v3014, %v3084
    %v3086 = vpop.f32.mrf.mxu0
    %3087 = vdwg.mxu0
    %v3088 = vtanh.pop %v3085
    %v3089 = vlaneseq
    %v3090 = vshrl.u32 %v3089, 7
    %v3091 = vsub.s32 0, %v3090
    %v3092 = vrot.slane %v2930, %v3091
    %v3094 = vsel %vm68, %v3088, 0
    %3096 = vmatprep.subr.mxu0 0.0
    %3097 = vmatpush1.msra.mxu0 0.0
    %3098 = vmatprep.subr.mxu0 0.0
    %3099 = vmatpush1.msra.mxu0 0.0
    %3100 = vmatprep.subr.mxu0 0.0
    %3101 = vmatpush1.msra.mxu0 0.0
    %3102 = vmatprep.subr.mxu0 0.0
    %3103 = vmatpush1.msra.mxu0 0.0
    %3104 = vmatprep.subr.mxu0 0.0
    %3105 = vmatpush1.msra.mxu0 0.0
    %3106 = vmatprep.subr.mxu0 0.0
    %3107 = vmatpush1.msra.mxu0 0.0
    %3108 = vmatprep.subr.mxu0 0.0
    %3109 = vmatpush1.msra.mxu0 0.0
    %3110 = vmatprep.subr.mxu0 0.0
    %3111 = vmatpush1.msra.mxu0 0.0
    %3112 = vmatprep.subr.mxu0 0.0
    %3113 = vmatpush1.msra.mxu0 0.0
    %3114 = vmatprep.subr.mxu0 0.0
    %3115 = vmatpush1.msra.mxu0 0.0
    %3116 = vmatprep.subr.mxu0 0.0
    %3117 = vmatpush1.msra.mxu0 0.0
    %3118 = vmatprep.subr.mxu0 0.0
    %3119 = vmatpush1.msra.mxu0 0.0
    %3120 = vmatprep.subr.mxu0 0.0
    %3121 = vmatpush1.msra.mxu0 %v2927
    %3122 = vmatprep.subr.mxu0 0.0
    %3123 = vmatpush1.msra.mxu0 %v2926
    %3124 = vmatprep.subr.mxu0 0.0
    %3125 = vmatpush1.msra.mxu0 %v2925
    %3126 = vmatprep.subr.mxu0 0.0
    %3127 = vmatpush1.msra.mxu0 %v2924
    %3128 = vmatprep.subr.mxu0 0.0
    %3129 = vmatpush2.msra.mxu0 0.0
    %3130 = vmatprep.subr.mxu0 0.0
    %3131 = vmatpush2.msra.mxu0 0.0
    %3132 = vmatprep.subr.mxu0 0.0
    %3133 = vmatpush2.msra.mxu0 0.0
    %3134 = vmatprep.subr.mxu0 0.0
    %3135 = vmatpush2.msra.mxu0 0.0
    %3136 = vmatprep.subr.mxu0 0.0
    %3137 = vmatpush2.msra.mxu0 0.0
    %3138 = vmatprep.subr.mxu0 0.0
    %3139 = vmatpush2.msra.mxu0 0.0
    %3140 = vmatprep.subr.mxu0 0.0
    %3141 = vmatpush2.msra.mxu0 0.0
    %3142 = vmatprep.subr.mxu0 0.0
    %3143 = vmatpush2.msra.mxu0 0.0
    %3144 = vmatprep.subr.mxu0 0.0
    %3145 = vmatpush2.msra.mxu0 0.0
    %3146 = vmatprep.subr.mxu0 0.0
    %3147 = vmatpush2.msra.mxu0 0.0
    %3148 = vmatprep.subr.mxu0 0.0
    %3149 = vmatpush2.msra.mxu0 0.0
    %3150 = vmatprep.subr.mxu0 0.0
    %3151 = vmatpush2.msra.mxu0 0.0
    %3152 = vmatprep.subr.mxu0 0.0
    %3153 = vmatpush2.msra.mxu0 0.0
    %3154 = vmatprep.subr.mxu0 0.0
    %3155 = vmatpush2.msra.mxu0 0.0
    %3156 = vmatprep.subr.mxu0 0.0
    %3157 = vmatpush2.msra.mxu0 0.0
    %3158 = vmatprep.subr.mxu0 0.0
    %3159 = vmatpush2.msra.mxu0 0.0
    %3160 = vmatprep.mubr.f32.mxu0 0.0
    %3161 = vmatmul.mubr.f32.gmra.mxu0 %v3094
    %v3162 = vpop.f32.mrf.mxu0
    %v3163 = vadd.f32 %v3092, %v3162
    %v3164 = vpop.f32.mrf.mxu0
    %3165 = vdwg.mxu0
    %vm3166 = vcmask 7168
    %3167 = vst.msk [vmem:[%s7] sm:$0xff] %vm3166, %v3163
    // Predicated region
    $region34: #{tpu_custom_call.1} parent=1 // pred_check
      _
    $region35: #{tpu_custom_call.1} parent=1 // pred_check_branch
      %3169 = sbr.rel (0) target = $region37
    $region36: #{tpu_custom_call.1} parent=1 // pred_region
      _
    $region37: #{tpu_custom_call.1} parent=1 // pred_fallthru
      _
    // Predicated region
    $region38: #{tpu_custom_call.1} parent=1 // pred_check
      _
    $region39: #{tpu_custom_call.1} parent=1 // pred_check_branch
      %3171 = sbr.rel (0) target = $region41
    $region40: #{tpu_custom_call.1} parent=1 // pred_region
      _
    $region41: #{tpu_custom_call.1} parent=1 // pred_fallthru
      _
    %3172 = vsyncpa [#allocation3], 1

</llo_original>
